<compile_context>
chip_gen: v7x
topology: tpu7x:2x2x1
jax: 0.10.0
libtpu: 0.0.40
codegen_flags: <defaults>
</compile_context>

<pallas_src>
import functools
import math

import jax
import jax.numpy as jnp
from jax.experimental import pallas as pl
from jax.experimental.pallas import tpu as pltpu

# --- model hyperparameters (stand-ins for the module's undefined globals) ---
INPUT_DIM = 16                          # input_dim == output_dim (spatial points of the rod)
HIDDEN_DIM = 32                         # hidden_dim
NUM_LAYERS = 3                          # num_layers
NUM_HIDDEN = NUM_LAYERS - 1             # number of Softplus hidden layers
HIDDEN_DIM_G = int(HIDDEN_DIM / 5) + 1  # func_g hidden width (7), per CNeuralODE.__init__

_TANH_SAT = 20.0                         # tanh(20.0) == 1.0 in f32  -> regenerates the constant row
_SOFTPLUS_INV_ONE = math.log(math.e - 1.0)  # softplus(log(e-1)) == 1.0


def my_du(t):
    # TODO(synk): stand-in for the undefined module-level global `my_du` (control signal u(t)).
    return jnp.sin(t)


def _softplus(z):
    # torch.nn.Softplus(beta=1, threshold=20).  The old jnp.minimum(z,20) guard is unnecessary:
    # for z>20 the exp may overflow to +inf, log1p(inf)=inf, but that branch is discarded by the
    # where (never NaN), so we save the compare/min VPU passes.
    return jnp.where(z > 20.0, z, jnp.log1p(jnp.exp(z)))


def _round_up(x, m):
    return (x + m - 1) // m * m


def _cdiv(a, b):
    return -(-a // b)


# ---------------------------------------------------------------------------
# Kernel
# ---------------------------------------------------------------------------
def _euler_kernel(u_ref, s_ref, wb_ref, out_ref, *,
                  d, sp, hp, num_hidden, num_steps, unroll):
    """Euler-integrate one lane-dense tile.

    State s is (sp, TM) with M on lanes: rows [0,d) = y, row d = constant 1, rest = 0.
    Weight blob layout (rows): [W1 (hp,sp pad->hp) | Wm_0 .. Wm_{nh-1} (hp,hp) | Wo_f (sp,hp) | Wo_g (sp,hp)].
    """
    # Hoisted parameter loads: after f/g fusion + bias folding this is ~15 bf16 vregs, far from the
    # 64-vreg file even with a TM=512 tile live.
    # TODO(synk): if a bundle audit at TM=512 shows spill stores, re-load wm[l] from wb_ref inside
    # step() instead (the VMEM vld slots have slack) per the review.
    w1 = wb_ref[0:hp, 0:sp]                                              # (hp, sp) bf16, bias in col d
    wm = [wb_ref[hp * (1 + l):hp * (2 + l), :] for l in range(num_hidden)]  # (hp, hp) block-diagonal
    off = hp * (1 + num_hidden)
    wo_f = wb_ref[off:off + sp, :].astype(jnp.float32)                   # f output block (dt folded)
    wo_g = wb_ref[off + sp:off + 2 * sp, :].astype(jnp.float32)          # g output block (dt folded)

    s0 = s_ref[...].astype(jnp.float32)                                  # (sp, TM)

    def step(i, s):
        u_i = u_ref[i]                                                   # u(t_i), SMEM scalar
        # Fused f/g MLP: 3 matmuls per step (was 6).  bf16 MXU inputs, f32 accumulate;
        # transcendentals stay f32 (v5e-safe).
        h = jnp.tanh(jnp.dot(w1, s.astype(jnp.bfloat16),
                             preferred_element_type=jnp.float32))        # (hp, TM)
        for l in range(num_hidden):
            h = _softplus(jnp.dot(wm[l], h.astype(jnp.bfloat16),
                                  preferred_element_type=jnp.float32))
        # Fold u(t_i) into the fused output weight (g columns + g bias column):
        #   delta = (Wo_f + u_i * Wo_g) @ h  ==  dt * (func_f(y) + u(t_i) * func_g(y))
        wo_i = (wo_f + u_i * wo_g).astype(jnp.bfloat16)                  # 2 tiny vreg ops / step
        delta = jnp.dot(wo_i, h.astype(jnp.bfloat16),
                        preferred_element_type=jnp.float32)              # (sp, TM); rows >= d are 0
        return s + delta                                                 # Euler update; const row stays 1

    s = jax.lax.fori_loop(0, num_steps, step, s0, unroll=unroll)
    out_ref[...] = s[0:d, :].astype(out_ref.dtype)


# ---------------------------------------------------------------------------
# Weight packing: fuse func_f / func_g into one block-diagonal MLP + fold biases
# ---------------------------------------------------------------------------
def _pack_fused_params(params_f, params_g, dt):
    wf1, bf1, wfm, bfm, wfo, bfo = params_f
    wg1, bg1, wgm, bgm, wgo, bgo = params_g
    H, D_in = wf1.shape                   # 32, 16
    HG = wg1.shape[0]                     # 7
    nh = wfm.shape[0]
    D_out = wfo.shape[0]                  # 16
    HP = _round_up(H + HG + 1, 8)         # fused hidden rows incl. constant row -> 40
    SP = _round_up(D_in + 1, 8)           # state rows incl. constant row        -> 24
    f32 = jnp.float32

    # Layer 1 (HP, SP): [f block | g block | const row], biases in column D_in (the state's ones row).
    w1 = jnp.zeros((HP, SP), f32)
    w1 = w1.at[:H, :D_in].set(wf1.astype(f32)).at[:H, D_in].set(bf1.astype(f32))
    w1 = w1.at[H:H + HG, :D_in].set(wg1.astype(f32)).at[H:H + HG, D_in].set(bg1.astype(f32))
    w1 = w1.at[HP - 1, D_in].set(_TANH_SAT)                    # row HP-1 -> tanh(20) = 1

    # Hidden layers (nh, HP, HP): block-diagonal, bias in column HP-1, const row regenerated.
    wm = jnp.zeros((nh, HP, HP), f32)
    wm = wm.at[:, :H, :H].set(wfm.astype(f32)).at[:, :H, HP - 1].set(bfm.astype(f32))
    wm = wm.at[:, H:H + HG, H:H + HG].set(wgm.astype(f32)).at[:, H:H + HG, HP - 1].set(bgm.astype(f32))
    wm = wm.at[:, HP - 1, HP - 1].set(_SOFTPLUS_INV_ONE)       # softplus(log(e-1)) = 1

    # Output layer (dt folded).  delta = (Wo_f + u(t_i)*Wo_g) @ h; rows >= D_out are zero so the
    # constant / padding rows of the state are preserved by the Euler add.
    wo_f = jnp.zeros((SP, HP), f32)
    wo_f = wo_f.at[:D_out, :H].set(wfo.astype(f32) * dt).at[:D_out, HP - 1].set(bfo.astype(f32) * dt)
    wo_g = jnp.zeros((SP, HP), f32)
    wo_g = wo_g.at[:D_out, H:H + HG].set(wgo.astype(f32) * dt).at[:D_out, HP - 1].set(bgo.astype(f32) * dt)

    wblob = jnp.concatenate(
        [jnp.pad(w1, ((0, 0), (0, HP - SP))),      # (HP, HP)
         wm.reshape(nh * HP, HP),                  # (nh*HP, HP)
         wo_f, wo_g],                              # (2*SP, HP)
        axis=0).astype(jnp.bfloat16)               # single contiguous weight blob (~13 KB)
    return wblob, HP, SP, nh


# ---------------------------------------------------------------------------
# Wrapper
# ---------------------------------------------------------------------------
def neural_ode_forward(y0, t, params_f, params_g, u_fn=my_du):
    """CNeuralODE.forward with the basic Euler solver: returns the final state, shape (B, S, D)."""
    B, S, D = y0.shape
    M = B * S
    num_steps = int(t.shape[0]) - 1
    # NOTE: basic_euler_ode_solver assumes a *uniform* time grid (dt = t[1]-t[0]).
    dt = (t[1] - t[0]).astype(jnp.float32)
    u_t = u_fn(t[:num_steps]).astype(jnp.float32)              # u(t_i); dt lives in the output layer

    wblob, HP, SP, nh = _pack_fused_params(params_f, params_g, dt)

    # Lane-dense layout: M on the 128-lane axis.  Guarantee >= 2 (even) tiles so both v7x TensorCores
    # get work; ~512-lane tiles otherwise (VMEM is not the constraint; vreg pressure caps TM).
    n_tiles = max(2, _cdiv(M, 512))
    n_tiles += n_tiles % 2
    TM = _round_up(_cdiv(M, n_tiles), 128)
    M_pad = TM * n_tiles

    # State tile: rows [0,D) = y (transposed, lane-dense), row D = constant 1 (bias row), rest 0.
    state0 = jnp.zeros((SP, M_pad), jnp.float32)
    state0 = state0.at[:D, :M].set(y0.reshape(M, D).T.astype(jnp.float32))
    state0 = state0.at[D, :].set(1.0)

    # num_steps is a trace-time constant: fully unroll short horizons, unroll=4 for long ones.
    unroll = max(1, num_steps) if num_steps <= 16 else 4

    kernel = functools.partial(_euler_kernel, d=D, sp=SP, hp=HP,
                               num_hidden=nh, num_steps=num_steps, unroll=unroll)

    outT = pl.pallas_call(
        kernel,
        out_shape=jax.ShapeDtypeStruct((D, M_pad), jnp.float32),
        grid=(n_tiles,),
        in_specs=[pl.BlockSpec(memory_space=pltpu.MemorySpace.SMEM),     # u(t_i) scalars
                  pl.BlockSpec((SP, TM), lambda i: (0, i)),              # state tile (lane-dense)
                  pl.BlockSpec(wblob.shape, lambda i: (0, 0))],          # packed weights (one blob)
        out_specs=pl.BlockSpec((D, TM), lambda i: (0, i)),
        compiler_params=pltpu.CompilerParams(dimension_semantics=("parallel",)),
    )(u_t, state0, wblob)

    return outT[:, :M].T.reshape(B, S, D).astype(y0.dtype)


# ---------------------------------------------------------------------------
# Plain-JAX reference + init (faithful to the PyTorch module, f32 throughout)
# ---------------------------------------------------------------------------
def _reference_forward(y0, t, params_f, params_g, u_fn=my_du):
    """Matches CNeuralODE.forward with the basic Euler solver."""
    def mlp(params, y):
        w1, b1, wm, bm, wo, bo = params                        # torch (out, in) convention
        h = jnp.tanh(y @ w1.T + b1)
        for l in range(wm.shape[0]):
            h = jnp.where(h @ wm[l].T + bm[l] > 20.0,
                          h @ wm[l].T + bm[l],
                          jnp.log1p(jnp.exp(jnp.minimum(h @ wm[l].T + bm[l], 20.0))))
        return h @ wo.T + bo

    dt = t[1] - t[0]
    y = y0
    for i in range(int(t.shape[0]) - 1):
        y = y + (mlp(params_f, y) + mlp(params_g, y) * u_fn(t[i])) * dt
    return y


def _init_odefunc_params(key, in_dim, hid_dim, out_dim, num_hidden):
    """nn.Linear-style init, weights stored as (out_features, in_features)."""
    ks = jax.random.split(key, 2 * (num_hidden + 2))

    def lin(kw, kb, fan_in, fan_out):
        s = 1.0 / (fan_in ** 0.5)
        w = jax.random.uniform(kw, (fan_out, fan_in), jnp.float32, -s, s)
        b = jax.random.uniform(kb, (fan_out,), jnp.float32, -s, s)
        return w, b

    w1, b1 = lin(ks[0], ks[1], in_dim, hid_dim)
    wm, bm = [], []
    for l in range(num_hidden):
        w, b = lin(ks[2 + 2 * l], ks[3 + 2 * l], hid_dim, hid_dim)
        wm.append(w); bm.append(b)
    wm = jnp.stack(wm); bm = jnp.stack(bm)
    wo, bo = lin(ks[-2], ks[-1], hid_dim, out_dim)
    return (w1, b1, wm, bm, wo, bo)


if __name__ == "__main__":
    key = jax.random.PRNGKey(0)
    kf, kg, ky = jax.random.split(key, 3)

    params_f = _init_odefunc_params(kf, INPUT_DIM, HIDDEN_DIM, INPUT_DIM, NUM_HIDDEN)
    params_g = _init_odefunc_params(kg, INPUT_DIM, HIDDEN_DIM_G, INPUT_DIM, NUM_HIDDEN)

    B, S, D = 2, 8, INPUT_DIM            # y0 shape implied by out[:, -1, :, :] indexing
    T = 8                                # number of time points -> 7 Euler steps
    y0 = jax.random.normal(ky, (B, S, D), dtype=jnp.float32)
    t = jnp.linspace(0.0, 1.0, T).astype(jnp.float32)

    out = neural_ode_forward(y0, t, params_f, params_g)
    out = jax.block_until_ready(out)

    ref = _reference_forward(y0, t, params_f, params_g)
    assert out.shape == (B, S, D)
    # Tolerance reflects bf16 MXU inputs (per perf review); the Euler state/accumulate stays f32.
    assert jnp.allclose(out, ref, atol=5e-3, rtol=5e-3), "mismatch vs. reference"

    print("KERNEL_OK")
</pallas_src>

<mosaic_0001>
module attributes {stable_mosaic.version = 11 : i64} {
  func.func @_euler_kernel(%arg0: i32, %arg1: memref<7xf32, #tpu.memory_space<smem>>, %arg2: memref<24x128xf32, #tpu.memory_space<vmem>>, %arg3: memref<168x40xbf16, #tpu.memory_space<vmem>>, %arg4: memref<16x128xf32, #tpu.memory_space<vmem>>) attributes {dimension_semantics = [#tpu.dimension_semantics<parallel>], iteration_bounds = array<i64: 2>, scalar_prefetch = 0 : i64, scratch_operands = 0 : i64, tpu.core_type = #tpu.core_type<tc>, window_params = [{transform_indices = @transform_0, window_bounds = array<i64: 7>}, {transform_indices = @transform_1, window_bounds = array<i64: 24, 128>}, {pipeline_mode = #tpu.pipeline_mode<synchronous>, transform_indices = @transform_2, window_bounds = array<i64: 168, 40>}, {transform_indices = @transform_3, window_bounds = array<i64: 16, 128>}]} {
    %c0 = arith.constant 0 : index
    %c0_0 = arith.constant 0 : index
    %0 = vector.load %arg3[%c0, %c0_0] : memref<168x40xbf16, #tpu.memory_space<vmem>>, vector<40x24xbf16>
    %c40 = arith.constant 40 : index
    %c0_1 = arith.constant 0 : index
    %1 = vector.load %arg3[%c40, %c0_1] : memref<168x40xbf16, #tpu.memory_space<vmem>>, vector<40x40xbf16>
    %c80 = arith.constant 80 : index
    %c0_2 = arith.constant 0 : index
    %2 = vector.load %arg3[%c80, %c0_2] : memref<168x40xbf16, #tpu.memory_space<vmem>>, vector<40x40xbf16>
    %c120 = arith.constant 120 : index
    %c0_3 = arith.constant 0 : index
    %3 = vector.load %arg3[%c120, %c0_3] : memref<168x40xbf16, #tpu.memory_space<vmem>>, vector<24x40xbf16>
    %4 = arith.extf %3 : vector<24x40xbf16> to vector<24x40xf32>
    %c144 = arith.constant 144 : index
    %c0_4 = arith.constant 0 : index
    %5 = vector.load %arg3[%c144, %c0_4] : memref<168x40xbf16, #tpu.memory_space<vmem>>, vector<24x40xbf16>
    %6 = arith.extf %5 : vector<24x40xbf16> to vector<24x40xf32>
    %c0_5 = arith.constant 0 : index
    %c0_6 = arith.constant 0 : index
    %7 = vector.load %arg2[%c0_5, %c0_6] : memref<24x128xf32, #tpu.memory_space<vmem>>, vector<24x128xf32>
    %c0_i32 = arith.constant 0 : i32
    %8 = arith.index_cast %c0_i32 : i32 to index
    %9 = memref.load %arg1[%8] : memref<7xf32, #tpu.memory_space<smem>>
    %10 = arith.truncf %7 : vector<24x128xf32> to vector<24x128xbf16>
    %cst = arith.constant dense<0.000000e+00> : vector<40x128xf32>
    %11 = tpu.matmul %0, %10, %cst {dimension_numbers = #tpu.dot_dimension_numbers<[1], [0], [0], [1], [0, 0, 1, 1], [], []>} : vector<40x24xbf16>, vector<24x128xbf16>, vector<40x128xf32> -> vector<40x128xf32>
    %12 = math.tanh %11 : vector<40x128xf32>
    %13 = arith.truncf %12 : vector<40x128xf32> to vector<40x128xbf16>
    %cst_7 = arith.constant dense<0.000000e+00> : vector<40x128xf32>
    %14 = tpu.matmul %1, %13, %cst_7 {dimension_numbers = #tpu.dot_dimension_numbers<[1], [0], [0], [1], [0, 0, 1, 1], [], []>} : vector<40x40xbf16>, vector<40x128xbf16>, vector<40x128xf32> -> vector<40x128xf32>
    %cst_8 = arith.constant 2.000000e+01 : f32
    %15 = vector.broadcast %cst_8 : f32 to vector<40x128xf32>
    %16 = arith.cmpf ogt, %14, %15 : vector<40x128xf32>
    %17 = math.exp %14 : vector<40x128xf32>
    %18 = math.log1p %17 : vector<40x128xf32>
    %19 = arith.select %16, %14, %18 : vector<40x128xi1>, vector<40x128xf32>
    %20 = arith.truncf %19 : vector<40x128xf32> to vector<40x128xbf16>
    %cst_9 = arith.constant dense<0.000000e+00> : vector<40x128xf32>
    %21 = tpu.matmul %2, %20, %cst_9 {dimension_numbers = #tpu.dot_dimension_numbers<[1], [0], [0], [1], [0, 0, 1, 1], [], []>} : vector<40x40xbf16>, vector<40x128xbf16>, vector<40x128xf32> -> vector<40x128xf32>
    %cst_10 = arith.constant 2.000000e+01 : f32
    %22 = vector.broadcast %cst_10 : f32 to vector<40x128xf32>
    %23 = arith.cmpf ogt, %21, %22 : vector<40x128xf32>
    %24 = math.exp %21 : vector<40x128xf32>
    %25 = math.log1p %24 : vector<40x128xf32>
    %26 = arith.select %23, %21, %25 : vector<40x128xi1>, vector<40x128xf32>
    %27 = vector.broadcast %9 : f32 to vector<24x40xf32>
    %28 = arith.mulf %27, %6 : vector<24x40xf32>
    %29 = arith.addf %4, %28 : vector<24x40xf32>
    %30 = arith.truncf %29 : vector<24x40xf32> to vector<24x40xbf16>
    %31 = arith.truncf %26 : vector<40x128xf32> to vector<40x128xbf16>
    %cst_11 = arith.constant dense<0.000000e+00> : vector<24x128xf32>
    %32 = tpu.matmul %30, %31, %cst_11 {dimension_numbers = #tpu.dot_dimension_numbers<[1], [0], [0], [1], [0, 0, 1, 1], [], []>} : vector<24x40xbf16>, vector<40x128xbf16>, vector<24x128xf32> -> vector<24x128xf32>
    %33 = arith.addf %7, %32 : vector<24x128xf32>
    %c1_i32 = arith.constant 1 : i32
    %34 = arith.index_cast %c1_i32 : i32 to index
    %35 = memref.load %arg1[%34] : memref<7xf32, #tpu.memory_space<smem>>
    %36 = arith.truncf %33 : vector<24x128xf32> to vector<24x128xbf16>
    %cst_12 = arith.constant dense<0.000000e+00> : vector<40x128xf32>
    %37 = tpu.matmul %0, %36, %cst_12 {dimension_numbers = #tpu.dot_dimension_numbers<[1], [0], [0], [1], [0, 0, 1, 1], [], []>} : vector<40x24xbf16>, vector<24x128xbf16>, vector<40x128xf32> -> vector<40x128xf32>
    %38 = math.tanh %37 : vector<40x128xf32>
    %39 = arith.truncf %38 : vector<40x128xf32> to vector<40x128xbf16>
    %cst_13 = arith.constant dense<0.000000e+00> : vector<40x128xf32>
    %40 = tpu.matmul %1, %39, %cst_13 {dimension_numbers = #tpu.dot_dimension_numbers<[1], [0], [0], [1], [0, 0, 1, 1], [], []>} : vector<40x40xbf16>, vector<40x128xbf16>, vector<40x128xf32> -> vector<40x128xf32>
    %cst_14 = arith.constant 2.000000e+01 : f32
    %41 = vector.broadcast %cst_14 : f32 to vector<40x128xf32>
    %42 = arith.cmpf ogt, %40, %41 : vector<40x128xf32>
    %43 = math.exp %40 : vector<40x128xf32>
    %44 = math.log1p %43 : vector<40x128xf32>
    %45 = arith.select %42, %40, %44 : vector<40x128xi1>, vector<40x128xf32>
    %46 = arith.truncf %45 : vector<40x128xf32> to vector<40x128xbf16>
    %cst_15 = arith.constant dense<0.000000e+00> : vector<40x128xf32>
    %47 = tpu.matmul %2, %46, %cst_15 {dimension_numbers = #tpu.dot_dimension_numbers<[1], [0], [0], [1], [0, 0, 1, 1], [], []>} : vector<40x40xbf16>, vector<40x128xbf16>, vector<40x128xf32> -> vector<40x128xf32>
    %cst_16 = arith.constant 2.000000e+01 : f32
    %48 = vector.broadcast %cst_16 : f32 to vector<40x128xf32>
    %49 = arith.cmpf ogt, %47, %48 : vector<40x128xf32>
    %50 = math.exp %47 : vector<40x128xf32>
    %51 = math.log1p %50 : vector<40x128xf32>
    %52 = arith.select %49, %47, %51 : vector<40x128xi1>, vector<40x128xf32>
    %53 = vector.broadcast %35 : f32 to vector<24x40xf32>
    %54 = arith.mulf %53, %6 : vector<24x40xf32>
    %55 = arith.addf %4, %54 : vector<24x40xf32>
    %56 = arith.truncf %55 : vector<24x40xf32> to vector<24x40xbf16>
    %57 = arith.truncf %52 : vector<40x128xf32> to vector<40x128xbf16>
    %cst_17 = arith.constant dense<0.000000e+00> : vector<24x128xf32>
    %58 = tpu.matmul %56, %57, %cst_17 {dimension_numbers = #tpu.dot_dimension_numbers<[1], [0], [0], [1], [0, 0, 1, 1], [], []>} : vector<24x40xbf16>, vector<40x128xbf16>, vector<24x128xf32> -> vector<24x128xf32>
    %59 = arith.addf %33, %58 : vector<24x128xf32>
    %c2_i32 = arith.constant 2 : i32
    %60 = arith.index_cast %c2_i32 : i32 to index
    %61 = memref.load %arg1[%60] : memref<7xf32, #tpu.memory_space<smem>>
    %62 = arith.truncf %59 : vector<24x128xf32> to vector<24x128xbf16>
    %cst_18 = arith.constant dense<0.000000e+00> : vector<40x128xf32>
    %63 = tpu.matmul %0, %62, %cst_18 {dimension_numbers = #tpu.dot_dimension_numbers<[1], [0], [0], [1], [0, 0, 1, 1], [], []>} : vector<40x24xbf16>, vector<24x128xbf16>, vector<40x128xf32> -> vector<40x128xf32>
    %64 = math.tanh %63 : vector<40x128xf32>
    %65 = arith.truncf %64 : vector<40x128xf32> to vector<40x128xbf16>
    %cst_19 = arith.constant dense<0.000000e+00> : vector<40x128xf32>
    %66 = tpu.matmul %1, %65, %cst_19 {dimension_numbers = #tpu.dot_dimension_numbers<[1], [0], [0], [1], [0, 0, 1, 1], [], []>} : vector<40x40xbf16>, vector<40x128xbf16>, vector<40x128xf32> -> vector<40x128xf32>
    %cst_20 = arith.constant 2.000000e+01 : f32
    %67 = vector.broadcast %cst_20 : f32 to vector<40x128xf32>
    %68 = arith.cmpf ogt, %66, %67 : vector<40x128xf32>
    %69 = math.exp %66 : vector<40x128xf32>
    %70 = math.log1p %69 : vector<40x128xf32>
    %71 = arith.select %68, %66, %70 : vector<40x128xi1>, vector<40x128xf32>
    %72 = arith.truncf %71 : vector<40x128xf32> to vector<40x128xbf16>
    %cst_21 = arith.constant dense<0.000000e+00> : vector<40x128xf32>
    %73 = tpu.matmul %2, %72, %cst_21 {dimension_numbers = #tpu.dot_dimension_numbers<[1], [0], [0], [1], [0, 0, 1, 1], [], []>} : vector<40x40xbf16>, vector<40x128xbf16>, vector<40x128xf32> -> vector<40x128xf32>
    %cst_22 = arith.constant 2.000000e+01 : f32
    %74 = vector.broadcast %cst_22 : f32 to vector<40x128xf32>
    %75 = arith.cmpf ogt, %73, %74 : vector<40x128xf32>
    %76 = math.exp %73 : vector<40x128xf32>
    %77 = math.log1p %76 : vector<40x128xf32>
    %78 = arith.select %75, %73, %77 : vector<40x128xi1>, vector<40x128xf32>
    %79 = vector.broadcast %61 : f32 to vector<24x40xf32>
    %80 = arith.mulf %79, %6 : vector<24x40xf32>
    %81 = arith.addf %4, %80 : vector<24x40xf32>
    %82 = arith.truncf %81 : vector<24x40xf32> to vector<24x40xbf16>
    %83 = arith.truncf %78 : vector<40x128xf32> to vector<40x128xbf16>
    %cst_23 = arith.constant dense<0.000000e+00> : vector<24x128xf32>
    %84 = tpu.matmul %82, %83, %cst_23 {dimension_numbers = #tpu.dot_dimension_numbers<[1], [0], [0], [1], [0, 0, 1, 1], [], []>} : vector<24x40xbf16>, vector<40x128xbf16>, vector<24x128xf32> -> vector<24x128xf32>
    %85 = arith.addf %59, %84 : vector<24x128xf32>
    %c3_i32 = arith.constant 3 : i32
    %86 = arith.index_cast %c3_i32 : i32 to index
    %87 = memref.load %arg1[%86] : memref<7xf32, #tpu.memory_space<smem>>
    %88 = arith.truncf %85 : vector<24x128xf32> to vector<24x128xbf16>
    %cst_24 = arith.constant dense<0.000000e+00> : vector<40x128xf32>
    %89 = tpu.matmul %0, %88, %cst_24 {dimension_numbers = #tpu.dot_dimension_numbers<[1], [0], [0], [1], [0, 0, 1, 1], [], []>} : vector<40x24xbf16>, vector<24x128xbf16>, vector<40x128xf32> -> vector<40x128xf32>
    %90 = math.tanh %89 : vector<40x128xf32>
    %91 = arith.truncf %90 : vector<40x128xf32> to vector<40x128xbf16>
    %cst_25 = arith.constant dense<0.000000e+00> : vector<40x128xf32>
    %92 = tpu.matmul %1, %91, %cst_25 {dimension_numbers = #tpu.dot_dimension_numbers<[1], [0], [0], [1], [0, 0, 1, 1], [], []>} : vector<40x40xbf16>, vector<40x128xbf16>, vector<40x128xf32> -> vector<40x128xf32>
    %cst_26 = arith.constant 2.000000e+01 : f32
    %93 = vector.broadcast %cst_26 : f32 to vector<40x128xf32>
    %94 = arith.cmpf ogt, %92, %93 : vector<40x128xf32>
    %95 = math.exp %92 : vector<40x128xf32>
    %96 = math.log1p %95 : vector<40x128xf32>
    %97 = arith.select %94, %92, %96 : vector<40x128xi1>, vector<40x128xf32>
    %98 = arith.truncf %97 : vector<40x128xf32> to vector<40x128xbf16>
    %cst_27 = arith.constant dense<0.000000e+00> : vector<40x128xf32>
    %99 = tpu.matmul %2, %98, %cst_27 {dimension_numbers = #tpu.dot_dimension_numbers<[1], [0], [0], [1], [0, 0, 1, 1], [], []>} : vector<40x40xbf16>, vector<40x128xbf16>, vector<40x128xf32> -> vector<40x128xf32>
    %cst_28 = arith.constant 2.000000e+01 : f32
    %100 = vector.broadcast %cst_28 : f32 to vector<40x128xf32>
    %101 = arith.cmpf ogt, %99, %100 : vector<40x128xf32>
    %102 = math.exp %99 : vector<40x128xf32>
    %103 = math.log1p %102 : vector<40x128xf32>
    %104 = arith.select %101, %99, %103 : vector<40x128xi1>, vector<40x128xf32>
    %105 = vector.broadcast %87 : f32 to vector<24x40xf32>
    %106 = arith.mulf %105, %6 : vector<24x40xf32>
    %107 = arith.addf %4, %106 : vector<24x40xf32>
    %108 = arith.truncf %107 : vector<24x40xf32> to vector<24x40xbf16>
    %109 = arith.truncf %104 : vector<40x128xf32> to vector<40x128xbf16>
    %cst_29 = arith.constant dense<0.000000e+00> : vector<24x128xf32>
    %110 = tpu.matmul %108, %109, %cst_29 {dimension_numbers = #tpu.dot_dimension_numbers<[1], [0], [0], [1], [0, 0, 1, 1], [], []>} : vector<24x40xbf16>, vector<40x128xbf16>, vector<24x128xf32> -> vector<24x128xf32>
    %111 = arith.addf %85, %110 : vector<24x128xf32>
    %c4_i32 = arith.constant 4 : i32
    %112 = arith.index_cast %c4_i32 : i32 to index
    %113 = memref.load %arg1[%112] : memref<7xf32, #tpu.memory_space<smem>>
    %114 = arith.truncf %111 : vector<24x128xf32> to vector<24x128xbf16>
    %cst_30 = arith.constant dense<0.000000e+00> : vector<40x128xf32>
    %115 = tpu.matmul %0, %114, %cst_30 {dimension_numbers = #tpu.dot_dimension_numbers<[1], [0], [0], [1], [0, 0, 1, 1], [], []>} : vector<40x24xbf16>, vector<24x128xbf16>, vector<40x128xf32> -> vector<40x128xf32>
    %116 = math.tanh %115 : vector<40x128xf32>
    %117 = arith.truncf %116 : vector<40x128xf32> to vector<40x128xbf16>
    %cst_31 = arith.constant dense<0.000000e+00> : vector<40x128xf32>
    %118 = tpu.matmul %1, %117, %cst_31 {dimension_numbers = #tpu.dot_dimension_numbers<[1], [0], [0], [1], [0, 0, 1, 1], [], []>} : vector<40x40xbf16>, vector<40x128xbf16>, vector<40x128xf32> -> vector<40x128xf32>
    %cst_32 = arith.constant 2.000000e+01 : f32
    %119 = vector.broadcast %cst_32 : f32 to vector<40x128xf32>
    %120 = arith.cmpf ogt, %118, %119 : vector<40x128xf32>
    %121 = math.exp %118 : vector<40x128xf32>
    %122 = math.log1p %121 : vector<40x128xf32>
    %123 = arith.select %120, %118, %122 : vector<40x128xi1>, vector<40x128xf32>
    %124 = arith.truncf %123 : vector<40x128xf32> to vector<40x128xbf16>
    %cst_33 = arith.constant dense<0.000000e+00> : vector<40x128xf32>
    %125 = tpu.matmul %2, %124, %cst_33 {dimension_numbers = #tpu.dot_dimension_numbers<[1], [0], [0], [1], [0, 0, 1, 1], [], []>} : vector<40x40xbf16>, vector<40x128xbf16>, vector<40x128xf32> -> vector<40x128xf32>
    %cst_34 = arith.constant 2.000000e+01 : f32
    %126 = vector.broadcast %cst_34 : f32 to vector<40x128xf32>
    %127 = arith.cmpf ogt, %125, %126 : vector<40x128xf32>
    %128 = math.exp %125 : vector<40x128xf32>
    %129 = math.log1p %128 : vector<40x128xf32>
    %130 = arith.select %127, %125, %129 : vector<40x128xi1>, vector<40x128xf32>
    %131 = vector.broadcast %113 : f32 to vector<24x40xf32>
    %132 = arith.mulf %131, %6 : vector<24x40xf32>
    %133 = arith.addf %4, %132 : vector<24x40xf32>
    %134 = arith.truncf %133 : vector<24x40xf32> to vector<24x40xbf16>
    %135 = arith.truncf %130 : vector<40x128xf32> to vector<40x128xbf16>
    %cst_35 = arith.constant dense<0.000000e+00> : vector<24x128xf32>
    %136 = tpu.matmul %134, %135, %cst_35 {dimension_numbers = #tpu.dot_dimension_numbers<[1], [0], [0], [1], [0, 0, 1, 1], [], []>} : vector<24x40xbf16>, vector<40x128xbf16>, vector<24x128xf32> -> vector<24x128xf32>
    %137 = arith.addf %111, %136 : vector<24x128xf32>
    %c5_i32 = arith.constant 5 : i32
    %138 = arith.index_cast %c5_i32 : i32 to index
    %139 = memref.load %arg1[%138] : memref<7xf32, #tpu.memory_space<smem>>
    %140 = arith.truncf %137 : vector<24x128xf32> to vector<24x128xbf16>
    %cst_36 = arith.constant dense<0.000000e+00> : vector<40x128xf32>
    %141 = tpu.matmul %0, %140, %cst_36 {dimension_numbers = #tpu.dot_dimension_numbers<[1], [0], [0], [1], [0, 0, 1, 1], [], []>} : vector<40x24xbf16>, vector<24x128xbf16>, vector<40x128xf32> -> vector<40x128xf32>
    %142 = math.tanh %141 : vector<40x128xf32>
    %143 = arith.truncf %142 : vector<40x128xf32> to vector<40x128xbf16>
    %cst_37 = arith.constant dense<0.000000e+00> : vector<40x128xf32>
    %144 = tpu.matmul %1, %143, %cst_37 {dimension_numbers = #tpu.dot_dimension_numbers<[1], [0], [0], [1], [0, 0, 1, 1], [], []>} : vector<40x40xbf16>, vector<40x128xbf16>, vector<40x128xf32> -> vector<40x128xf32>
    %cst_38 = arith.constant 2.000000e+01 : f32
    %145 = vector.broadcast %cst_38 : f32 to vector<40x128xf32>
    %146 = arith.cmpf ogt, %144, %145 : vector<40x128xf32>
    %147 = math.exp %144 : vector<40x128xf32>
    %148 = math.log1p %147 : vector<40x128xf32>
    %149 = arith.select %146, %144, %148 : vector<40x128xi1>, vector<40x128xf32>
    %150 = arith.truncf %149 : vector<40x128xf32> to vector<40x128xbf16>
    %cst_39 = arith.constant dense<0.000000e+00> : vector<40x128xf32>
    %151 = tpu.matmul %2, %150, %cst_39 {dimension_numbers = #tpu.dot_dimension_numbers<[1], [0], [0], [1], [0, 0, 1, 1], [], []>} : vector<40x40xbf16>, vector<40x128xbf16>, vector<40x128xf32> -> vector<40x128xf32>
    %cst_40 = arith.constant 2.000000e+01 : f32
    %152 = vector.broadcast %cst_40 : f32 to vector<40x128xf32>
    %153 = arith.cmpf ogt, %151, %152 : vector<40x128xf32>
    %154 = math.exp %151 : vector<40x128xf32>
    %155 = math.log1p %154 : vector<40x128xf32>
    %156 = arith.select %153, %151, %155 : vector<40x128xi1>, vector<40x128xf32>
    %157 = vector.broadcast %139 : f32 to vector<24x40xf32>
    %158 = arith.mulf %157, %6 : vector<24x40xf32>
    %159 = arith.addf %4, %158 : vector<24x40xf32>
    %160 = arith.truncf %159 : vector<24x40xf32> to vector<24x40xbf16>
    %161 = arith.truncf %156 : vector<40x128xf32> to vector<40x128xbf16>
    %cst_41 = arith.constant dense<0.000000e+00> : vector<24x128xf32>
    %162 = tpu.matmul %160, %161, %cst_41 {dimension_numbers = #tpu.dot_dimension_numbers<[1], [0], [0], [1], [0, 0, 1, 1], [], []>} : vector<24x40xbf16>, vector<40x128xbf16>, vector<24x128xf32> -> vector<24x128xf32>
    %163 = arith.addf %137, %162 : vector<24x128xf32>
    %c6_i32 = arith.constant 6 : i32
    %164 = arith.index_cast %c6_i32 : i32 to index
    %165 = memref.load %arg1[%164] : memref<7xf32, #tpu.memory_space<smem>>
    %166 = arith.truncf %163 : vector<24x128xf32> to vector<24x128xbf16>
    %cst_42 = arith.constant dense<0.000000e+00> : vector<40x128xf32>
    %167 = tpu.matmul %0, %166, %cst_42 {dimension_numbers = #tpu.dot_dimension_numbers<[1], [0], [0], [1], [0, 0, 1, 1], [], []>} : vector<40x24xbf16>, vector<24x128xbf16>, vector<40x128xf32> -> vector<40x128xf32>
    %168 = math.tanh %167 : vector<40x128xf32>
    %169 = arith.truncf %168 : vector<40x128xf32> to vector<40x128xbf16>
    %cst_43 = arith.constant dense<0.000000e+00> : vector<40x128xf32>
    %170 = tpu.matmul %1, %169, %cst_43 {dimension_numbers = #tpu.dot_dimension_numbers<[1], [0], [0], [1], [0, 0, 1, 1], [], []>} : vector<40x40xbf16>, vector<40x128xbf16>, vector<40x128xf32> -> vector<40x128xf32>
    %cst_44 = arith.constant 2.000000e+01 : f32
    %171 = vector.broadcast %cst_44 : f32 to vector<40x128xf32>
    %172 = arith.cmpf ogt, %170, %171 : vector<40x128xf32>
    %173 = math.exp %170 : vector<40x128xf32>
    %174 = math.log1p %173 : vector<40x128xf32>
    %175 = arith.select %172, %170, %174 : vector<40x128xi1>, vector<40x128xf32>
    %176 = arith.truncf %175 : vector<40x128xf32> to vector<40x128xbf16>
    %cst_45 = arith.constant dense<0.000000e+00> : vector<40x128xf32>
    %177 = tpu.matmul %2, %176, %cst_45 {dimension_numbers = #tpu.dot_dimension_numbers<[1], [0], [0], [1], [0, 0, 1, 1], [], []>} : vector<40x40xbf16>, vector<40x128xbf16>, vector<40x128xf32> -> vector<40x128xf32>
    %cst_46 = arith.constant 2.000000e+01 : f32
    %178 = vector.broadcast %cst_46 : f32 to vector<40x128xf32>
    %179 = arith.cmpf ogt, %177, %178 : vector<40x128xf32>
    %180 = math.exp %177 : vector<40x128xf32>
    %181 = math.log1p %180 : vector<40x128xf32>
    %182 = arith.select %179, %177, %181 : vector<40x128xi1>, vector<40x128xf32>
    %183 = vector.broadcast %165 : f32 to vector<24x40xf32>
    %184 = arith.mulf %183, %6 : vector<24x40xf32>
    %185 = arith.addf %4, %184 : vector<24x40xf32>
    %186 = arith.truncf %185 : vector<24x40xf32> to vector<24x40xbf16>
    %187 = arith.truncf %182 : vector<40x128xf32> to vector<40x128xbf16>
    %cst_47 = arith.constant dense<0.000000e+00> : vector<24x128xf32>
    %188 = tpu.matmul %186, %187, %cst_47 {dimension_numbers = #tpu.dot_dimension_numbers<[1], [0], [0], [1], [0, 0, 1, 1], [], []>} : vector<24x40xbf16>, vector<40x128xbf16>, vector<24x128xf32> -> vector<24x128xf32>
    %189 = arith.addf %163, %188 : vector<24x128xf32>
    %c7_i32 = arith.constant 7 : i32
    %190 = vector.extract_strided_slice %189 {offsets = [0, 0], sizes = [16, 128], strides = [1, 1]} : vector<24x128xf32> to vector<16x128xf32>
    %c0_48 = arith.constant 0 : index
    %c0_49 = arith.constant 0 : index
    %191 = vector.load %arg4[%c0_48, %c0_49] : memref<16x128xf32, #tpu.memory_space<vmem>>, vector<16x128xf32>
    tpu.vector_store %arg4[%c0_48, %c0_49], %190 {strides = array<i32>} : memref<16x128xf32, #tpu.memory_space<vmem>>, vector<16x128xf32>,
    return
  }
  func.func @transform_0(%arg0: i32) -> i32 {
    %c0_i32 = arith.constant 0 : i32
    %c0_i32_0 = arith.constant 0 : i32
    return %c0_i32 : i32
  }
  func.func @transform_1(%arg0: i32) -> (i32, i32) {
    %c0_i32 = arith.constant 0 : i32
    %c0_i32_0 = arith.constant 0 : i32
    return %c0_i32, %arg0 : i32, i32
  }
  func.func @transform_2(%arg0: i32) -> (i32, i32) {
    %c0_i32 = arith.constant 0 : i32
    %c0_i32_0 = arith.constant 0 : i32
    %c0_i32_1 = arith.constant 0 : i32
    return %c0_i32, %c0_i32_0 : i32, i32
  }
  func.func @transform_3(%arg0: i32) -> (i32, i32) {
    %c0_i32 = arith.constant 0 : i32
    %c0_i32_0 = arith.constant 0 : i32
    return %c0_i32, %arg0 : i32, i32
  }
}

</mosaic_0001>

<llo_original>
// kernel: tpu_custom_call.1
$region0: #{tpu_custom_call.1}
  #allocation0 [shape = 'u32[]', space=smem, size = 0x4, offset = 0x4, fixed_abs, tag = 'smem constant byte address 0x4 - core index']
  #allocation1 [shape = 'u32[144,128]{1,0:T(1,128)}', space=vmem, size = 0x12000, scoped, tag = 'internal scratch']
  %s0 = inlined_call_operand.vmem [shape: f32[7], index: 0, kind: input, shape index: {}]
  %s1 = inlined_call_operand.vmem [shape: f32[24,256], index: 1, kind: input, shape index: {}]
  %s2 = inlined_call_operand.vmem [shape: bf16[168,40], index: 2, kind: input, shape index: {}]
  %s3 = inlined_call_operand.hbm [shape: f32[16,256], index: 3, kind: output, shape index: {}]
  %s4 = sld [smem:[#allocation0]]
  $region87: #{tpu_custom_call.1} parent=0
    _
  %s6 = ssub.s32 1, %s4
  %s7 = scalar_select 0, %s6, %s4
  $region1: #{tpu_custom_call.1} parent=0
    #allocation2 [shape = 'u8[512]{0}', space=smem, size = 0x200, scoped, tag = 'input window, operand 0, single buffered']
    #allocation3 [shape = 's32[2]{0}', space=sflag, size = 0x8, scoped, tag = 'scoped memory for tpu_custom_call.1']
    #allocation4 [shape = 's32[2]{0}', space=sflag, size = 0x8, scoped, tag = 'scoped memory for tpu_custom_call.1']
    #allocation5 [shape = 'u8[24576]{0}', space=vmem, size = 0x6000, scoped, tag = 'input window, operand 1']
    #allocation6 [shape = 'u8[16384]{0}', space=vmem, size = 0x4000, scoped, tag = 'output window, operand 0']
    %8 = vsyncpa [#allocation4], 0
    %9 = vsyncpa [#allocation3], 0
    %s10 = scalar_lea.sflag [#allocation3], 1
    %11 = vsyncpa %s10, 0
    loop: start=0, step=1, limit=4
    $region2: #{tpu_custom_call.1} parent=1 // loop_pre_header
      _
    $region3: #{tpu_custom_call.1} parent=1 // loop_header
      %s13 = sphi 0, %s17
      %p14 = scmp.ge.s32.totalorder %s13, 4
      %s21 = sphi 0, %s21
      %s23 = sphi 0, %s21
      %s24 = sphi 0, %s23
      %s38 = sphi 0, %s24
      %s44 = sphi 0, %s46
      %s47 = sphi 0, %s44
      %s48 = sphi 0, %s47
      %s64 = sphi 0, %s48
      %s68 = sphi 0, %s68
      %s70 = sphi 0, %s68
      %s71 = sphi 0, %s70
      %s85 = sphi 0, %s71
      %s91 = sphi 0, %s93
      %s94 = sphi 0, %s91
      %s95 = sphi 0, %s94
      %s111 = sphi 0, %s95
    $region4: #{tpu_custom_call.1} parent=1 // loop_header_branch
      %16 = sbr.rel (%p14) target = $region8
    $region5: #{tpu_custom_call.1} parent=1 // loop_body
      %s18 = ssub.s32 %s13, 1
      %s19 = ssub.s32 %s13, 2
      %s20 = sadd.s32 %s13, 1
      %s22 = sadd.s32 %s21, 1
      %p25 = scmp.eq.s32.totalorder %s13, 1
      %p26 = scmp.ne.s32.totalorder %s21, %s23
      %p27 = scmp.eq.s32.totalorder %s13, 0
      %p28 = por %p26, %p27
      %p29 = scmp.ne.s32.totalorder %s21, %s23
      %p30 = scmp.eq.s32.totalorder %s18, 1
      %p31 = por %p29, %p30
      %p32 = scmp.ne.s32.totalorder %s23, %s24
      %p33 = scmp.eq.s32.totalorder %s18, 0
      %p34 = por %p32, %p33
      %p35 = scmp.ne.s32.totalorder %s23, %s24
      %p36 = scmp.eq.s32.totalorder %s19, 1
      %p37 = por %p35, %p36
      %p39 = scmp.ne.s32.totalorder %s24, %s38
      %p40 = scmp.eq.s32.totalorder %s19, 0
      %p41 = por %p39, %p40
      %s42 = ssub.s32 %s13, %s20
      %p43 = scmp.eq.s32.totalorder %s42, 0
      %s45 = sadd.s32 %s44, 1
      %s46 = scalar_select %p43, %s44, %s45
      %p49 = pneg %p43
      %p50 = scmp.eq.s32.totalorder %s13, 1
      %p51 = por %p49, %p50
      %p52 = scmp.ne.s32.totalorder %s44, %s47
      %p53 = scmp.eq.s32.totalorder %s13, 0
      %p54 = por %p52, %p53
      %p55 = scmp.ne.s32.totalorder %s44, %s47
      %p56 = scmp.eq.s32.totalorder %s18, 1
      %p57 = por %p55, %p56
      %p58 = scmp.ne.s32.totalorder %s47, %s48
      %p59 = scmp.eq.s32.totalorder %s18, 0
      %p60 = por %p58, %p59
      %p61 = scmp.ne.s32.totalorder %s47, %s48
      %p62 = scmp.eq.s32.totalorder %s19, 1
      %p63 = por %p61, %p62
      %p65 = scmp.ne.s32.totalorder %s48, %s64
      %p66 = scmp.eq.s32.totalorder %s19, 0
      %p67 = por %p65, %p66
      %s69 = sadd.s32 %s68, 1
      %p72 = scmp.eq.s32.totalorder %s13, 1
      %p73 = scmp.ne.s32.totalorder %s68, %s70
      %p74 = scmp.eq.s32.totalorder %s13, 0
      %p75 = por %p73, %p74
      %p76 = scmp.ne.s32.totalorder %s68, %s70
      %p77 = scmp.eq.s32.totalorder %s18, 1
      %p78 = por %p76, %p77
      %p79 = scmp.ne.s32.totalorder %s70, %s71
      %p80 = scmp.eq.s32.totalorder %s18, 0
      %p81 = por %p79, %p80
      %p82 = scmp.ne.s32.totalorder %s70, %s71
      %p83 = scmp.eq.s32.totalorder %s19, 1
      %p84 = por %p82, %p83
      %p86 = scmp.ne.s32.totalorder %s71, %s85
      %p87 = scmp.eq.s32.totalorder %s19, 0
      %p88 = por %p86, %p87
      %s89 = ssub.s32 %s13, %s20
      %p90 = scmp.eq.s32.totalorder %s89, 0
      %s92 = sadd.s32 %s91, 1
      %s93 = scalar_select %p90, %s91, %s92
      %p96 = pneg %p90
      %p97 = scmp.eq.s32.totalorder %s13, 1
      %p98 = por %p96, %p97
      %p99 = scmp.ne.s32.totalorder %s91, %s94
      %p100 = scmp.eq.s32.totalorder %s13, 0
      %p101 = por %p99, %p100
      %p102 = scmp.ne.s32.totalorder %s91, %s94
      %p103 = scmp.eq.s32.totalorder %s18, 1
      %p104 = por %p102, %p103
      %p105 = scmp.ne.s32.totalorder %s94, %s95
      %p106 = scmp.eq.s32.totalorder %s18, 0
      %p107 = por %p105, %p106
      %p108 = scmp.ne.s32.totalorder %s94, %s95
      %p109 = scmp.eq.s32.totalorder %s19, 1
      %p110 = por %p108, %p109
      %p112 = scmp.ne.s32.totalorder %s95, %s111
      %p113 = scmp.eq.s32.totalorder %s19, 0
      %p114 = por %p112, %p113
      %p115 = scmp.le.s32.totalorder 1, %s13
      %p116 = scmp.lt.s32.totalorder %s13, 3
      %p117 = pnand %p115, %p116
      %p118 = pneg %p117
      // Predicated region
      $region9: #{tpu_custom_call.1} parent=5 // pred_check
        _
      $region10: #{tpu_custom_call.1} parent=5 // pred_check_branch
        %120 = sbr.rel (%p117) target = $region12
      $region11: #{tpu_custom_call.1} parent=5 // pred_region
        %s121 = ssub.s32 %s13, 1
        // Predicated region
        $region13: #{tpu_custom_call.1} parent=11 // pred_check
          %p122 = pneg %p34
        $region14: #{tpu_custom_call.1} parent=11 // pred_check_branch
          %124 = sbr.rel (%p122) target = $region16
        $region15: #{tpu_custom_call.1} parent=11 // pred_region
          %s126 = ssub.s32 16, 16
          %127 = vsyncadd [#allocation4], %s126
          %s129 = sshll.u32 %s0, 4
          %s130 = int_to_ptr.vmem [resolvable:$true] %s129
          %132 = dma.vmem_to_smem %s130, 16, [#allocation2], [#allocation4]
        $region16: #{tpu_custom_call.1} parent=11 // pred_fallthru
          _
        // Predicated region
        $region17: #{tpu_custom_call.1} parent=11 // pred_check
          %p133 = pneg %p81
        $region18: #{tpu_custom_call.1} parent=11 // pred_check_branch
          %135 = sbr.rel (%p133) target = $region20
        $region19: #{tpu_custom_call.1} parent=11 // pred_region
          _
        $region20: #{tpu_custom_call.1} parent=11 // pred_fallthru
          _
      $region12: #{tpu_custom_call.1} parent=5 // pred_fallthru
        _
      %p136 = scmp.lt.s32.totalorder %s13, 2
      // Predicated region
      $region21: #{tpu_custom_call.1} parent=5 // pred_check
        %p137 = pneg %p136
      $region22: #{tpu_custom_call.1} parent=5 // pred_check_branch
        %139 = sbr.rel (%p137) target = $region24
      $region23: #{tpu_custom_call.1} parent=5 // pred_region
        // Predicated region
        $region25: #{tpu_custom_call.1} parent=23 // pred_check
          %p140 = pneg %p54
        $region26: #{tpu_custom_call.1} parent=23 // pred_check_branch
          %142 = sbr.rel (%p140) target = $region28
        $region27: #{tpu_custom_call.1} parent=23 // pred_region
          %s143 = sand.u32 %s44, 1
          %s144 = sand.u32 %s44, 1
          %s145 = smul.addr %s144, 24
          %s146 = scalar_lea.vmem [#allocation5], %s145
          %s147 = smul.addr %s13, 8
          %s148 = scalar_lea.vmem %s1, %s147
          // Predicated region
          $region29: #{tpu_custom_call.1} parent=27 // pred_check
            _
          $region30: #{tpu_custom_call.1} parent=27 // pred_check_branch
            %150 = sbr.rel (0) target = $region32
          $region31: #{tpu_custom_call.1} parent=27 // pred_region
            // Predicated region
            $region33: #{tpu_custom_call.1} parent=31 // pred_check
              _
            $region34: #{tpu_custom_call.1} parent=31 // pred_check_branch
              %152 = sbr.rel (0) target = $region36
            $region35: #{tpu_custom_call.1} parent=31 // pred_region
              // Predicated region
              $region48: #{tpu_custom_call.1} parent=35 // pred_check
                _
              $region49: #{tpu_custom_call.1} parent=35 // pred_check_branch
                %171 = sbr.rel (0) target = $region51
              $region50: #{tpu_custom_call.1} parent=35 // pred_region
                loop: start=0, step=1, limit=1
                $region52: #{tpu_custom_call.1} parent=50 // loop_pre_header
                  _
                $region53: #{tpu_custom_call.1} parent=50 // loop_header
                  %s173 = sphi 0, %s177
                  %p174 = scmp.ge.s32.totalorder %s173, 1
                  %s178 = sphi %s148, %s148
                  %s179 = sphi %s146, %s146
                $region54: #{tpu_custom_call.1} parent=50 // loop_header_branch
                  %176 = sbr.rel (%p174) target = $region58
                $region55: #{tpu_custom_call.1} parent=50 // loop_body
                  %v180 = vld [vmem:[%s178] sm:$0xff]
                  %181 = vst [vmem:[%s179] sm:$0xff] %v180
                  %v182 = vld [vmem:[%s178 + $0x10] sm:$0xff]
                  %183 = vst [vmem:[%s179 + $0x8] sm:$0xff] %v182
                  %v184 = vld [vmem:[%s178 + $0x20] sm:$0xff]
                  %185 = vst [vmem:[%s179 + $0x10] sm:$0xff] %v184
                $region56: #{tpu_custom_call.1} parent=50 // loop_footer
                  %s177 = sadd.s32 1, %s173
                $region57: #{tpu_custom_call.1} parent=50 // loop_footer_branch
                  %172 = sbr.rel target = $region53
                $region58: #{tpu_custom_call.1} parent=50 // loop_exit
                  _
              $region51: #{tpu_custom_call.1} parent=35 // pred_fallthru
                _
              // Predicated region
              $region59: #{tpu_custom_call.1} parent=35 // pred_check
                _
              $region60: #{tpu_custom_call.1} parent=35 // pred_check_branch
                %187 = sbr.rel target = $region62
              $region61: #{tpu_custom_call.1} parent=35 // pred_region
                _
              $region62: #{tpu_custom_call.1} parent=35 // pred_fallthru
                _
            $region36: #{tpu_custom_call.1} parent=31 // pred_fallthru
              _
            // Predicated region
            $region37: #{tpu_custom_call.1} parent=31 // pred_check
              _
            $region38: #{tpu_custom_call.1} parent=31 // pred_check_branch
              %154 = sbr.rel target = $region40
            $region39: #{tpu_custom_call.1} parent=31 // pred_region
              loop: start=0, step=1, limit=1
              $region41: #{tpu_custom_call.1} parent=39 // loop_pre_header
                _
              $region42: #{tpu_custom_call.1} parent=39 // loop_header
                %s157 = sphi 0, %s161
                %p158 = scmp.ge.s32.totalorder %s157, 1
                %s162 = sphi %s148, %s148
                %s163 = sphi %s146, %s146
              $region43: #{tpu_custom_call.1} parent=39 // loop_header_branch
                %160 = sbr.rel (%p158) target = $region47
              $region44: #{tpu_custom_call.1} parent=39 // loop_body
                %v164 = vld [vmem:[%s162] sm:$0xff]
                %165 = vst [vmem:[%s163] sm:$0xff] %v164
                %v166 = vld [vmem:[%s162 + $0x10] sm:$0xff]
                %167 = vst [vmem:[%s163 + $0x8] sm:$0xff] %v166
                %v168 = vld [vmem:[%s162 + $0x20] sm:$0xff]
                %169 = vst [vmem:[%s163 + $0x10] sm:$0xff] %v168
              $region45: #{tpu_custom_call.1} parent=39 // loop_footer
                %s161 = sadd.s32 1, %s157
              $region46: #{tpu_custom_call.1} parent=39 // loop_footer_branch
                %156 = sbr.rel target = $region42
              $region47: #{tpu_custom_call.1} parent=39 // loop_exit
                _
            $region40: #{tpu_custom_call.1} parent=31 // pred_fallthru
              _
          $region32: #{tpu_custom_call.1} parent=27 // pred_fallthru
            _
          %188 = vnop
        $region28: #{tpu_custom_call.1} parent=23 // pred_fallthru
          _
      $region24: #{tpu_custom_call.1} parent=5 // pred_fallthru
        _
      %p189 = scmp.le.s32.totalorder 1, %s13
      %p190 = scmp.lt.s32.totalorder %s13, 3
      %p191 = pnand %p189, %p190
      %p192 = pneg %p191
      // Predicated region
      $region63: #{tpu_custom_call.1} parent=5 // pred_check
        _
      $region64: #{tpu_custom_call.1} parent=5 // pred_check_branch
        %194 = sbr.rel (%p191) target = $region66
      $region65: #{tpu_custom_call.1} parent=5 // pred_region
        %s195 = ssub.s32 %s13, 1
        // Predicated region
        $region67: #{tpu_custom_call.1} parent=65 // pred_check
          %p196 = pneg %p34
        $region68: #{tpu_custom_call.1} parent=65 // pred_check_branch
          %198 = sbr.rel (%p196) target = $region70
        $region69: #{tpu_custom_call.1} parent=65 // pred_region
          %199 = dma.done [#allocation4], 16
        $region70: #{tpu_custom_call.1} parent=65 // pred_fallthru
          _
        %s200 = sand.u32 %s47, 1
        %s201 = sand.u32 %s47, 1
        %s202 = smul.addr %s201, 24
        %s203 = scalar_lea.vmem [#allocation5], %s202
        // Predicated region
        $region71: #{tpu_custom_call.1} parent=65 // pred_check
          %p204 = pneg %p60
        $region72: #{tpu_custom_call.1} parent=65 // pred_check_branch
          %206 = sbr.rel (%p204) target = $region74
        $region73: #{tpu_custom_call.1} parent=65 // pred_region
          _
        $region74: #{tpu_custom_call.1} parent=65 // pred_fallthru
          _
        %207 = sfence
        %p208 = pneg %p34
        %p209 = pneg %p31
        %s210 = sand.u32 %s47, 1
        %s211 = sand.u32 %s47, 1
        %s212 = smul.addr %s211, 24
        %s213 = scalar_lea.vmem [#allocation5], %s212
        %p214 = pneg %p60
        %p215 = pneg %p57
        %p216 = pneg %p81
        %p217 = pneg %p78
        %p218 = pneg %p107
        %p219 = pneg %p104
        %s220 = sand.u32 %s94, 1
        %s221 = scalar_lea.sflag [#allocation3], %s220
        %s222 = sand.u32 %s94, 1
        %s223 = smul.addr %s222, 16
        %s224 = scalar_lea.vmem [#allocation6], %s223
        %v226 = vld [vmem:[%s2] sm:$0xf]
        %v227 = vld [vmem:[%s2 + $0x4] sm:$0xf]
        %v228 = vld [vmem:[%s2 + $0x8] sm:$0xf]
        %v229 = vld [vmem:[%s2 + $0xc] sm:$0xf]
        %v230 = vld [vmem:[%s2 + $0x10] sm:$0xf]
        %v231 = vld [vmem:[%s2 + $0x14] sm:$0xf]
        %v232 = vld [vmem:[%s2 + $0x18] sm:$0xf]
        %v233 = vld [vmem:[%s2 + $0x1c] sm:$0xf]
        %v234 = vld [vmem:[%s2 + $0x20] sm:$0xf]
        %v235 = vld [vmem:[%s2 + $0x24] sm:$0xf]
        %v236 = vld [vmem:[%s2 + $0x28] sm:$0xf]
        %v237 = vld [vmem:[%s2 + $0x2c] sm:$0xf]
        %v238 = vld [vmem:[%s2 + $0x30] sm:$0xf]
        %v239 = vld [vmem:[%s2 + $0x34] sm:$0xf]
        %v240 = vld [vmem:[%s2 + $0x38] sm:$0xf]
        %v241 = vld [vmem:[%s2 + $0x3c] sm:$0xf]
        %v242 = vld [vmem:[%s2 + $0x40] sm:$0xf]
        %v243 = vld [vmem:[%s2 + $0x44] sm:$0xf]
        %v244 = vunpack.c.l.bf16 %v241
        %v245 = vunpack.c.l.bf16 %v242
        %v246 = vunpack.c.l.bf16 %v243
        %v247 = vld [vmem:[%s2 + $0x48] sm:$0xf]
        %v248 = vld [vmem:[%s2 + $0x4c] sm:$0xf]
        %v249 = vld [vmem:[%s2 + $0x50] sm:$0xf]
        %v250 = vunpack.c.l.bf16 %v247
        %v251 = vunpack.c.l.bf16 %v248
        %v252 = vunpack.c.l.bf16 %v249
        %v253 = vld [vmem:[%s203] sm:$0xff]
        %v254 = vld [vmem:[%s203 + $0x8] sm:$0xff]
        %v255 = vld [vmem:[%s203 + $0x10] sm:$0xff]
        %s256 = sld [smem:[#allocation2]]
        %v257 = vpack.c.bf16 %v254, %v253
        %v258 = vpack.c.bf16 %v255, %v255
        %v264 = vunpack.c.l.b16 %v226
        %v265 = vunpack.c.l.b16 %v227
        %v266 = vunpack.c.l.b16 %v228
        %v267 = vunpack.c.l.b16 %v229
        %v268 = vunpack.c.l.b16 %v230
        %v269 = vpack.c.b16 %v265, %v264
        %v270 = vpack.c.b16 %v267, %v266
        %v271 = vpack.c.b16 %v268, %v268
        %vm272 = vcmask 195584
        %v274 = vsel %vm272, %v269, 0
        %v277 = vsel %vm272, %v270, 0
        %v280 = vsel %vm272, %v271, 0
        %vm282 = vcmask 1043456
        %v284 = vsel %vm282, %v258, 0
        %286 = vmatprep.subr.bf16.mxu0 0
        %287 = vmatpush1.bf16.msra.mxu0 %v257
        %288 = vmatprep.subr.bf16.mxu0 0
        %289 = vmatpush1.bf16.msra.mxu0 %v284
        %290 = vmatprep.subr.bf16.mxu0 0
        %291 = vmatpush1.bf16.msra.mxu0 0
        %292 = vmatprep.subr.bf16.mxu0 0
        %293 = vmatpush1.bf16.msra.mxu0 0
        %294 = vmatprep.subr.bf16.mxu0 0
        %295 = vmatpush1.bf16.msra.mxu0 0
        %296 = vmatprep.subr.bf16.mxu0 0
        %297 = vmatpush1.bf16.msra.mxu0 0
        %298 = vmatprep.subr.bf16.mxu0 0
        %299 = vmatpush1.bf16.msra.mxu0 0
        %300 = vmatprep.subr.bf16.mxu0 0
        %301 = vmatpush1.bf16.msra.mxu0 0
        %302 = vmatprep.subr.bf16.mxu0 0
        %303 = vmatpush1.bf16.msra.mxu0 0
        %304 = vmatprep.subr.bf16.mxu0 0
        %305 = vmatpush1.bf16.msra.mxu0 0
        %306 = vmatprep.subr.bf16.mxu0 0
        %307 = vmatpush1.bf16.msra.mxu0 0
        %308 = vmatprep.subr.bf16.mxu0 0
        %309 = vmatpush1.bf16.msra.mxu0 0
        %310 = vmatprep.subr.bf16.mxu0 0
        %311 = vmatpush1.bf16.msra.mxu0 0
        %312 = vmatprep.subr.bf16.mxu0 0
        %313 = vmatpush1.bf16.msra.mxu0 0
        %314 = vmatprep.subr.bf16.mxu0 0
        %315 = vmatpush1.bf16.msra.mxu0 0
        %316 = vmatprep.subr.bf16.mxu0 0
        %317 = vmatpush1.bf16.msra.mxu0 0
        %318 = vmatprep.mubr.bf16.mxu0 0
        %319 = vmatmul.mubr.bf16.gmra.mrb[0].mxu0 %v274
        %v320 = vpop.f32.mrb[0].mxu0
        %v321 = vadd.f32 0.0, %v320
        %v322 = vpop.f32.mrb[0].mxu0
        %v323 = vpop.f32.mrb[0].mxu0
        %v324 = vadd.f32 0.0, %v323
        %v325 = vpop.f32.mrb[0].mxu0
        %326 = vmatprep.mubr.bf16.mxu0 0
        %327 = vmatmul.mubr.bf16.gmra.mrb[0].mxu0 %v277
        %v328 = vpop.f32.mrb[0].mxu0
        %v329 = vadd.f32 0.0, %v328
        %v330 = vpop.f32.mrb[0].mxu0
        %v331 = vpop.f32.mrb[0].mxu0
        %v332 = vadd.f32 0.0, %v331
        %v333 = vpop.f32.mrb[0].mxu0
        %334 = vmatprep.mubr.bf16.mxu0 0
        %335 = vmatmul.mubr.bf16.gmra.mrb[0].mxu0 %v280
        %v336 = vpop.f32.mrb[0].mxu0
        %v337 = vadd.f32 0.0, %v336
        %v338 = vpop.f32.mrb[0].mxu0
        %v339 = vpop.f32.mrb[0].mxu0
        %v340 = vpop.f32.mrb[0].mxu0
        %341 = vdwg.mxu0
        %v342 = vtanh.pop %v321
        %v343 = vtanh.pop %v324
        %v344 = vtanh.pop %v329
        %v345 = vtanh.pop %v332
        %v346 = vtanh.pop %v337
        %v347 = vpack.c.bf16 %v343, %v342
        %v348 = vpack.c.bf16 %v345, %v344
        %v349 = vpack.c.bf16 %v346, %v346
        %v355 = vunpack.c.l.b16 %v231
        %v356 = vunpack.c.l.b16 %v232
        %v357 = vunpack.c.l.b16 %v233
        %v358 = vunpack.c.l.b16 %v234
        %v359 = vunpack.c.l.b16 %v235
        %v360 = vpack.c.b16 %v356, %v355
        %v361 = vpack.c.b16 %v358, %v357
        %v362 = vpack.c.b16 %v359, %v359
        %vm363 = vcmask 326656
        %v365 = vsel %vm363, %v360, 0
        %v368 = vsel %vm363, %v361, 0
        %v371 = vsel %vm363, %v362, 0
        %v374 = vsel %vm282, %v349, 0
        %376 = vmatprep.subr.bf16.mxu0 0
        %377 = vmatpush1.bf16.msra.mxu0 %v347
        %378 = vmatprep.subr.bf16.mxu0 0
        %379 = vmatpush1.bf16.msra.mxu0 %v348
        %380 = vmatprep.subr.bf16.mxu0 0
        %381 = vmatpush1.bf16.msra.mxu0 %v374
        %382 = vmatprep.subr.bf16.mxu0 0
        %383 = vmatpush1.bf16.msra.mxu0 0
        %384 = vmatprep.subr.bf16.mxu0 0
        %385 = vmatpush1.bf16.msra.mxu0 0
        %386 = vmatprep.subr.bf16.mxu0 0
        %387 = vmatpush1.bf16.msra.mxu0 0
        %388 = vmatprep.subr.bf16.mxu0 0
        %389 = vmatpush1.bf16.msra.mxu0 0
        %390 = vmatprep.subr.bf16.mxu0 0
        %391 = vmatpush1.bf16.msra.mxu0 0
        %392 = vmatprep.subr.bf16.mxu0 0
        %393 = vmatpush1.bf16.msra.mxu0 0
        %394 = vmatprep.subr.bf16.mxu0 0
        %395 = vmatpush1.bf16.msra.mxu0 0
        %396 = vmatprep.subr.bf16.mxu0 0
        %397 = vmatpush1.bf16.msra.mxu0 0
        %398 = vmatprep.subr.bf16.mxu0 0
        %399 = vmatpush1.bf16.msra.mxu0 0
        %400 = vmatprep.subr.bf16.mxu0 0
        %401 = vmatpush1.bf16.msra.mxu0 0
        %402 = vmatprep.subr.bf16.mxu0 0
        %403 = vmatpush1.bf16.msra.mxu0 0
        %404 = vmatprep.subr.bf16.mxu0 0
        %405 = vmatpush1.bf16.msra.mxu0 0
        %406 = vmatprep.subr.bf16.mxu0 0
        %407 = vmatpush1.bf16.msra.mxu0 0
        %408 = vmatprep.mubr.bf16.mxu0 0
        %409 = vmatmul.mubr.bf16.gmra.mrb[0].mxu0 %v365
        %v410 = vpop.f32.mrb[0].mxu0
        %v411 = vadd.f32 0.0, %v410
        %v412 = vpop.f32.mrb[0].mxu0
        %v413 = vpop.f32.mrb[0].mxu0
        %v414 = vadd.f32 0.0, %v413
        %v415 = vpop.f32.mrb[0].mxu0
        %416 = vmatprep.mubr.bf16.mxu0 0
        %417 = vmatmul.mubr.bf16.gmra.mrb[0].mxu0 %v368
        %v418 = vpop.f32.mrb[0].mxu0
        %v419 = vadd.f32 0.0, %v418
        %v420 = vpop.f32.mrb[0].mxu0
        %v421 = vpop.f32.mrb[0].mxu0
        %v422 = vadd.f32 0.0, %v421
        %v423 = vpop.f32.mrb[0].mxu0
        %424 = vmatprep.mubr.bf16.mxu0 0
        %425 = vmatmul.mubr.bf16.gmra.mrb[0].mxu0 %v371
        %v426 = vpop.f32.mrb[0].mxu0
        %v427 = vadd.f32 0.0, %v426
        %v428 = vpop.f32.mrb[0].mxu0
        %v429 = vpop.f32.mrb[0].mxu0
        %v430 = vpop.f32.mrb[0].mxu0
        %431 = vdwg.mxu0
        %vm432 = vcmp.gt.f32.partialorder %v411, 20.0
        %vm433 = vcmp.gt.f32.partialorder %v414, 20.0
        %vm434 = vcmp.gt.f32.partialorder %v419, 20.0
        %vm435 = vcmp.gt.f32.partialorder %v422, 20.0
        %vm436 = vcmp.gt.f32.partialorder %v427, 20.0
        %v437 = vmul.f32 %v411, 1.442695
        %v438 = vpow.pop %v437
        %v439 = vmul.f32 %v414, 1.442695
        %v440 = vpow.pop %v439
        %v441 = vmul.f32 %v419, 1.442695
        %v442 = vpow.pop %v441
        %v443 = vmul.f32 %v422, 1.442695
        %v444 = vpow.pop %v443
        %v445 = vmul.f32 %v427, 1.442695
        %v446 = vpow.pop %v445
        %v447 = vadd.f32 %v438, 1.0
        %v448 = vlog2.pop %v447
        %v449 = vmul.f32 %v448, 0.6931472
        %v450 = vmul.f32 -0.5, %v438
        %v451 = vadd.f32 %v450, 1.0
        %v452 = vmul.f32 %v451, %v438
        %v453 = vand.u32 2147483647, %v438
        %vm454 = vcmp.lt.f32.partialorder %v453, 0.0004427343
        %v455 = vsel %vm454, %v452, %v449
        %v456 = vadd.f32 %v440, 1.0
        %v457 = vlog2.pop %v456
        %v458 = vmul.f32 %v457, 0.6931472
        %v459 = vmul.f32 -0.5, %v440
        %v460 = vadd.f32 %v459, 1.0
        %v461 = vmul.f32 %v460, %v440
        %v462 = vand.u32 2147483647, %v440
        %vm463 = vcmp.lt.f32.partialorder %v462, 0.0004427343
        %v464 = vsel %vm463, %v461, %v458
        %v465 = vadd.f32 %v442, 1.0
        %v466 = vlog2.pop %v465
        %v467 = vmul.f32 %v466, 0.6931472
        %v468 = vmul.f32 -0.5, %v442
        %v469 = vadd.f32 %v468, 1.0
        %v470 = vmul.f32 %v469, %v442
        %v471 = vand.u32 2147483647, %v442
        %vm472 = vcmp.lt.f32.partialorder %v471, 0.0004427343
        %v473 = vsel %vm472, %v470, %v467
        %v474 = vadd.f32 %v444, 1.0
        %v475 = vlog2.pop %v474
        %v476 = vmul.f32 %v475, 0.6931472
        %v477 = vmul.f32 -0.5, %v444
        %v478 = vadd.f32 %v477, 1.0
        %v479 = vmul.f32 %v478, %v444
        %v480 = vand.u32 2147483647, %v444
        %vm481 = vcmp.lt.f32.partialorder %v480, 0.0004427343
        %v482 = vsel %vm481, %v479, %v476
        %v483 = vadd.f32 %v446, 1.0
        %v484 = vlog2.pop %v483
        %v485 = vmul.f32 %v484, 0.6931472
        %v486 = vmul.f32 -0.5, %v446
        %v487 = vadd.f32 %v486, 1.0
        %v488 = vmul.f32 %v487, %v446
        %v489 = vand.u32 2147483647, %v446
        %vm490 = vcmp.lt.f32.partialorder %v489, 0.0004427343
        %v491 = vsel %vm490, %v488, %v485
        %v492 = vsel %vm432, %v411, %v455
        %v493 = vsel %vm433, %v414, %v464
        %v494 = vsel %vm434, %v419, %v473
        %v495 = vsel %vm435, %v422, %v482
        %v496 = vsel %vm436, %v427, %v491
        %v497 = vpack.c.bf16 %v493, %v492
        %v498 = vpack.c.bf16 %v495, %v494
        %v499 = vpack.c.bf16 %v496, %v496
        %v505 = vunpack.c.l.b16 %v236
        %v506 = vunpack.c.l.b16 %v237
        %v507 = vunpack.c.l.b16 %v238
        %v508 = vunpack.c.l.b16 %v239
        %v509 = vunpack.c.l.b16 %v240
        %v510 = vpack.c.b16 %v506, %v505
        %v511 = vpack.c.b16 %v508, %v507
        %v512 = vpack.c.b16 %v509, %v509
        %v514 = vsel %vm363, %v510, 0
        %v517 = vsel %vm363, %v511, 0
        %v520 = vsel %vm363, %v512, 0
        %v523 = vsel %vm282, %v499, 0
        %525 = vmatprep.subr.bf16.mxu0 0
        %526 = vmatpush1.bf16.msra.mxu0 %v497
        %527 = vmatprep.subr.bf16.mxu0 0
        %528 = vmatpush1.bf16.msra.mxu0 %v498
        %529 = vmatprep.subr.bf16.mxu0 0
        %530 = vmatpush1.bf16.msra.mxu0 %v523
        %531 = vmatprep.subr.bf16.mxu0 0
        %532 = vmatpush1.bf16.msra.mxu0 0
        %533 = vmatprep.subr.bf16.mxu0 0
        %534 = vmatpush1.bf16.msra.mxu0 0
        %535 = vmatprep.subr.bf16.mxu0 0
        %536 = vmatpush1.bf16.msra.mxu0 0
        %537 = vmatprep.subr.bf16.mxu0 0
        %538 = vmatpush1.bf16.msra.mxu0 0
        %539 = vmatprep.subr.bf16.mxu0 0
        %540 = vmatpush1.bf16.msra.mxu0 0
        %541 = vmatprep.subr.bf16.mxu0 0
        %542 = vmatpush1.bf16.msra.mxu0 0
        %543 = vmatprep.subr.bf16.mxu0 0
        %544 = vmatpush1.bf16.msra.mxu0 0
        %545 = vmatprep.subr.bf16.mxu0 0
        %546 = vmatpush1.bf16.msra.mxu0 0
        %547 = vmatprep.subr.bf16.mxu0 0
        %548 = vmatpush1.bf16.msra.mxu0 0
        %549 = vmatprep.subr.bf16.mxu0 0
        %550 = vmatpush1.bf16.msra.mxu0 0
        %551 = vmatprep.subr.bf16.mxu0 0
        %552 = vmatpush1.bf16.msra.mxu0 0
        %553 = vmatprep.subr.bf16.mxu0 0
        %554 = vmatpush1.bf16.msra.mxu0 0
        %555 = vmatprep.subr.bf16.mxu0 0
        %556 = vmatpush1.bf16.msra.mxu0 0
        %557 = vmatprep.mubr.bf16.mxu0 0
        %558 = vmatmul.mubr.bf16.gmra.mrb[0].mxu0 %v514
        %v559 = vpop.f32.mrb[0].mxu0
        %v560 = vadd.f32 0.0, %v559
        %v561 = vpop.f32.mrb[0].mxu0
        %v562 = vpop.f32.mrb[0].mxu0
        %v563 = vadd.f32 0.0, %v562
        %v564 = vpop.f32.mrb[0].mxu0
        %565 = vmatprep.mubr.bf16.mxu0 0
        %566 = vmatmul.mubr.bf16.gmra.mrb[0].mxu0 %v517
        %v567 = vpop.f32.mrb[0].mxu0
        %v568 = vadd.f32 0.0, %v567
        %v569 = vpop.f32.mrb[0].mxu0
        %v570 = vpop.f32.mrb[0].mxu0
        %v571 = vadd.f32 0.0, %v570
        %v572 = vpop.f32.mrb[0].mxu0
        %573 = vmatprep.mubr.bf16.mxu0 0
        %574 = vmatmul.mubr.bf16.gmra.mrb[0].mxu0 %v520
        %v575 = vpop.f32.mrb[0].mxu0
        %v576 = vadd.f32 0.0, %v575
        %v577 = vpop.f32.mrb[0].mxu0
        %v578 = vpop.f32.mrb[0].mxu0
        %v579 = vpop.f32.mrb[0].mxu0
        %580 = vdwg.mxu0
        %vm581 = vcmp.gt.f32.partialorder %v560, 20.0
        %vm582 = vcmp.gt.f32.partialorder %v563, 20.0
        %vm583 = vcmp.gt.f32.partialorder %v568, 20.0
        %vm584 = vcmp.gt.f32.partialorder %v571, 20.0
        %vm585 = vcmp.gt.f32.partialorder %v576, 20.0
        %v586 = vmul.f32 %v560, 1.442695
        %v587 = vpow.pop %v586
        %v588 = vmul.f32 %v563, 1.442695
        %v589 = vpow.pop %v588
        %v590 = vmul.f32 %v568, 1.442695
        %v591 = vpow.pop %v590
        %v592 = vmul.f32 %v571, 1.442695
        %v593 = vpow.pop %v592
        %v594 = vmul.f32 %v576, 1.442695
        %v595 = vpow.pop %v594
        %v596 = vadd.f32 %v587, 1.0
        %v597 = vlog2.pop %v596
        %v598 = vmul.f32 %v597, 0.6931472
        %v599 = vmul.f32 -0.5, %v587
        %v600 = vadd.f32 %v599, 1.0
        %v601 = vmul.f32 %v600, %v587
        %v602 = vand.u32 2147483647, %v587
        %vm603 = vcmp.lt.f32.partialorder %v602, 0.0004427343
        %v604 = vsel %vm603, %v601, %v598
        %v605 = vadd.f32 %v589, 1.0
        %v606 = vlog2.pop %v605
        %v607 = vmul.f32 %v606, 0.6931472
        %v608 = vmul.f32 -0.5, %v589
        %v609 = vadd.f32 %v608, 1.0
        %v610 = vmul.f32 %v609, %v589
        %v611 = vand.u32 2147483647, %v589
        %vm612 = vcmp.lt.f32.partialorder %v611, 0.0004427343
        %v613 = vsel %vm612, %v610, %v607
        %v614 = vadd.f32 %v591, 1.0
        %v615 = vlog2.pop %v614
        %v616 = vmul.f32 %v615, 0.6931472
        %v617 = vmul.f32 -0.5, %v591
        %v618 = vadd.f32 %v617, 1.0
        %v619 = vmul.f32 %v618, %v591
        %v620 = vand.u32 2147483647, %v591
        %vm621 = vcmp.lt.f32.partialorder %v620, 0.0004427343
        %v622 = vsel %vm621, %v619, %v616
        %v623 = vadd.f32 %v593, 1.0
        %v624 = vlog2.pop %v623
        %v625 = vmul.f32 %v624, 0.6931472
        %v626 = vmul.f32 -0.5, %v593
        %v627 = vadd.f32 %v626, 1.0
        %v628 = vmul.f32 %v627, %v593
        %v629 = vand.u32 2147483647, %v593
        %vm630 = vcmp.lt.f32.partialorder %v629, 0.0004427343
        %v631 = vsel %vm630, %v628, %v625
        %v632 = vadd.f32 %v595, 1.0
        %v633 = vlog2.pop %v632
        %v634 = vmul.f32 %v633, 0.6931472
        %v635 = vmul.f32 -0.5, %v595
        %v636 = vadd.f32 %v635, 1.0
        %v637 = vmul.f32 %v636, %v595
        %v638 = vand.u32 2147483647, %v595
        %vm639 = vcmp.lt.f32.partialorder %v638, 0.0004427343
        %v640 = vsel %vm639, %v637, %v634
        %v641 = vsel %vm581, %v560, %v604
        %v642 = vsel %vm582, %v563, %v613
        %v643 = vsel %vm583, %v568, %v622
        %v644 = vsel %vm584, %v571, %v631
        %v645 = vsel %vm585, %v576, %v640
        %v646 = vstv %s256
        %v647 = vmul.f32 %v646, %v250
        %v648 = vmul.f32 %v646, %v251
        %v649 = vmul.f32 %v646, %v252
        %v650 = vadd.f32 %v244, %v647
        %v651 = vadd.f32 %v245, %v648
        %v652 = vadd.f32 %v246, %v649
        %v653 = vpack.c.bf16 %v651, %v650
        %v654 = vpack.c.bf16 %v652, %v652
        %v655 = vpack.c.bf16 %v642, %v641
        %v656 = vpack.c.bf16 %v644, %v643
        %v657 = vpack.c.bf16 %v645, %v645
        %v659 = vsel %vm363, %v653, 0
        %v662 = vsel %vm363, %v654, 0
        %v665 = vsel %vm282, %v657, 0
        %667 = vmatprep.subr.bf16.mxu0 0
        %668 = vmatpush1.bf16.msra.mxu0 %v655
        %669 = vmatprep.subr.bf16.mxu0 0
        %670 = vmatpush1.bf16.msra.mxu0 %v656
        %671 = vmatprep.subr.bf16.mxu0 0
        %672 = vmatpush1.bf16.msra.mxu0 %v665
        %673 = vmatprep.subr.bf16.mxu0 0
        %674 = vmatpush1.bf16.msra.mxu0 0
        %675 = vmatprep.subr.bf16.mxu0 0
        %676 = vmatpush1.bf16.msra.mxu0 0
        %677 = vmatprep.subr.bf16.mxu0 0
        %678 = vmatpush1.bf16.msra.mxu0 0
        %679 = vmatprep.subr.bf16.mxu0 0
        %680 = vmatpush1.bf16.msra.mxu0 0
        %681 = vmatprep.subr.bf16.mxu0 0
        %682 = vmatpush1.bf16.msra.mxu0 0
        %683 = vmatprep.subr.bf16.mxu0 0
        %684 = vmatpush1.bf16.msra.mxu0 0
        %685 = vmatprep.subr.bf16.mxu0 0
        %686 = vmatpush1.bf16.msra.mxu0 0
        %687 = vmatprep.subr.bf16.mxu0 0
        %688 = vmatpush1.bf16.msra.mxu0 0
        %689 = vmatprep.subr.bf16.mxu0 0
        %690 = vmatpush1.bf16.msra.mxu0 0
        %691 = vmatprep.subr.bf16.mxu0 0
        %692 = vmatpush1.bf16.msra.mxu0 0
        %693 = vmatprep.subr.bf16.mxu0 0
        %694 = vmatpush1.bf16.msra.mxu0 0
        %695 = vmatprep.subr.bf16.mxu0 0
        %696 = vmatpush1.bf16.msra.mxu0 0
        %697 = vmatprep.subr.bf16.mxu0 0
        %698 = vmatpush1.bf16.msra.mxu0 0
        %699 = vmatprep.mubr.bf16.mxu0 0
        %700 = vmatmul.mubr.bf16.gmra.mrb[0].mxu0 %v659
        %v701 = vpop.f32.mrb[0].mxu0
        %v702 = vadd.f32 0.0, %v701
        %v703 = vpop.f32.mrb[0].mxu0
        %v704 = vpop.f32.mrb[0].mxu0
        %v705 = vadd.f32 0.0, %v704
        %v706 = vpop.f32.mrb[0].mxu0
        %707 = vmatprep.mubr.bf16.mxu0 0
        %708 = vmatmul.mubr.bf16.gmra.mrb[0].mxu0 %v662
        %v709 = vpop.f32.mrb[0].mxu0
        %v710 = vadd.f32 0.0, %v709
        %v711 = vpop.f32.mrb[0].mxu0
        %v712 = vpop.f32.mrb[0].mxu0
        %v713 = vpop.f32.mrb[0].mxu0
        %714 = vdwg.mxu0
        %v715 = vadd.f32 %v253, %v702
        %v716 = vadd.f32 %v254, %v705
        %v717 = vadd.f32 %v255, %v710
        %s718 = sld [smem:[#allocation2 + $0x1]]
        %v719 = vpack.c.bf16 %v716, %v715
        %v720 = vpack.c.bf16 %v717, %v717
        %v722 = vsel %vm282, %v720, 0
        %724 = vmatprep.subr.bf16.mxu0 0
        %725 = vmatpush1.bf16.msra.mxu0 %v719
        %726 = vmatprep.subr.bf16.mxu0 0
        %727 = vmatpush1.bf16.msra.mxu0 %v722
        %728 = vmatprep.subr.bf16.mxu0 0
        %729 = vmatpush1.bf16.msra.mxu0 0
        %730 = vmatprep.subr.bf16.mxu0 0
        %731 = vmatpush1.bf16.msra.mxu0 0
        %732 = vmatprep.subr.bf16.mxu0 0
        %733 = vmatpush1.bf16.msra.mxu0 0
        %734 = vmatprep.subr.bf16.mxu0 0
        %735 = vmatpush1.bf16.msra.mxu0 0
        %736 = vmatprep.subr.bf16.mxu0 0
        %737 = vmatpush1.bf16.msra.mxu0 0
        %738 = vmatprep.subr.bf16.mxu0 0
        %739 = vmatpush1.bf16.msra.mxu0 0
        %740 = vmatprep.subr.bf16.mxu0 0
        %741 = vmatpush1.bf16.msra.mxu0 0
        %742 = vmatprep.subr.bf16.mxu0 0
        %743 = vmatpush1.bf16.msra.mxu0 0
        %744 = vmatprep.subr.bf16.mxu0 0
        %745 = vmatpush1.bf16.msra.mxu0 0
        %746 = vmatprep.subr.bf16.mxu0 0
        %747 = vmatpush1.bf16.msra.mxu0 0
        %748 = vmatprep.subr.bf16.mxu0 0
        %749 = vmatpush1.bf16.msra.mxu0 0
        %750 = vmatprep.subr.bf16.mxu0 0
        %751 = vmatpush1.bf16.msra.mxu0 0
        %752 = vmatprep.subr.bf16.mxu0 0
        %753 = vmatpush1.bf16.msra.mxu0 0
        %754 = vmatprep.subr.bf16.mxu0 0
        %755 = vmatpush1.bf16.msra.mxu0 0
        %756 = vmatprep.mubr.bf16.mxu0 0
        %757 = vmatmul.mubr.bf16.gmra.mrb[0].mxu0 %v274
        %v758 = vpop.f32.mrb[0].mxu0
        %v759 = vadd.f32 0.0, %v758
        %v760 = vpop.f32.mrb[0].mxu0
        %v761 = vpop.f32.mrb[0].mxu0
        %v762 = vadd.f32 0.0, %v761
        %v763 = vpop.f32.mrb[0].mxu0
        %764 = vmatprep.mubr.bf16.mxu0 0
        %765 = vmatmul.mubr.bf16.gmra.mrb[0].mxu0 %v277
        %v766 = vpop.f32.mrb[0].mxu0
        %v767 = vadd.f32 0.0, %v766
        %v768 = vpop.f32.mrb[0].mxu0
        %v769 = vpop.f32.mrb[0].mxu0
        %v770 = vadd.f32 0.0, %v769
        %v771 = vpop.f32.mrb[0].mxu0
        %772 = vmatprep.mubr.bf16.mxu0 0
        %773 = vmatmul.mubr.bf16.gmra.mrb[0].mxu0 %v280
        %v774 = vpop.f32.mrb[0].mxu0
        %v775 = vadd.f32 0.0, %v774
        %v776 = vpop.f32.mrb[0].mxu0
        %v777 = vpop.f32.mrb[0].mxu0
        %v778 = vpop.f32.mrb[0].mxu0
        %779 = vdwg.mxu0
        %v780 = vtanh.pop %v759
        %v781 = vtanh.pop %v762
        %v782 = vtanh.pop %v767
        %v783 = vtanh.pop %v770
        %v784 = vtanh.pop %v775
        %v785 = vpack.c.bf16 %v781, %v780
        %v786 = vpack.c.bf16 %v783, %v782
        %v787 = vpack.c.bf16 %v784, %v784
        %v789 = vsel %vm282, %v787, 0
        %791 = vmatprep.subr.bf16.mxu0 0
        %792 = vmatpush1.bf16.msra.mxu0 %v785
        %793 = vmatprep.subr.bf16.mxu0 0
        %794 = vmatpush1.bf16.msra.mxu0 %v786
        %795 = vmatprep.subr.bf16.mxu0 0
        %796 = vmatpush1.bf16.msra.mxu0 %v789
        %797 = vmatprep.subr.bf16.mxu0 0
        %798 = vmatpush1.bf16.msra.mxu0 0
        %799 = vmatprep.subr.bf16.mxu0 0
        %800 = vmatpush1.bf16.msra.mxu0 0
        %801 = vmatprep.subr.bf16.mxu0 0
        %802 = vmatpush1.bf16.msra.mxu0 0
        %803 = vmatprep.subr.bf16.mxu0 0
        %804 = vmatpush1.bf16.msra.mxu0 0
        %805 = vmatprep.subr.bf16.mxu0 0
        %806 = vmatpush1.bf16.msra.mxu0 0
        %807 = vmatprep.subr.bf16.mxu0 0
        %808 = vmatpush1.bf16.msra.mxu0 0
        %809 = vmatprep.subr.bf16.mxu0 0
        %810 = vmatpush1.bf16.msra.mxu0 0
        %811 = vmatprep.subr.bf16.mxu0 0
        %812 = vmatpush1.bf16.msra.mxu0 0
        %813 = vmatprep.subr.bf16.mxu0 0
        %814 = vmatpush1.bf16.msra.mxu0 0
        %815 = vmatprep.subr.bf16.mxu0 0
        %816 = vmatpush1.bf16.msra.mxu0 0
        %817 = vmatprep.subr.bf16.mxu0 0
        %818 = vmatpush1.bf16.msra.mxu0 0
        %819 = vmatprep.subr.bf16.mxu0 0
        %820 = vmatpush1.bf16.msra.mxu0 0
        %821 = vmatprep.subr.bf16.mxu0 0
        %822 = vmatpush1.bf16.msra.mxu0 0
        %823 = vmatprep.mubr.bf16.mxu0 0
        %824 = vmatmul.mubr.bf16.gmra.mrb[0].mxu0 %v365
        %v825 = vpop.f32.mrb[0].mxu0
        %v826 = vadd.f32 0.0, %v825
        %v827 = vpop.f32.mrb[0].mxu0
        %v828 = vpop.f32.mrb[0].mxu0
        %v829 = vadd.f32 0.0, %v828
        %v830 = vpop.f32.mrb[0].mxu0
        %831 = vmatprep.mubr.bf16.mxu0 0
        %832 = vmatmul.mubr.bf16.gmra.mrb[0].mxu0 %v368
        %v833 = vpop.f32.mrb[0].mxu0
        %v834 = vadd.f32 0.0, %v833
        %v835 = vpop.f32.mrb[0].mxu0
        %v836 = vpop.f32.mrb[0].mxu0
        %v837 = vadd.f32 0.0, %v836
        %v838 = vpop.f32.mrb[0].mxu0
        %839 = vmatprep.mubr.bf16.mxu0 0
        %840 = vmatmul.mubr.bf16.gmra.mrb[0].mxu0 %v371
        %v841 = vpop.f32.mrb[0].mxu0
        %v842 = vadd.f32 0.0, %v841
        %v843 = vpop.f32.mrb[0].mxu0
        %v844 = vpop.f32.mrb[0].mxu0
        %v845 = vpop.f32.mrb[0].mxu0
        %846 = vdwg.mxu0
        %vm847 = vcmp.gt.f32.partialorder %v826, 20.0
        %vm848 = vcmp.gt.f32.partialorder %v829, 20.0
        %vm849 = vcmp.gt.f32.partialorder %v834, 20.0
        %vm850 = vcmp.gt.f32.partialorder %v837, 20.0
        %vm851 = vcmp.gt.f32.partialorder %v842, 20.0
        %v852 = vmul.f32 %v826, 1.442695
        %v853 = vpow.pop %v852
        %v854 = vmul.f32 %v829, 1.442695
        %v855 = vpow.pop %v854
        %v856 = vmul.f32 %v834, 1.442695
        %v857 = vpow.pop %v856
        %v858 = vmul.f32 %v837, 1.442695
        %v859 = vpow.pop %v858
        %v860 = vmul.f32 %v842, 1.442695
        %v861 = vpow.pop %v860
        %v862 = vadd.f32 %v853, 1.0
        %v863 = vlog2.pop %v862
        %v864 = vmul.f32 %v863, 0.6931472
        %v865 = vmul.f32 -0.5, %v853
        %v866 = vadd.f32 %v865, 1.0
        %v867 = vmul.f32 %v866, %v853
        %v868 = vand.u32 2147483647, %v853
        %vm869 = vcmp.lt.f32.partialorder %v868, 0.0004427343
        %v870 = vsel %vm869, %v867, %v864
        %v871 = vadd.f32 %v855, 1.0
        %v872 = vlog2.pop %v871
        %v873 = vmul.f32 %v872, 0.6931472
        %v874 = vmul.f32 -0.5, %v855
        %v875 = vadd.f32 %v874, 1.0
        %v876 = vmul.f32 %v875, %v855
        %v877 = vand.u32 2147483647, %v855
        %vm878 = vcmp.lt.f32.partialorder %v877, 0.0004427343
        %v879 = vsel %vm878, %v876, %v873
        %v880 = vadd.f32 %v857, 1.0
        %v881 = vlog2.pop %v880
        %v882 = vmul.f32 %v881, 0.6931472
        %v883 = vmul.f32 -0.5, %v857
        %v884 = vadd.f32 %v883, 1.0
        %v885 = vmul.f32 %v884, %v857
        %v886 = vand.u32 2147483647, %v857
        %vm887 = vcmp.lt.f32.partialorder %v886, 0.0004427343
        %v888 = vsel %vm887, %v885, %v882
        %v889 = vadd.f32 %v859, 1.0
        %v890 = vlog2.pop %v889
        %v891 = vmul.f32 %v890, 0.6931472
        %v892 = vmul.f32 -0.5, %v859
        %v893 = vadd.f32 %v892, 1.0
        %v894 = vmul.f32 %v893, %v859
        %v895 = vand.u32 2147483647, %v859
        %vm896 = vcmp.lt.f32.partialorder %v895, 0.0004427343
        %v897 = vsel %vm896, %v894, %v891
        %v898 = vadd.f32 %v861, 1.0
        %v899 = vlog2.pop %v898
        %v900 = vmul.f32 %v899, 0.6931472
        %v901 = vmul.f32 -0.5, %v861
        %v902 = vadd.f32 %v901, 1.0
        %v903 = vmul.f32 %v902, %v861
        %v904 = vand.u32 2147483647, %v861
        %vm905 = vcmp.lt.f32.partialorder %v904, 0.0004427343
        %v906 = vsel %vm905, %v903, %v900
        %v907 = vsel %vm847, %v826, %v870
        %v908 = vsel %vm848, %v829, %v879
        %v909 = vsel %vm849, %v834, %v888
        %v910 = vsel %vm850, %v837, %v897
        %v911 = vsel %vm851, %v842, %v906
        %v912 = vpack.c.bf16 %v908, %v907
        %v913 = vpack.c.bf16 %v910, %v909
        %v914 = vpack.c.bf16 %v911, %v911
        %v916 = vsel %vm282, %v914, 0
        %918 = vmatprep.subr.bf16.mxu0 0
        %919 = vmatpush1.bf16.msra.mxu0 %v912
        %920 = vmatprep.subr.bf16.mxu0 0
        %921 = vmatpush1.bf16.msra.mxu0 %v913
        %922 = vmatprep.subr.bf16.mxu0 0
        %923 = vmatpush1.bf16.msra.mxu0 %v916
        %924 = vmatprep.subr.bf16.mxu0 0
        %925 = vmatpush1.bf16.msra.mxu0 0
        %926 = vmatprep.subr.bf16.mxu0 0
        %927 = vmatpush1.bf16.msra.mxu0 0
        %928 = vmatprep.subr.bf16.mxu0 0
        %929 = vmatpush1.bf16.msra.mxu0 0
        %930 = vmatprep.subr.bf16.mxu0 0
        %931 = vmatpush1.bf16.msra.mxu0 0
        %932 = vmatprep.subr.bf16.mxu0 0
        %933 = vmatpush1.bf16.msra.mxu0 0
        %934 = vmatprep.subr.bf16.mxu0 0
        %935 = vmatpush1.bf16.msra.mxu0 0
        %936 = vmatprep.subr.bf16.mxu0 0
        %937 = vmatpush1.bf16.msra.mxu0 0
        %938 = vmatprep.subr.bf16.mxu0 0
        %939 = vmatpush1.bf16.msra.mxu0 0
        %940 = vmatprep.subr.bf16.mxu0 0
        %941 = vmatpush1.bf16.msra.mxu0 0
        %942 = vmatprep.subr.bf16.mxu0 0
        %943 = vmatpush1.bf16.msra.mxu0 0
        %944 = vmatprep.subr.bf16.mxu0 0
        %945 = vmatpush1.bf16.msra.mxu0 0
        %946 = vmatprep.subr.bf16.mxu0 0
        %947 = vmatpush1.bf16.msra.mxu0 0
        %948 = vmatprep.subr.bf16.mxu0 0
        %949 = vmatpush1.bf16.msra.mxu0 0
        %950 = vmatprep.mubr.bf16.mxu0 0
        %951 = vmatmul.mubr.bf16.gmra.mrb[0].mxu0 %v514
        %v952 = vpop.f32.mrb[0].mxu0
        %v953 = vadd.f32 0.0, %v952
        %v954 = vpop.f32.mrb[0].mxu0
        %v955 = vpop.f32.mrb[0].mxu0
        %v956 = vadd.f32 0.0, %v955
        %v957 = vpop.f32.mrb[0].mxu0
        %958 = vmatprep.mubr.bf16.mxu0 0
        %959 = vmatmul.mubr.bf16.gmra.mrb[0].mxu0 %v517
        %v960 = vpop.f32.mrb[0].mxu0
        %v961 = vadd.f32 0.0, %v960
        %v962 = vpop.f32.mrb[0].mxu0
        %v963 = vpop.f32.mrb[0].mxu0
        %v964 = vadd.f32 0.0, %v963
        %v965 = vpop.f32.mrb[0].mxu0
        %966 = vmatprep.mubr.bf16.mxu0 0
        %967 = vmatmul.mubr.bf16.gmra.mrb[0].mxu0 %v520
        %v968 = vpop.f32.mrb[0].mxu0
        %v969 = vadd.f32 0.0, %v968
        %v970 = vpop.f32.mrb[0].mxu0
        %v971 = vpop.f32.mrb[0].mxu0
        %v972 = vpop.f32.mrb[0].mxu0
        %973 = vdwg.mxu0
        %vm974 = vcmp.gt.f32.partialorder %v953, 20.0
        %vm975 = vcmp.gt.f32.partialorder %v956, 20.0
        %vm976 = vcmp.gt.f32.partialorder %v961, 20.0
        %vm977 = vcmp.gt.f32.partialorder %v964, 20.0
        %vm978 = vcmp.gt.f32.partialorder %v969, 20.0
        %v979 = vmul.f32 %v953, 1.442695
        %v980 = vpow.pop %v979
        %v981 = vmul.f32 %v956, 1.442695
        %v982 = vpow.pop %v981
        %v983 = vmul.f32 %v961, 1.442695
        %v984 = vpow.pop %v983
        %v985 = vmul.f32 %v964, 1.442695
        %v986 = vpow.pop %v985
        %v987 = vmul.f32 %v969, 1.442695
        %v988 = vpow.pop %v987
        %v989 = vadd.f32 %v980, 1.0
        %v990 = vlog2.pop %v989
        %v991 = vmul.f32 %v990, 0.6931472
        %v992 = vmul.f32 -0.5, %v980
        %v993 = vadd.f32 %v992, 1.0
        %v994 = vmul.f32 %v993, %v980
        %v995 = vand.u32 2147483647, %v980
        %vm996 = vcmp.lt.f32.partialorder %v995, 0.0004427343
        %v997 = vsel %vm996, %v994, %v991
        %v998 = vadd.f32 %v982, 1.0
        %v999 = vlog2.pop %v998
        %v1000 = vmul.f32 %v999, 0.6931472
        %v1001 = vmul.f32 -0.5, %v982
        %v1002 = vadd.f32 %v1001, 1.0
        %v1003 = vmul.f32 %v1002, %v982
        %v1004 = vand.u32 2147483647, %v982
        %vm1005 = vcmp.lt.f32.partialorder %v1004, 0.0004427343
        %v1006 = vsel %vm1005, %v1003, %v1000
        %v1007 = vadd.f32 %v984, 1.0
        %v1008 = vlog2.pop %v1007
        %v1009 = vmul.f32 %v1008, 0.6931472
        %v1010 = vmul.f32 -0.5, %v984
        %v1011 = vadd.f32 %v1010, 1.0
        %v1012 = vmul.f32 %v1011, %v984
        %v1013 = vand.u32 2147483647, %v984
        %vm1014 = vcmp.lt.f32.partialorder %v1013, 0.0004427343
        %v1015 = vsel %vm1014, %v1012, %v1009
        %v1016 = vadd.f32 %v986, 1.0
        %v1017 = vlog2.pop %v1016
        %v1018 = vmul.f32 %v1017, 0.6931472
        %v1019 = vmul.f32 -0.5, %v986
        %v1020 = vadd.f32 %v1019, 1.0
        %v1021 = vmul.f32 %v1020, %v986
        %v1022 = vand.u32 2147483647, %v986
        %vm1023 = vcmp.lt.f32.partialorder %v1022, 0.0004427343
        %v1024 = vsel %vm1023, %v1021, %v1018
        %v1025 = vadd.f32 %v988, 1.0
        %v1026 = vlog2.pop %v1025
        %v1027 = vmul.f32 %v1026, 0.6931472
        %v1028 = vmul.f32 -0.5, %v988
        %v1029 = vadd.f32 %v1028, 1.0
        %v1030 = vmul.f32 %v1029, %v988
        %v1031 = vand.u32 2147483647, %v988
        %vm1032 = vcmp.lt.f32.partialorder %v1031, 0.0004427343
        %v1033 = vsel %vm1032, %v1030, %v1027
        %v1034 = vsel %vm974, %v953, %v997
        %v1035 = vsel %vm975, %v956, %v1006
        %v1036 = vsel %vm976, %v961, %v1015
        %v1037 = vsel %vm977, %v964, %v1024
        %v1038 = vsel %vm978, %v969, %v1033
        %v1039 = vstv %s718
        %v1040 = vmul.f32 %v1039, %v250
        %v1041 = vmul.f32 %v1039, %v251
        %v1042 = vmul.f32 %v1039, %v252
        %v1043 = vadd.f32 %v244, %v1040
        %v1044 = vadd.f32 %v245, %v1041
        %v1045 = vadd.f32 %v246, %v1042
        %v1046 = vpack.c.bf16 %v1044, %v1043
        %v1047 = vpack.c.bf16 %v1045, %v1045
        %v1048 = vpack.c.bf16 %v1035, %v1034
        %v1049 = vpack.c.bf16 %v1037, %v1036
        %v1050 = vpack.c.bf16 %v1038, %v1038
        %v1052 = vsel %vm363, %v1046, 0
        %v1055 = vsel %vm363, %v1047, 0
        %v1058 = vsel %vm282, %v1050, 0
        %1060 = vmatprep.subr.bf16.mxu0 0
        %1061 = vmatpush1.bf16.msra.mxu0 %v1048
        %1062 = vmatprep.subr.bf16.mxu0 0
        %1063 = vmatpush1.bf16.msra.mxu0 %v1049
        %1064 = vmatprep.subr.bf16.mxu0 0
        %1065 = vmatpush1.bf16.msra.mxu0 %v1058
        %1066 = vmatprep.subr.bf16.mxu0 0
        %1067 = vmatpush1.bf16.msra.mxu0 0
        %1068 = vmatprep.subr.bf16.mxu0 0
        %1069 = vmatpush1.bf16.msra.mxu0 0
        %1070 = vmatprep.subr.bf16.mxu0 0
        %1071 = vmatpush1.bf16.msra.mxu0 0
        %1072 = vmatprep.subr.bf16.mxu0 0
        %1073 = vmatpush1.bf16.msra.mxu0 0
        %1074 = vmatprep.subr.bf16.mxu0 0
        %1075 = vmatpush1.bf16.msra.mxu0 0
        %1076 = vmatprep.subr.bf16.mxu0 0
        %1077 = vmatpush1.bf16.msra.mxu0 0
        %1078 = vmatprep.subr.bf16.mxu0 0
        %1079 = vmatpush1.bf16.msra.mxu0 0
        %1080 = vmatprep.subr.bf16.mxu0 0
        %1081 = vmatpush1.bf16.msra.mxu0 0
        %1082 = vmatprep.subr.bf16.mxu0 0
        %1083 = vmatpush1.bf16.msra.mxu0 0
        %1084 = vmatprep.subr.bf16.mxu0 0
        %1085 = vmatpush1.bf16.msra.mxu0 0
        %1086 = vmatprep.subr.bf16.mxu0 0
        %1087 = vmatpush1.bf16.msra.mxu0 0
        %1088 = vmatprep.subr.bf16.mxu0 0
        %1089 = vmatpush1.bf16.msra.mxu0 0
        %1090 = vmatprep.subr.bf16.mxu0 0
        %1091 = vmatpush1.bf16.msra.mxu0 0
        %1092 = vmatprep.mubr.bf16.mxu0 0
        %1093 = vmatmul.mubr.bf16.gmra.mrb[0].mxu0 %v1052
        %v1094 = vpop.f32.mrb[0].mxu0
        %v1095 = vadd.f32 0.0, %v1094
        %v1096 = vpop.f32.mrb[0].mxu0
        %v1097 = vpop.f32.mrb[0].mxu0
        %v1098 = vadd.f32 0.0, %v1097
        %v1099 = vpop.f32.mrb[0].mxu0
        %1100 = vmatprep.mubr.bf16.mxu0 0
        %1101 = vmatmul.mubr.bf16.gmra.mrb[0].mxu0 %v1055
        %v1102 = vpop.f32.mrb[0].mxu0
        %v1103 = vadd.f32 0.0, %v1102
        %v1104 = vpop.f32.mrb[0].mxu0
        %v1105 = vpop.f32.mrb[0].mxu0
        %v1106 = vpop.f32.mrb[0].mxu0
        %1107 = vdwg.mxu0
        %v1108 = vadd.f32 %v715, %v1095
        %v1109 = vadd.f32 %v716, %v1098
        %v1110 = vadd.f32 %v717, %v1103
        %s1111 = sld [smem:[#allocation2 + $0x2]]
        %v1112 = vpack.c.bf16 %v1109, %v1108
        %v1113 = vpack.c.bf16 %v1110, %v1110
        %v1115 = vsel %vm282, %v1113, 0
        %1117 = vmatprep.subr.bf16.mxu0 0
        %1118 = vmatpush1.bf16.msra.mxu0 %v1112
        %1119 = vmatprep.subr.bf16.mxu0 0
        %1120 = vmatpush1.bf16.msra.mxu0 %v1115
        %1121 = vmatprep.subr.bf16.mxu0 0
        %1122 = vmatpush1.bf16.msra.mxu0 0
        %1123 = vmatprep.subr.bf16.mxu0 0
        %1124 = vmatpush1.bf16.msra.mxu0 0
        %1125 = vmatprep.subr.bf16.mxu0 0
        %1126 = vmatpush1.bf16.msra.mxu0 0
        %1127 = vmatprep.subr.bf16.mxu0 0
        %1128 = vmatpush1.bf16.msra.mxu0 0
        %1129 = vmatprep.subr.bf16.mxu0 0
        %1130 = vmatpush1.bf16.msra.mxu0 0
        %1131 = vmatprep.subr.bf16.mxu0 0
        %1132 = vmatpush1.bf16.msra.mxu0 0
        %1133 = vmatprep.subr.bf16.mxu0 0
        %1134 = vmatpush1.bf16.msra.mxu0 0
        %1135 = vmatprep.subr.bf16.mxu0 0
        %1136 = vmatpush1.bf16.msra.mxu0 0
        %1137 = vmatprep.subr.bf16.mxu0 0
        %1138 = vmatpush1.bf16.msra.mxu0 0
        %1139 = vmatprep.subr.bf16.mxu0 0
        %1140 = vmatpush1.bf16.msra.mxu0 0
        %1141 = vmatprep.subr.bf16.mxu0 0
        %1142 = vmatpush1.bf16.msra.mxu0 0
        %1143 = vmatprep.subr.bf16.mxu0 0
        %1144 = vmatpush1.bf16.msra.mxu0 0
        %1145 = vmatprep.subr.bf16.mxu0 0
        %1146 = vmatpush1.bf16.msra.mxu0 0
        %1147 = vmatprep.subr.bf16.mxu0 0
        %1148 = vmatpush1.bf16.msra.mxu0 0
        %1149 = vmatprep.mubr.bf16.mxu0 0
        %1150 = vmatmul.mubr.bf16.gmra.mrb[0].mxu0 %v274
        %v1151 = vpop.f32.mrb[0].mxu0
        %v1152 = vadd.f32 0.0, %v1151
        %v1153 = vpop.f32.mrb[0].mxu0
        %v1154 = vpop.f32.mrb[0].mxu0
        %v1155 = vadd.f32 0.0, %v1154
        %v1156 = vpop.f32.mrb[0].mxu0
        %1157 = vmatprep.mubr.bf16.mxu0 0
        %1158 = vmatmul.mubr.bf16.gmra.mrb[0].mxu0 %v277
        %v1159 = vpop.f32.mrb[0].mxu0
        %v1160 = vadd.f32 0.0, %v1159
        %v1161 = vpop.f32.mrb[0].mxu0
        %v1162 = vpop.f32.mrb[0].mxu0
        %v1163 = vadd.f32 0.0, %v1162
        %v1164 = vpop.f32.mrb[0].mxu0
        %1165 = vmatprep.mubr.bf16.mxu0 0
        %1166 = vmatmul.mubr.bf16.gmra.mrb[0].mxu0 %v280
        %v1167 = vpop.f32.mrb[0].mxu0
        %v1168 = vadd.f32 0.0, %v1167
        %v1169 = vpop.f32.mrb[0].mxu0
        %v1170 = vpop.f32.mrb[0].mxu0
        %v1171 = vpop.f32.mrb[0].mxu0
        %1172 = vdwg.mxu0
        %v1173 = vtanh.pop %v1152
        %v1174 = vtanh.pop %v1155
        %v1175 = vtanh.pop %v1160
        %v1176 = vtanh.pop %v1163
        %v1177 = vtanh.pop %v1168
        %v1178 = vpack.c.bf16 %v1174, %v1173
        %v1179 = vpack.c.bf16 %v1176, %v1175
        %v1180 = vpack.c.bf16 %v1177, %v1177
        %v1182 = vsel %vm282, %v1180, 0
        %1184 = vmatprep.subr.bf16.mxu0 0
        %1185 = vmatpush1.bf16.msra.mxu0 %v1178
        %1186 = vmatprep.subr.bf16.mxu0 0
        %1187 = vmatpush1.bf16.msra.mxu0 %v1179
        %1188 = vmatprep.subr.bf16.mxu0 0
        %1189 = vmatpush1.bf16.msra.mxu0 %v1182
        %1190 = vmatprep.subr.bf16.mxu0 0
        %1191 = vmatpush1.bf16.msra.mxu0 0
        %1192 = vmatprep.subr.bf16.mxu0 0
        %1193 = vmatpush1.bf16.msra.mxu0 0
        %1194 = vmatprep.subr.bf16.mxu0 0
        %1195 = vmatpush1.bf16.msra.mxu0 0
        %1196 = vmatprep.subr.bf16.mxu0 0
        %1197 = vmatpush1.bf16.msra.mxu0 0
        %1198 = vmatprep.subr.bf16.mxu0 0
        %1199 = vmatpush1.bf16.msra.mxu0 0
        %1200 = vmatprep.subr.bf16.mxu0 0
        %1201 = vmatpush1.bf16.msra.mxu0 0
        %1202 = vmatprep.subr.bf16.mxu0 0
        %1203 = vmatpush1.bf16.msra.mxu0 0
        %1204 = vmatprep.subr.bf16.mxu0 0
        %1205 = vmatpush1.bf16.msra.mxu0 0
        %1206 = vmatprep.subr.bf16.mxu0 0
        %1207 = vmatpush1.bf16.msra.mxu0 0
        %1208 = vmatprep.subr.bf16.mxu0 0
        %1209 = vmatpush1.bf16.msra.mxu0 0
        %1210 = vmatprep.subr.bf16.mxu0 0
        %1211 = vmatpush1.bf16.msra.mxu0 0
        %1212 = vmatprep.subr.bf16.mxu0 0
        %1213 = vmatpush1.bf16.msra.mxu0 0
        %1214 = vmatprep.subr.bf16.mxu0 0
        %1215 = vmatpush1.bf16.msra.mxu0 0
        %1216 = vmatprep.mubr.bf16.mxu0 0
        %1217 = vmatmul.mubr.bf16.gmra.mrb[0].mxu0 %v365
        %v1218 = vpop.f32.mrb[0].mxu0
        %v1219 = vadd.f32 0.0, %v1218
        %v1220 = vpop.f32.mrb[0].mxu0
        %v1221 = vpop.f32.mrb[0].mxu0
        %v1222 = vadd.f32 0.0, %v1221
        %v1223 = vpop.f32.mrb[0].mxu0
        %1224 = vmatprep.mubr.bf16.mxu0 0
        %1225 = vmatmul.mubr.bf16.gmra.mrb[0].mxu0 %v368
        %v1226 = vpop.f32.mrb[0].mxu0
        %v1227 = vadd.f32 0.0, %v1226
        %v1228 = vpop.f32.mrb[0].mxu0
        %v1229 = vpop.f32.mrb[0].mxu0
        %v1230 = vadd.f32 0.0, %v1229
        %v1231 = vpop.f32.mrb[0].mxu0
        %1232 = vmatprep.mubr.bf16.mxu0 0
        %1233 = vmatmul.mubr.bf16.gmra.mrb[0].mxu0 %v371
        %v1234 = vpop.f32.mrb[0].mxu0
        %v1235 = vadd.f32 0.0, %v1234
        %v1236 = vpop.f32.mrb[0].mxu0
        %v1237 = vpop.f32.mrb[0].mxu0
        %v1238 = vpop.f32.mrb[0].mxu0
        %1239 = vdwg.mxu0
        %vm1240 = vcmp.gt.f32.partialorder %v1219, 20.0
        %vm1241 = vcmp.gt.f32.partialorder %v1222, 20.0
        %vm1242 = vcmp.gt.f32.partialorder %v1227, 20.0
        %vm1243 = vcmp.gt.f32.partialorder %v1230, 20.0
        %vm1244 = vcmp.gt.f32.partialorder %v1235, 20.0
        %v1245 = vmul.f32 %v1219, 1.442695
        %v1246 = vpow.pop %v1245
        %v1247 = vmul.f32 %v1222, 1.442695
        %v1248 = vpow.pop %v1247
        %v1249 = vmul.f32 %v1227, 1.442695
        %v1250 = vpow.pop %v1249
        %v1251 = vmul.f32 %v1230, 1.442695
        %v1252 = vpow.pop %v1251
        %v1253 = vmul.f32 %v1235, 1.442695
        %v1254 = vpow.pop %v1253
        %v1255 = vadd.f32 %v1246, 1.0
        %v1256 = vlog2.pop %v1255
        %v1257 = vmul.f32 %v1256, 0.6931472
        %v1258 = vmul.f32 -0.5, %v1246
        %v1259 = vadd.f32 %v1258, 1.0
        %v1260 = vmul.f32 %v1259, %v1246
        %v1261 = vand.u32 2147483647, %v1246
        %vm1262 = vcmp.lt.f32.partialorder %v1261, 0.0004427343
        %v1263 = vsel %vm1262, %v1260, %v1257
        %v1264 = vadd.f32 %v1248, 1.0
        %v1265 = vlog2.pop %v1264
        %v1266 = vmul.f32 %v1265, 0.6931472
        %v1267 = vmul.f32 -0.5, %v1248
        %v1268 = vadd.f32 %v1267, 1.0
        %v1269 = vmul.f32 %v1268, %v1248
        %v1270 = vand.u32 2147483647, %v1248
        %vm1271 = vcmp.lt.f32.partialorder %v1270, 0.0004427343
        %v1272 = vsel %vm1271, %v1269, %v1266
        %v1273 = vadd.f32 %v1250, 1.0
        %v1274 = vlog2.pop %v1273
        %v1275 = vmul.f32 %v1274, 0.6931472
        %v1276 = vmul.f32 -0.5, %v1250
        %v1277 = vadd.f32 %v1276, 1.0
        %v1278 = vmul.f32 %v1277, %v1250
        %v1279 = vand.u32 2147483647, %v1250
        %vm1280 = vcmp.lt.f32.partialorder %v1279, 0.0004427343
        %v1281 = vsel %vm1280, %v1278, %v1275
        %v1282 = vadd.f32 %v1252, 1.0
        %v1283 = vlog2.pop %v1282
        %v1284 = vmul.f32 %v1283, 0.6931472
        %v1285 = vmul.f32 -0.5, %v1252
        %v1286 = vadd.f32 %v1285, 1.0
        %v1287 = vmul.f32 %v1286, %v1252
        %v1288 = vand.u32 2147483647, %v1252
        %vm1289 = vcmp.lt.f32.partialorder %v1288, 0.0004427343
        %v1290 = vsel %vm1289, %v1287, %v1284
        %v1291 = vadd.f32 %v1254, 1.0
        %v1292 = vlog2.pop %v1291
        %v1293 = vmul.f32 %v1292, 0.6931472
        %v1294 = vmul.f32 -0.5, %v1254
        %v1295 = vadd.f32 %v1294, 1.0
        %v1296 = vmul.f32 %v1295, %v1254
        %v1297 = vand.u32 2147483647, %v1254
        %vm1298 = vcmp.lt.f32.partialorder %v1297, 0.0004427343
        %v1299 = vsel %vm1298, %v1296, %v1293
        %v1300 = vsel %vm1240, %v1219, %v1263
        %v1301 = vsel %vm1241, %v1222, %v1272
        %v1302 = vsel %vm1242, %v1227, %v1281
        %v1303 = vsel %vm1243, %v1230, %v1290
        %v1304 = vsel %vm1244, %v1235, %v1299
        %v1305 = vpack.c.bf16 %v1301, %v1300
        %v1306 = vpack.c.bf16 %v1303, %v1302
        %v1307 = vpack.c.bf16 %v1304, %v1304
        %v1309 = vsel %vm282, %v1307, 0
        %1311 = vmatprep.subr.bf16.mxu0 0
        %1312 = vmatpush1.bf16.msra.mxu0 %v1305
        %1313 = vmatprep.subr.bf16.mxu0 0
        %1314 = vmatpush1.bf16.msra.mxu0 %v1306
        %1315 = vmatprep.subr.bf16.mxu0 0
        %1316 = vmatpush1.bf16.msra.mxu0 %v1309
        %1317 = vmatprep.subr.bf16.mxu0 0
        %1318 = vmatpush1.bf16.msra.mxu0 0
        %1319 = vmatprep.subr.bf16.mxu0 0
        %1320 = vmatpush1.bf16.msra.mxu0 0
        %1321 = vmatprep.subr.bf16.mxu0 0
        %1322 = vmatpush1.bf16.msra.mxu0 0
        %1323 = vmatprep.subr.bf16.mxu0 0
        %1324 = vmatpush1.bf16.msra.mxu0 0
        %1325 = vmatprep.subr.bf16.mxu0 0
        %1326 = vmatpush1.bf16.msra.mxu0 0
        %1327 = vmatprep.subr.bf16.mxu0 0
        %1328 = vmatpush1.bf16.msra.mxu0 0
        %1329 = vmatprep.subr.bf16.mxu0 0
        %1330 = vmatpush1.bf16.msra.mxu0 0
        %1331 = vmatprep.subr.bf16.mxu0 0
        %1332 = vmatpush1.bf16.msra.mxu0 0
        %1333 = vmatprep.subr.bf16.mxu0 0
        %1334 = vmatpush1.bf16.msra.mxu0 0
        %1335 = vmatprep.subr.bf16.mxu0 0
        %1336 = vmatpush1.bf16.msra.mxu0 0
        %1337 = vmatprep.subr.bf16.mxu0 0
        %1338 = vmatpush1.bf16.msra.mxu0 0
        %1339 = vmatprep.subr.bf16.mxu0 0
        %1340 = vmatpush1.bf16.msra.mxu0 0
        %1341 = vmatprep.subr.bf16.mxu0 0
        %1342 = vmatpush1.bf16.msra.mxu0 0
        %1343 = vmatprep.mubr.bf16.mxu0 0
        %1344 = vmatmul.mubr.bf16.gmra.mrb[0].mxu0 %v514
        %v1345 = vpop.f32.mrb[0].mxu0
        %v1346 = vadd.f32 0.0, %v1345
        %v1347 = vpop.f32.mrb[0].mxu0
        %v1348 = vpop.f32.mrb[0].mxu0
        %v1349 = vadd.f32 0.0, %v1348
        %v1350 = vpop.f32.mrb[0].mxu0
        %1351 = vmatprep.mubr.bf16.mxu0 0
        %1352 = vmatmul.mubr.bf16.gmra.mrb[0].mxu0 %v517
        %v1353 = vpop.f32.mrb[0].mxu0
        %v1354 = vadd.f32 0.0, %v1353
        %v1355 = vpop.f32.mrb[0].mxu0
        %v1356 = vpop.f32.mrb[0].mxu0
        %v1357 = vadd.f32 0.0, %v1356
        %v1358 = vpop.f32.mrb[0].mxu0
        %1359 = vmatprep.mubr.bf16.mxu0 0
        %1360 = vmatmul.mubr.bf16.gmra.mrb[0].mxu0 %v520
        %v1361 = vpop.f32.mrb[0].mxu0
        %v1362 = vadd.f32 0.0, %v1361
        %v1363 = vpop.f32.mrb[0].mxu0
        %v1364 = vpop.f32.mrb[0].mxu0
        %v1365 = vpop.f32.mrb[0].mxu0
        %1366 = vdwg.mxu0
        %vm1367 = vcmp.gt.f32.partialorder %v1346, 20.0
        %vm1368 = vcmp.gt.f32.partialorder %v1349, 20.0
        %vm1369 = vcmp.gt.f32.partialorder %v1354, 20.0
        %vm1370 = vcmp.gt.f32.partialorder %v1357, 20.0
        %vm1371 = vcmp.gt.f32.partialorder %v1362, 20.0
        %v1372 = vmul.f32 %v1346, 1.442695
        %v1373 = vpow.pop %v1372
        %v1374 = vmul.f32 %v1349, 1.442695
        %v1375 = vpow.pop %v1374
        %v1376 = vmul.f32 %v1354, 1.442695
        %v1377 = vpow.pop %v1376
        %v1378 = vmul.f32 %v1357, 1.442695
        %v1379 = vpow.pop %v1378
        %v1380 = vmul.f32 %v1362, 1.442695
        %v1381 = vpow.pop %v1380
        %v1382 = vadd.f32 %v1373, 1.0
        %v1383 = vlog2.pop %v1382
        %v1384 = vmul.f32 %v1383, 0.6931472
        %v1385 = vmul.f32 -0.5, %v1373
        %v1386 = vadd.f32 %v1385, 1.0
        %v1387 = vmul.f32 %v1386, %v1373
        %v1388 = vand.u32 2147483647, %v1373
        %vm1389 = vcmp.lt.f32.partialorder %v1388, 0.0004427343
        %v1390 = vsel %vm1389, %v1387, %v1384
        %v1391 = vadd.f32 %v1375, 1.0
        %v1392 = vlog2.pop %v1391
        %v1393 = vmul.f32 %v1392, 0.6931472
        %v1394 = vmul.f32 -0.5, %v1375
        %v1395 = vadd.f32 %v1394, 1.0
        %v1396 = vmul.f32 %v1395, %v1375
        %v1397 = vand.u32 2147483647, %v1375
        %vm1398 = vcmp.lt.f32.partialorder %v1397, 0.0004427343
        %v1399 = vsel %vm1398, %v1396, %v1393
        %v1400 = vadd.f32 %v1377, 1.0
        %v1401 = vlog2.pop %v1400
        %v1402 = vmul.f32 %v1401, 0.6931472
        %v1403 = vmul.f32 -0.5, %v1377
        %v1404 = vadd.f32 %v1403, 1.0
        %v1405 = vmul.f32 %v1404, %v1377
        %v1406 = vand.u32 2147483647, %v1377
        %vm1407 = vcmp.lt.f32.partialorder %v1406, 0.0004427343
        %v1408 = vsel %vm1407, %v1405, %v1402
        %v1409 = vadd.f32 %v1379, 1.0
        %v1410 = vlog2.pop %v1409
        %v1411 = vmul.f32 %v1410, 0.6931472
        %v1412 = vmul.f32 -0.5, %v1379
        %v1413 = vadd.f32 %v1412, 1.0
        %v1414 = vmul.f32 %v1413, %v1379
        %v1415 = vand.u32 2147483647, %v1379
        %vm1416 = vcmp.lt.f32.partialorder %v1415, 0.0004427343
        %v1417 = vsel %vm1416, %v1414, %v1411
        %v1418 = vadd.f32 %v1381, 1.0
        %v1419 = vlog2.pop %v1418
        %v1420 = vmul.f32 %v1419, 0.6931472
        %v1421 = vmul.f32 -0.5, %v1381
        %v1422 = vadd.f32 %v1421, 1.0
        %v1423 = vmul.f32 %v1422, %v1381
        %v1424 = vand.u32 2147483647, %v1381
        %vm1425 = vcmp.lt.f32.partialorder %v1424, 0.0004427343
        %v1426 = vsel %vm1425, %v1423, %v1420
        %v1427 = vsel %vm1367, %v1346, %v1390
        %v1428 = vsel %vm1368, %v1349, %v1399
        %v1429 = vsel %vm1369, %v1354, %v1408
        %v1430 = vsel %vm1370, %v1357, %v1417
        %v1431 = vsel %vm1371, %v1362, %v1426
        %v1432 = vstv %s1111
        %v1433 = vmul.f32 %v1432, %v250
        %v1434 = vmul.f32 %v1432, %v251
        %v1435 = vmul.f32 %v1432, %v252
        %v1436 = vadd.f32 %v244, %v1433
        %v1437 = vadd.f32 %v245, %v1434
        %v1438 = vadd.f32 %v246, %v1435
        %v1439 = vpack.c.bf16 %v1437, %v1436
        %v1440 = vpack.c.bf16 %v1438, %v1438
        %v1441 = vpack.c.bf16 %v1428, %v1427
        %v1442 = vpack.c.bf16 %v1430, %v1429
        %v1443 = vpack.c.bf16 %v1431, %v1431
        %v1445 = vsel %vm363, %v1439, 0
        %v1448 = vsel %vm363, %v1440, 0
        %v1451 = vsel %vm282, %v1443, 0
        %1453 = vmatprep.subr.bf16.mxu0 0
        %1454 = vmatpush1.bf16.msra.mxu0 %v1441
        %1455 = vmatprep.subr.bf16.mxu0 0
        %1456 = vmatpush1.bf16.msra.mxu0 %v1442
        %1457 = vmatprep.subr.bf16.mxu0 0
        %1458 = vmatpush1.bf16.msra.mxu0 %v1451
        %1459 = vmatprep.subr.bf16.mxu0 0
        %1460 = vmatpush1.bf16.msra.mxu0 0
        %1461 = vmatprep.subr.bf16.mxu0 0
        %1462 = vmatpush1.bf16.msra.mxu0 0
        %1463 = vmatprep.subr.bf16.mxu0 0
        %1464 = vmatpush1.bf16.msra.mxu0 0
        %1465 = vmatprep.subr.bf16.mxu0 0
        %1466 = vmatpush1.bf16.msra.mxu0 0
        %1467 = vmatprep.subr.bf16.mxu0 0
        %1468 = vmatpush1.bf16.msra.mxu0 0
        %1469 = vmatprep.subr.bf16.mxu0 0
        %1470 = vmatpush1.bf16.msra.mxu0 0
        %1471 = vmatprep.subr.bf16.mxu0 0
        %1472 = vmatpush1.bf16.msra.mxu0 0
        %1473 = vmatprep.subr.bf16.mxu0 0
        %1474 = vmatpush1.bf16.msra.mxu0 0
        %1475 = vmatprep.subr.bf16.mxu0 0
        %1476 = vmatpush1.bf16.msra.mxu0 0
        %1477 = vmatprep.subr.bf16.mxu0 0
        %1478 = vmatpush1.bf16.msra.mxu0 0
        %1479 = vmatprep.subr.bf16.mxu0 0
        %1480 = vmatpush1.bf16.msra.mxu0 0
        %1481 = vmatprep.subr.bf16.mxu0 0
        %1482 = vmatpush1.bf16.msra.mxu0 0
        %1483 = vmatprep.subr.bf16.mxu0 0
        %1484 = vmatpush1.bf16.msra.mxu0 0
        %1485 = vmatprep.mubr.bf16.mxu0 0
        %1486 = vmatmul.mubr.bf16.gmra.mrb[0].mxu0 %v1445
        %v1487 = vpop.f32.mrb[0].mxu0
        %v1488 = vadd.f32 0.0, %v1487
        %v1489 = vpop.f32.mrb[0].mxu0
        %v1490 = vpop.f32.mrb[0].mxu0
        %v1491 = vadd.f32 0.0, %v1490
        %v1492 = vpop.f32.mrb[0].mxu0
        %1493 = vmatprep.mubr.bf16.mxu0 0
        %1494 = vmatmul.mubr.bf16.gmra.mrb[0].mxu0 %v1448
        %v1495 = vpop.f32.mrb[0].mxu0
        %v1496 = vadd.f32 0.0, %v1495
        %v1497 = vpop.f32.mrb[0].mxu0
        %v1498 = vpop.f32.mrb[0].mxu0
        %v1499 = vpop.f32.mrb[0].mxu0
        %1500 = vdwg.mxu0
        %v1501 = vadd.f32 %v1108, %v1488
        %v1502 = vadd.f32 %v1109, %v1491
        %v1503 = vadd.f32 %v1110, %v1496
        %s1504 = sld [smem:[#allocation2 + $0x3]]
        %v1505 = vpack.c.bf16 %v1502, %v1501
        %v1506 = vpack.c.bf16 %v1503, %v1503
        %v1508 = vsel %vm282, %v1506, 0
        %1510 = vmatprep.subr.bf16.mxu0 0
        %1511 = vmatpush1.bf16.msra.mxu0 %v1505
        %1512 = vmatprep.subr.bf16.mxu0 0
        %1513 = vmatpush1.bf16.msra.mxu0 %v1508
        %1514 = vmatprep.subr.bf16.mxu0 0
        %1515 = vmatpush1.bf16.msra.mxu0 0
        %1516 = vmatprep.subr.bf16.mxu0 0
        %1517 = vmatpush1.bf16.msra.mxu0 0
        %1518 = vmatprep.subr.bf16.mxu0 0
        %1519 = vmatpush1.bf16.msra.mxu0 0
        %1520 = vmatprep.subr.bf16.mxu0 0
        %1521 = vmatpush1.bf16.msra.mxu0 0
        %1522 = vmatprep.subr.bf16.mxu0 0
        %1523 = vmatpush1.bf16.msra.mxu0 0
        %1524 = vmatprep.subr.bf16.mxu0 0
        %1525 = vmatpush1.bf16.msra.mxu0 0
        %1526 = vmatprep.subr.bf16.mxu0 0
        %1527 = vmatpush1.bf16.msra.mxu0 0
        %1528 = vmatprep.subr.bf16.mxu0 0
        %1529 = vmatpush1.bf16.msra.mxu0 0
        %1530 = vmatprep.subr.bf16.mxu0 0
        %1531 = vmatpush1.bf16.msra.mxu0 0
        %1532 = vmatprep.subr.bf16.mxu0 0
        %1533 = vmatpush1.bf16.msra.mxu0 0
        %1534 = vmatprep.subr.bf16.mxu0 0
        %1535 = vmatpush1.bf16.msra.mxu0 0
        %1536 = vmatprep.subr.bf16.mxu0 0
        %1537 = vmatpush1.bf16.msra.mxu0 0
        %1538 = vmatprep.subr.bf16.mxu0 0
        %1539 = vmatpush1.bf16.msra.mxu0 0
        %1540 = vmatprep.subr.bf16.mxu0 0
        %1541 = vmatpush1.bf16.msra.mxu0 0
        %1542 = vmatprep.mubr.bf16.mxu0 0
        %1543 = vmatmul.mubr.bf16.gmra.mrb[0].mxu0 %v274
        %v1544 = vpop.f32.mrb[0].mxu0
        %v1545 = vadd.f32 0.0, %v1544
        %v1546 = vpop.f32.mrb[0].mxu0
        %v1547 = vpop.f32.mrb[0].mxu0
        %v1548 = vadd.f32 0.0, %v1547
        %v1549 = vpop.f32.mrb[0].mxu0
        %1550 = vmatprep.mubr.bf16.mxu0 0
        %1551 = vmatmul.mubr.bf16.gmra.mrb[0].mxu0 %v277
        %v1552 = vpop.f32.mrb[0].mxu0
        %v1553 = vadd.f32 0.0, %v1552
        %v1554 = vpop.f32.mrb[0].mxu0
        %v1555 = vpop.f32.mrb[0].mxu0
        %v1556 = vadd.f32 0.0, %v1555
        %v1557 = vpop.f32.mrb[0].mxu0
        %1558 = vmatprep.mubr.bf16.mxu0 0
        %1559 = vmatmul.mubr.bf16.gmra.mrb[0].mxu0 %v280
        %v1560 = vpop.f32.mrb[0].mxu0
        %v1561 = vadd.f32 0.0, %v1560
        %v1562 = vpop.f32.mrb[0].mxu0
        %v1563 = vpop.f32.mrb[0].mxu0
        %v1564 = vpop.f32.mrb[0].mxu0
        %1565 = vdwg.mxu0
        %v1566 = vtanh.pop %v1545
        %v1567 = vtanh.pop %v1548
        %v1568 = vtanh.pop %v1553
        %v1569 = vtanh.pop %v1556
        %v1570 = vtanh.pop %v1561
        %v1571 = vpack.c.bf16 %v1567, %v1566
        %v1572 = vpack.c.bf16 %v1569, %v1568
        %v1573 = vpack.c.bf16 %v1570, %v1570
        %v1575 = vsel %vm282, %v1573, 0
        %1577 = vmatprep.subr.bf16.mxu0 0
        %1578 = vmatpush1.bf16.msra.mxu0 %v1571
        %1579 = vmatprep.subr.bf16.mxu0 0
        %1580 = vmatpush1.bf16.msra.mxu0 %v1572
        %1581 = vmatprep.subr.bf16.mxu0 0
        %1582 = vmatpush1.bf16.msra.mxu0 %v1575
        %1583 = vmatprep.subr.bf16.mxu0 0
        %1584 = vmatpush1.bf16.msra.mxu0 0
        %1585 = vmatprep.subr.bf16.mxu0 0
        %1586 = vmatpush1.bf16.msra.mxu0 0
        %1587 = vmatprep.subr.bf16.mxu0 0
        %1588 = vmatpush1.bf16.msra.mxu0 0
        %1589 = vmatprep.subr.bf16.mxu0 0
        %1590 = vmatpush1.bf16.msra.mxu0 0
        %1591 = vmatprep.subr.bf16.mxu0 0
        %1592 = vmatpush1.bf16.msra.mxu0 0
        %1593 = vmatprep.subr.bf16.mxu0 0
        %1594 = vmatpush1.bf16.msra.mxu0 0
        %1595 = vmatprep.subr.bf16.mxu0 0
        %1596 = vmatpush1.bf16.msra.mxu0 0
        %1597 = vmatprep.subr.bf16.mxu0 0
        %1598 = vmatpush1.bf16.msra.mxu0 0
        %1599 = vmatprep.subr.bf16.mxu0 0
        %1600 = vmatpush1.bf16.msra.mxu0 0
        %1601 = vmatprep.subr.bf16.mxu0 0
        %1602 = vmatpush1.bf16.msra.mxu0 0
        %1603 = vmatprep.subr.bf16.mxu0 0
        %1604 = vmatpush1.bf16.msra.mxu0 0
        %1605 = vmatprep.subr.bf16.mxu0 0
        %1606 = vmatpush1.bf16.msra.mxu0 0
        %1607 = vmatprep.subr.bf16.mxu0 0
        %1608 = vmatpush1.bf16.msra.mxu0 0
        %1609 = vmatprep.mubr.bf16.mxu0 0
        %1610 = vmatmul.mubr.bf16.gmra.mrb[0].mxu0 %v365
        %v1611 = vpop.f32.mrb[0].mxu0
        %v1612 = vadd.f32 0.0, %v1611
        %v1613 = vpop.f32.mrb[0].mxu0
        %v1614 = vpop.f32.mrb[0].mxu0
        %v1615 = vadd.f32 0.0, %v1614
        %v1616 = vpop.f32.mrb[0].mxu0
        %1617 = vmatprep.mubr.bf16.mxu0 0
        %1618 = vmatmul.mubr.bf16.gmra.mrb[0].mxu0 %v368
        %v1619 = vpop.f32.mrb[0].mxu0
        %v1620 = vadd.f32 0.0, %v1619
        %v1621 = vpop.f32.mrb[0].mxu0
        %v1622 = vpop.f32.mrb[0].mxu0
        %v1623 = vadd.f32 0.0, %v1622
        %v1624 = vpop.f32.mrb[0].mxu0
        %1625 = vmatprep.mubr.bf16.mxu0 0
        %1626 = vmatmul.mubr.bf16.gmra.mrb[0].mxu0 %v371
        %v1627 = vpop.f32.mrb[0].mxu0
        %v1628 = vadd.f32 0.0, %v1627
        %v1629 = vpop.f32.mrb[0].mxu0
        %v1630 = vpop.f32.mrb[0].mxu0
        %v1631 = vpop.f32.mrb[0].mxu0
        %1632 = vdwg.mxu0
        %vm1633 = vcmp.gt.f32.partialorder %v1612, 20.0
        %vm1634 = vcmp.gt.f32.partialorder %v1615, 20.0
        %vm1635 = vcmp.gt.f32.partialorder %v1620, 20.0
        %vm1636 = vcmp.gt.f32.partialorder %v1623, 20.0
        %vm1637 = vcmp.gt.f32.partialorder %v1628, 20.0
        %v1638 = vmul.f32 %v1612, 1.442695
        %v1639 = vpow.pop %v1638
        %v1640 = vmul.f32 %v1615, 1.442695
        %v1641 = vpow.pop %v1640
        %v1642 = vmul.f32 %v1620, 1.442695
        %v1643 = vpow.pop %v1642
        %v1644 = vmul.f32 %v1623, 1.442695
        %v1645 = vpow.pop %v1644
        %v1646 = vmul.f32 %v1628, 1.442695
        %v1647 = vpow.pop %v1646
        %v1648 = vadd.f32 %v1639, 1.0
        %v1649 = vlog2.pop %v1648
        %v1650 = vmul.f32 %v1649, 0.6931472
        %v1651 = vmul.f32 -0.5, %v1639
        %v1652 = vadd.f32 %v1651, 1.0
        %v1653 = vmul.f32 %v1652, %v1639
        %v1654 = vand.u32 2147483647, %v1639
        %vm1655 = vcmp.lt.f32.partialorder %v1654, 0.0004427343
        %v1656 = vsel %vm1655, %v1653, %v1650
        %v1657 = vadd.f32 %v1641, 1.0
        %v1658 = vlog2.pop %v1657
        %v1659 = vmul.f32 %v1658, 0.6931472
        %v1660 = vmul.f32 -0.5, %v1641
        %v1661 = vadd.f32 %v1660, 1.0
        %v1662 = vmul.f32 %v1661, %v1641
        %v1663 = vand.u32 2147483647, %v1641
        %vm1664 = vcmp.lt.f32.partialorder %v1663, 0.0004427343
        %v1665 = vsel %vm1664, %v1662, %v1659
        %v1666 = vadd.f32 %v1643, 1.0
        %v1667 = vlog2.pop %v1666
        %v1668 = vmul.f32 %v1667, 0.6931472
        %v1669 = vmul.f32 -0.5, %v1643
        %v1670 = vadd.f32 %v1669, 1.0
        %v1671 = vmul.f32 %v1670, %v1643
        %v1672 = vand.u32 2147483647, %v1643
        %vm1673 = vcmp.lt.f32.partialorder %v1672, 0.0004427343
        %v1674 = vsel %vm1673, %v1671, %v1668
        %v1675 = vadd.f32 %v1645, 1.0
        %v1676 = vlog2.pop %v1675
        %v1677 = vmul.f32 %v1676, 0.6931472
        %v1678 = vmul.f32 -0.5, %v1645
        %v1679 = vadd.f32 %v1678, 1.0
        %v1680 = vmul.f32 %v1679, %v1645
        %v1681 = vand.u32 2147483647, %v1645
        %vm1682 = vcmp.lt.f32.partialorder %v1681, 0.0004427343
        %v1683 = vsel %vm1682, %v1680, %v1677
        %v1684 = vadd.f32 %v1647, 1.0
        %v1685 = vlog2.pop %v1684
        %v1686 = vmul.f32 %v1685, 0.6931472
        %v1687 = vmul.f32 -0.5, %v1647
        %v1688 = vadd.f32 %v1687, 1.0
        %v1689 = vmul.f32 %v1688, %v1647
        %v1690 = vand.u32 2147483647, %v1647
        %vm1691 = vcmp.lt.f32.partialorder %v1690, 0.0004427343
        %v1692 = vsel %vm1691, %v1689, %v1686
        %v1693 = vsel %vm1633, %v1612, %v1656
        %v1694 = vsel %vm1634, %v1615, %v1665
        %v1695 = vsel %vm1635, %v1620, %v1674
        %v1696 = vsel %vm1636, %v1623, %v1683
        %v1697 = vsel %vm1637, %v1628, %v1692
        %v1698 = vpack.c.bf16 %v1694, %v1693
        %v1699 = vpack.c.bf16 %v1696, %v1695
        %v1700 = vpack.c.bf16 %v1697, %v1697
        %v1702 = vsel %vm282, %v1700, 0
        %1704 = vmatprep.subr.bf16.mxu0 0
        %1705 = vmatpush1.bf16.msra.mxu0 %v1698
        %1706 = vmatprep.subr.bf16.mxu0 0
        %1707 = vmatpush1.bf16.msra.mxu0 %v1699
        %1708 = vmatprep.subr.bf16.mxu0 0
        %1709 = vmatpush1.bf16.msra.mxu0 %v1702
        %1710 = vmatprep.subr.bf16.mxu0 0
        %1711 = vmatpush1.bf16.msra.mxu0 0
        %1712 = vmatprep.subr.bf16.mxu0 0
        %1713 = vmatpush1.bf16.msra.mxu0 0
        %1714 = vmatprep.subr.bf16.mxu0 0
        %1715 = vmatpush1.bf16.msra.mxu0 0
        %1716 = vmatprep.subr.bf16.mxu0 0
        %1717 = vmatpush1.bf16.msra.mxu0 0
        %1718 = vmatprep.subr.bf16.mxu0 0
        %1719 = vmatpush1.bf16.msra.mxu0 0
        %1720 = vmatprep.subr.bf16.mxu0 0
        %1721 = vmatpush1.bf16.msra.mxu0 0
        %1722 = vmatprep.subr.bf16.mxu0 0
        %1723 = vmatpush1.bf16.msra.mxu0 0
        %1724 = vmatprep.subr.bf16.mxu0 0
        %1725 = vmatpush1.bf16.msra.mxu0 0
        %1726 = vmatprep.subr.bf16.mxu0 0
        %1727 = vmatpush1.bf16.msra.mxu0 0
        %1728 = vmatprep.subr.bf16.mxu0 0
        %1729 = vmatpush1.bf16.msra.mxu0 0
        %1730 = vmatprep.subr.bf16.mxu0 0
        %1731 = vmatpush1.bf16.msra.mxu0 0
        %1732 = vmatprep.subr.bf16.mxu0 0
        %1733 = vmatpush1.bf16.msra.mxu0 0
        %1734 = vmatprep.subr.bf16.mxu0 0
        %1735 = vmatpush1.bf16.msra.mxu0 0
        %1736 = vmatprep.mubr.bf16.mxu0 0
        %1737 = vmatmul.mubr.bf16.gmra.mrb[0].mxu0 %v514
        %v1738 = vpop.f32.mrb[0].mxu0
        %v1739 = vadd.f32 0.0, %v1738
        %v1740 = vpop.f32.mrb[0].mxu0
        %v1741 = vpop.f32.mrb[0].mxu0
        %v1742 = vadd.f32 0.0, %v1741
        %v1743 = vpop.f32.mrb[0].mxu0
        %1744 = vmatprep.mubr.bf16.mxu0 0
        %1745 = vmatmul.mubr.bf16.gmra.mrb[0].mxu0 %v517
        %v1746 = vpop.f32.mrb[0].mxu0
        %v1747 = vadd.f32 0.0, %v1746
        %v1748 = vpop.f32.mrb[0].mxu0
        %v1749 = vpop.f32.mrb[0].mxu0
        %v1750 = vadd.f32 0.0, %v1749
        %v1751 = vpop.f32.mrb[0].mxu0
        %1752 = vmatprep.mubr.bf16.mxu0 0
        %1753 = vmatmul.mubr.bf16.gmra.mrb[0].mxu0 %v520
        %v1754 = vpop.f32.mrb[0].mxu0
        %v1755 = vadd.f32 0.0, %v1754
        %v1756 = vpop.f32.mrb[0].mxu0
        %v1757 = vpop.f32.mrb[0].mxu0
        %v1758 = vpop.f32.mrb[0].mxu0
        %1759 = vdwg.mxu0
        %vm1760 = vcmp.gt.f32.partialorder %v1739, 20.0
        %vm1761 = vcmp.gt.f32.partialorder %v1742, 20.0
        %vm1762 = vcmp.gt.f32.partialorder %v1747, 20.0
        %vm1763 = vcmp.gt.f32.partialorder %v1750, 20.0
        %vm1764 = vcmp.gt.f32.partialorder %v1755, 20.0
        %v1765 = vmul.f32 %v1739, 1.442695
        %v1766 = vpow.pop %v1765
        %v1767 = vmul.f32 %v1742, 1.442695
        %v1768 = vpow.pop %v1767
        %v1769 = vmul.f32 %v1747, 1.442695
        %v1770 = vpow.pop %v1769
        %v1771 = vmul.f32 %v1750, 1.442695
        %v1772 = vpow.pop %v1771
        %v1773 = vmul.f32 %v1755, 1.442695
        %v1774 = vpow.pop %v1773
        %v1775 = vadd.f32 %v1766, 1.0
        %v1776 = vlog2.pop %v1775
        %v1777 = vmul.f32 %v1776, 0.6931472
        %v1778 = vmul.f32 -0.5, %v1766
        %v1779 = vadd.f32 %v1778, 1.0
        %v1780 = vmul.f32 %v1779, %v1766
        %v1781 = vand.u32 2147483647, %v1766
        %vm1782 = vcmp.lt.f32.partialorder %v1781, 0.0004427343
        %v1783 = vsel %vm1782, %v1780, %v1777
        %v1784 = vadd.f32 %v1768, 1.0
        %v1785 = vlog2.pop %v1784
        %v1786 = vmul.f32 %v1785, 0.6931472
        %v1787 = vmul.f32 -0.5, %v1768
        %v1788 = vadd.f32 %v1787, 1.0
        %v1789 = vmul.f32 %v1788, %v1768
        %v1790 = vand.u32 2147483647, %v1768
        %vm1791 = vcmp.lt.f32.partialorder %v1790, 0.0004427343
        %v1792 = vsel %vm1791, %v1789, %v1786
        %v1793 = vadd.f32 %v1770, 1.0
        %v1794 = vlog2.pop %v1793
        %v1795 = vmul.f32 %v1794, 0.6931472
        %v1796 = vmul.f32 -0.5, %v1770
        %v1797 = vadd.f32 %v1796, 1.0
        %v1798 = vmul.f32 %v1797, %v1770
        %v1799 = vand.u32 2147483647, %v1770
        %vm1800 = vcmp.lt.f32.partialorder %v1799, 0.0004427343
        %v1801 = vsel %vm1800, %v1798, %v1795
        %v1802 = vadd.f32 %v1772, 1.0
        %v1803 = vlog2.pop %v1802
        %v1804 = vmul.f32 %v1803, 0.6931472
        %v1805 = vmul.f32 -0.5, %v1772
        %v1806 = vadd.f32 %v1805, 1.0
        %v1807 = vmul.f32 %v1806, %v1772
        %v1808 = vand.u32 2147483647, %v1772
        %vm1809 = vcmp.lt.f32.partialorder %v1808, 0.0004427343
        %v1810 = vsel %vm1809, %v1807, %v1804
        %v1811 = vadd.f32 %v1774, 1.0
        %v1812 = vlog2.pop %v1811
        %v1813 = vmul.f32 %v1812, 0.6931472
        %v1814 = vmul.f32 -0.5, %v1774
        %v1815 = vadd.f32 %v1814, 1.0
        %v1816 = vmul.f32 %v1815, %v1774
        %v1817 = vand.u32 2147483647, %v1774
        %vm1818 = vcmp.lt.f32.partialorder %v1817, 0.0004427343
        %v1819 = vsel %vm1818, %v1816, %v1813
        %v1820 = vsel %vm1760, %v1739, %v1783
        %v1821 = vsel %vm1761, %v1742, %v1792
        %v1822 = vsel %vm1762, %v1747, %v1801
        %v1823 = vsel %vm1763, %v1750, %v1810
        %v1824 = vsel %vm1764, %v1755, %v1819
        %v1825 = vstv %s1504
        %v1826 = vmul.f32 %v1825, %v250
        %v1827 = vmul.f32 %v1825, %v251
        %v1828 = vmul.f32 %v1825, %v252
        %v1829 = vadd.f32 %v244, %v1826
        %v1830 = vadd.f32 %v245, %v1827
        %v1831 = vadd.f32 %v246, %v1828
        %v1832 = vpack.c.bf16 %v1830, %v1829
        %v1833 = vpack.c.bf16 %v1831, %v1831
        %v1834 = vpack.c.bf16 %v1821, %v1820
        %v1835 = vpack.c.bf16 %v1823, %v1822
        %v1836 = vpack.c.bf16 %v1824, %v1824
        %v1838 = vsel %vm363, %v1832, 0
        %v1841 = vsel %vm363, %v1833, 0
        %v1844 = vsel %vm282, %v1836, 0
        %1846 = vmatprep.subr.bf16.mxu0 0
        %1847 = vmatpush1.bf16.msra.mxu0 %v1834
        %1848 = vmatprep.subr.bf16.mxu0 0
        %1849 = vmatpush1.bf16.msra.mxu0 %v1835
        %1850 = vmatprep.subr.bf16.mxu0 0
        %1851 = vmatpush1.bf16.msra.mxu0 %v1844
        %1852 = vmatprep.subr.bf16.mxu0 0
        %1853 = vmatpush1.bf16.msra.mxu0 0
        %1854 = vmatprep.subr.bf16.mxu0 0
        %1855 = vmatpush1.bf16.msra.mxu0 0
        %1856 = vmatprep.subr.bf16.mxu0 0
        %1857 = vmatpush1.bf16.msra.mxu0 0
        %1858 = vmatprep.subr.bf16.mxu0 0
        %1859 = vmatpush1.bf16.msra.mxu0 0
        %1860 = vmatprep.subr.bf16.mxu0 0
        %1861 = vmatpush1.bf16.msra.mxu0 0
        %1862 = vmatprep.subr.bf16.mxu0 0
        %1863 = vmatpush1.bf16.msra.mxu0 0
        %1864 = vmatprep.subr.bf16.mxu0 0
        %1865 = vmatpush1.bf16.msra.mxu0 0
        %1866 = vmatprep.subr.bf16.mxu0 0
        %1867 = vmatpush1.bf16.msra.mxu0 0
        %1868 = vmatprep.subr.bf16.mxu0 0
        %1869 = vmatpush1.bf16.msra.mxu0 0
        %1870 = vmatprep.subr.bf16.mxu0 0
        %1871 = vmatpush1.bf16.msra.mxu0 0
        %1872 = vmatprep.subr.bf16.mxu0 0
        %1873 = vmatpush1.bf16.msra.mxu0 0
        %1874 = vmatprep.subr.bf16.mxu0 0
        %1875 = vmatpush1.bf16.msra.mxu0 0
        %1876 = vmatprep.subr.bf16.mxu0 0
        %1877 = vmatpush1.bf16.msra.mxu0 0
        %1878 = vmatprep.mubr.bf16.mxu0 0
        %1879 = vmatmul.mubr.bf16.gmra.mrb[0].mxu0 %v1838
        %v1880 = vpop.f32.mrb[0].mxu0
        %v1881 = vadd.f32 0.0, %v1880
        %v1882 = vpop.f32.mrb[0].mxu0
        %v1883 = vpop.f32.mrb[0].mxu0
        %v1884 = vadd.f32 0.0, %v1883
        %v1885 = vpop.f32.mrb[0].mxu0
        %1886 = vmatprep.mubr.bf16.mxu0 0
        %1887 = vmatmul.mubr.bf16.gmra.mrb[0].mxu0 %v1841
        %v1888 = vpop.f32.mrb[0].mxu0
        %v1889 = vadd.f32 0.0, %v1888
        %v1890 = vpop.f32.mrb[0].mxu0
        %v1891 = vpop.f32.mrb[0].mxu0
        %v1892 = vpop.f32.mrb[0].mxu0
        %1893 = vdwg.mxu0
        %v1894 = vadd.f32 %v1501, %v1881
        %v1895 = vadd.f32 %v1502, %v1884
        %v1896 = vadd.f32 %v1503, %v1889
        %s1897 = sld [smem:[#allocation2 + $0x4]]
        %v1898 = vpack.c.bf16 %v1895, %v1894
        %v1899 = vpack.c.bf16 %v1896, %v1896
        %v1901 = vsel %vm282, %v1899, 0
        %1903 = vmatprep.subr.bf16.mxu0 0
        %1904 = vmatpush1.bf16.msra.mxu0 %v1898
        %1905 = vmatprep.subr.bf16.mxu0 0
        %1906 = vmatpush1.bf16.msra.mxu0 %v1901
        %1907 = vmatprep.subr.bf16.mxu0 0
        %1908 = vmatpush1.bf16.msra.mxu0 0
        %1909 = vmatprep.subr.bf16.mxu0 0
        %1910 = vmatpush1.bf16.msra.mxu0 0
        %1911 = vmatprep.subr.bf16.mxu0 0
        %1912 = vmatpush1.bf16.msra.mxu0 0
        %1913 = vmatprep.subr.bf16.mxu0 0
        %1914 = vmatpush1.bf16.msra.mxu0 0
        %1915 = vmatprep.subr.bf16.mxu0 0
        %1916 = vmatpush1.bf16.msra.mxu0 0
        %1917 = vmatprep.subr.bf16.mxu0 0
        %1918 = vmatpush1.bf16.msra.mxu0 0
        %1919 = vmatprep.subr.bf16.mxu0 0
        %1920 = vmatpush1.bf16.msra.mxu0 0
        %1921 = vmatprep.subr.bf16.mxu0 0
        %1922 = vmatpush1.bf16.msra.mxu0 0
        %1923 = vmatprep.subr.bf16.mxu0 0
        %1924 = vmatpush1.bf16.msra.mxu0 0
        %1925 = vmatprep.subr.bf16.mxu0 0
        %1926 = vmatpush1.bf16.msra.mxu0 0
        %1927 = vmatprep.subr.bf16.mxu0 0
        %1928 = vmatpush1.bf16.msra.mxu0 0
        %1929 = vmatprep.subr.bf16.mxu0 0
        %1930 = vmatpush1.bf16.msra.mxu0 0
        %1931 = vmatprep.subr.bf16.mxu0 0
        %1932 = vmatpush1.bf16.msra.mxu0 0
        %1933 = vmatprep.subr.bf16.mxu0 0
        %1934 = vmatpush1.bf16.msra.mxu0 0
        %1935 = vmatprep.mubr.bf16.mxu0 0
        %1936 = vmatmul.mubr.bf16.gmra.mrb[0].mxu0 %v274
        %v1937 = vpop.f32.mrb[0].mxu0
        %v1938 = vadd.f32 0.0, %v1937
        %v1939 = vpop.f32.mrb[0].mxu0
        %v1940 = vpop.f32.mrb[0].mxu0
        %v1941 = vadd.f32 0.0, %v1940
        %v1942 = vpop.f32.mrb[0].mxu0
        %1943 = vmatprep.mubr.bf16.mxu0 0
        %1944 = vmatmul.mubr.bf16.gmra.mrb[0].mxu0 %v277
        %v1945 = vpop.f32.mrb[0].mxu0
        %v1946 = vadd.f32 0.0, %v1945
        %v1947 = vpop.f32.mrb[0].mxu0
        %v1948 = vpop.f32.mrb[0].mxu0
        %v1949 = vadd.f32 0.0, %v1948
        %v1950 = vpop.f32.mrb[0].mxu0
        %1951 = vmatprep.mubr.bf16.mxu0 0
        %1952 = vmatmul.mubr.bf16.gmra.mrb[0].mxu0 %v280
        %v1953 = vpop.f32.mrb[0].mxu0
        %v1954 = vadd.f32 0.0, %v1953
        %v1955 = vpop.f32.mrb[0].mxu0
        %v1956 = vpop.f32.mrb[0].mxu0
        %v1957 = vpop.f32.mrb[0].mxu0
        %1958 = vdwg.mxu0
        %v1959 = vtanh.pop %v1938
        %v1960 = vtanh.pop %v1941
        %v1961 = vtanh.pop %v1946
        %v1962 = vtanh.pop %v1949
        %v1963 = vtanh.pop %v1954
        %v1964 = vpack.c.bf16 %v1960, %v1959
        %v1965 = vpack.c.bf16 %v1962, %v1961
        %v1966 = vpack.c.bf16 %v1963, %v1963
        %v1968 = vsel %vm282, %v1966, 0
        %1970 = vmatprep.subr.bf16.mxu0 0
        %1971 = vmatpush1.bf16.msra.mxu0 %v1964
        %1972 = vmatprep.subr.bf16.mxu0 0
        %1973 = vmatpush1.bf16.msra.mxu0 %v1965
        %1974 = vmatprep.subr.bf16.mxu0 0
        %1975 = vmatpush1.bf16.msra.mxu0 %v1968
        %1976 = vmatprep.subr.bf16.mxu0 0
        %1977 = vmatpush1.bf16.msra.mxu0 0
        %1978 = vmatprep.subr.bf16.mxu0 0
        %1979 = vmatpush1.bf16.msra.mxu0 0
        %1980 = vmatprep.subr.bf16.mxu0 0
        %1981 = vmatpush1.bf16.msra.mxu0 0
        %1982 = vmatprep.subr.bf16.mxu0 0
        %1983 = vmatpush1.bf16.msra.mxu0 0
        %1984 = vmatprep.subr.bf16.mxu0 0
        %1985 = vmatpush1.bf16.msra.mxu0 0
        %1986 = vmatprep.subr.bf16.mxu0 0
        %1987 = vmatpush1.bf16.msra.mxu0 0
        %1988 = vmatprep.subr.bf16.mxu0 0
        %1989 = vmatpush1.bf16.msra.mxu0 0
        %1990 = vmatprep.subr.bf16.mxu0 0
        %1991 = vmatpush1.bf16.msra.mxu0 0
        %1992 = vmatprep.subr.bf16.mxu0 0
        %1993 = vmatpush1.bf16.msra.mxu0 0
        %1994 = vmatprep.subr.bf16.mxu0 0
        %1995 = vmatpush1.bf16.msra.mxu0 0
        %1996 = vmatprep.subr.bf16.mxu0 0
        %1997 = vmatpush1.bf16.msra.mxu0 0
        %1998 = vmatprep.subr.bf16.mxu0 0
        %1999 = vmatpush1.bf16.msra.mxu0 0
        %2000 = vmatprep.subr.bf16.mxu0 0
        %2001 = vmatpush1.bf16.msra.mxu0 0
        %2002 = vmatprep.mubr.bf16.mxu0 0
        %2003 = vmatmul.mubr.bf16.gmra.mrb[0].mxu0 %v365
        %v2004 = vpop.f32.mrb[0].mxu0
        %v2005 = vadd.f32 0.0, %v2004
        %v2006 = vpop.f32.mrb[0].mxu0
        %v2007 = vpop.f32.mrb[0].mxu0
        %v2008 = vadd.f32 0.0, %v2007
        %v2009 = vpop.f32.mrb[0].mxu0
        %2010 = vmatprep.mubr.bf16.mxu0 0
        %2011 = vmatmul.mubr.bf16.gmra.mrb[0].mxu0 %v368
        %v2012 = vpop.f32.mrb[0].mxu0
        %v2013 = vadd.f32 0.0, %v2012
        %v2014 = vpop.f32.mrb[0].mxu0
        %v2015 = vpop.f32.mrb[0].mxu0
        %v2016 = vadd.f32 0.0, %v2015
        %v2017 = vpop.f32.mrb[0].mxu0
        %2018 = vmatprep.mubr.bf16.mxu0 0
        %2019 = vmatmul.mubr.bf16.gmra.mrb[0].mxu0 %v371
        %v2020 = vpop.f32.mrb[0].mxu0
        %v2021 = vadd.f32 0.0, %v2020
        %v2022 = vpop.f32.mrb[0].mxu0
        %v2023 = vpop.f32.mrb[0].mxu0
        %v2024 = vpop.f32.mrb[0].mxu0
        %2025 = vdwg.mxu0
        %vm2026 = vcmp.gt.f32.partialorder %v2005, 20.0
        %vm2027 = vcmp.gt.f32.partialorder %v2008, 20.0
        %vm2028 = vcmp.gt.f32.partialorder %v2013, 20.0
        %vm2029 = vcmp.gt.f32.partialorder %v2016, 20.0
        %vm2030 = vcmp.gt.f32.partialorder %v2021, 20.0
        %v2031 = vmul.f32 %v2005, 1.442695
        %v2032 = vpow.pop %v2031
        %v2033 = vmul.f32 %v2008, 1.442695
        %v2034 = vpow.pop %v2033
        %v2035 = vmul.f32 %v2013, 1.442695
        %v2036 = vpow.pop %v2035
        %v2037 = vmul.f32 %v2016, 1.442695
        %v2038 = vpow.pop %v2037
        %v2039 = vmul.f32 %v2021, 1.442695
        %v2040 = vpow.pop %v2039
        %v2041 = vadd.f32 %v2032, 1.0
        %v2042 = vlog2.pop %v2041
        %v2043 = vmul.f32 %v2042, 0.6931472
        %v2044 = vmul.f32 -0.5, %v2032
        %v2045 = vadd.f32 %v2044, 1.0
        %v2046 = vmul.f32 %v2045, %v2032
        %v2047 = vand.u32 2147483647, %v2032
        %vm2048 = vcmp.lt.f32.partialorder %v2047, 0.0004427343
        %v2049 = vsel %vm2048, %v2046, %v2043
        %v2050 = vadd.f32 %v2034, 1.0
        %v2051 = vlog2.pop %v2050
        %v2052 = vmul.f32 %v2051, 0.6931472
        %v2053 = vmul.f32 -0.5, %v2034
        %v2054 = vadd.f32 %v2053, 1.0
        %v2055 = vmul.f32 %v2054, %v2034
        %v2056 = vand.u32 2147483647, %v2034
        %vm2057 = vcmp.lt.f32.partialorder %v2056, 0.0004427343
        %v2058 = vsel %vm2057, %v2055, %v2052
        %v2059 = vadd.f32 %v2036, 1.0
        %v2060 = vlog2.pop %v2059
        %v2061 = vmul.f32 %v2060, 0.6931472
        %v2062 = vmul.f32 -0.5, %v2036
        %v2063 = vadd.f32 %v2062, 1.0
        %v2064 = vmul.f32 %v2063, %v2036
        %v2065 = vand.u32 2147483647, %v2036
        %vm2066 = vcmp.lt.f32.partialorder %v2065, 0.0004427343
        %v2067 = vsel %vm2066, %v2064, %v2061
        %v2068 = vadd.f32 %v2038, 1.0
        %v2069 = vlog2.pop %v2068
        %v2070 = vmul.f32 %v2069, 0.6931472
        %v2071 = vmul.f32 -0.5, %v2038
        %v2072 = vadd.f32 %v2071, 1.0
        %v2073 = vmul.f32 %v2072, %v2038
        %v2074 = vand.u32 2147483647, %v2038
        %vm2075 = vcmp.lt.f32.partialorder %v2074, 0.0004427343
        %v2076 = vsel %vm2075, %v2073, %v2070
        %v2077 = vadd.f32 %v2040, 1.0
        %v2078 = vlog2.pop %v2077
        %v2079 = vmul.f32 %v2078, 0.6931472
        %v2080 = vmul.f32 -0.5, %v2040
        %v2081 = vadd.f32 %v2080, 1.0
        %v2082 = vmul.f32 %v2081, %v2040
        %v2083 = vand.u32 2147483647, %v2040
        %vm2084 = vcmp.lt.f32.partialorder %v2083, 0.0004427343
        %v2085 = vsel %vm2084, %v2082, %v2079
        %v2086 = vsel %vm2026, %v2005, %v2049
        %v2087 = vsel %vm2027, %v2008, %v2058
        %v2088 = vsel %vm2028, %v2013, %v2067
        %v2089 = vsel %vm2029, %v2016, %v2076
        %v2090 = vsel %vm2030, %v2021, %v2085
        %v2091 = vpack.c.bf16 %v2087, %v2086
        %v2092 = vpack.c.bf16 %v2089, %v2088
        %v2093 = vpack.c.bf16 %v2090, %v2090
        %v2095 = vsel %vm282, %v2093, 0
        %2097 = vmatprep.subr.bf16.mxu0 0
        %2098 = vmatpush1.bf16.msra.mxu0 %v2091
        %2099 = vmatprep.subr.bf16.mxu0 0
        %2100 = vmatpush1.bf16.msra.mxu0 %v2092
        %2101 = vmatprep.subr.bf16.mxu0 0
        %2102 = vmatpush1.bf16.msra.mxu0 %v2095
        %2103 = vmatprep.subr.bf16.mxu0 0
        %2104 = vmatpush1.bf16.msra.mxu0 0
        %2105 = vmatprep.subr.bf16.mxu0 0
        %2106 = vmatpush1.bf16.msra.mxu0 0
        %2107 = vmatprep.subr.bf16.mxu0 0
        %2108 = vmatpush1.bf16.msra.mxu0 0
        %2109 = vmatprep.subr.bf16.mxu0 0
        %2110 = vmatpush1.bf16.msra.mxu0 0
        %2111 = vmatprep.subr.bf16.mxu0 0
        %2112 = vmatpush1.bf16.msra.mxu0 0
        %2113 = vmatprep.subr.bf16.mxu0 0
        %2114 = vmatpush1.bf16.msra.mxu0 0
        %2115 = vmatprep.subr.bf16.mxu0 0
        %2116 = vmatpush1.bf16.msra.mxu0 0
        %2117 = vmatprep.subr.bf16.mxu0 0
        %2118 = vmatpush1.bf16.msra.mxu0 0
        %2119 = vmatprep.subr.bf16.mxu0 0
        %2120 = vmatpush1.bf16.msra.mxu0 0
        %2121 = vmatprep.subr.bf16.mxu0 0
        %2122 = vmatpush1.bf16.msra.mxu0 0
        %2123 = vmatprep.subr.bf16.mxu0 0
        %2124 = vmatpush1.bf16.msra.mxu0 0
        %2125 = vmatprep.subr.bf16.mxu0 0
        %2126 = vmatpush1.bf16.msra.mxu0 0
        %2127 = vmatprep.subr.bf16.mxu0 0
        %2128 = vmatpush1.bf16.msra.mxu0 0
        %2129 = vmatprep.mubr.bf16.mxu0 0
        %2130 = vmatmul.mubr.bf16.gmra.mrb[0].mxu0 %v514
        %v2131 = vpop.f32.mrb[0].mxu0
        %v2132 = vadd.f32 0.0, %v2131
        %v2133 = vpop.f32.mrb[0].mxu0
        %v2134 = vpop.f32.mrb[0].mxu0
        %v2135 = vadd.f32 0.0, %v2134
        %v2136 = vpop.f32.mrb[0].mxu0
        %2137 = vmatprep.mubr.bf16.mxu0 0
        %2138 = vmatmul.mubr.bf16.gmra.mrb[0].mxu0 %v517
        %v2139 = vpop.f32.mrb[0].mxu0
        %v2140 = vadd.f32 0.0, %v2139
        %v2141 = vpop.f32.mrb[0].mxu0
        %v2142 = vpop.f32.mrb[0].mxu0
        %v2143 = vadd.f32 0.0, %v2142
        %v2144 = vpop.f32.mrb[0].mxu0
        %2145 = vmatprep.mubr.bf16.mxu0 0
        %2146 = vmatmul.mubr.bf16.gmra.mrb[0].mxu0 %v520
        %v2147 = vpop.f32.mrb[0].mxu0
        %v2148 = vadd.f32 0.0, %v2147
        %v2149 = vpop.f32.mrb[0].mxu0
        %v2150 = vpop.f32.mrb[0].mxu0
        %v2151 = vpop.f32.mrb[0].mxu0
        %2152 = vdwg.mxu0
        %vm2153 = vcmp.gt.f32.partialorder %v2132, 20.0
        %vm2154 = vcmp.gt.f32.partialorder %v2135, 20.0
        %vm2155 = vcmp.gt.f32.partialorder %v2140, 20.0
        %vm2156 = vcmp.gt.f32.partialorder %v2143, 20.0
        %vm2157 = vcmp.gt.f32.partialorder %v2148, 20.0
        %v2158 = vmul.f32 %v2132, 1.442695
        %v2159 = vpow.pop %v2158
        %v2160 = vmul.f32 %v2135, 1.442695
        %v2161 = vpow.pop %v2160
        %v2162 = vmul.f32 %v2140, 1.442695
        %v2163 = vpow.pop %v2162
        %v2164 = vmul.f32 %v2143, 1.442695
        %v2165 = vpow.pop %v2164
        %v2166 = vmul.f32 %v2148, 1.442695
        %v2167 = vpow.pop %v2166
        %v2168 = vadd.f32 %v2159, 1.0
        %v2169 = vlog2.pop %v2168
        %v2170 = vmul.f32 %v2169, 0.6931472
        %v2171 = vmul.f32 -0.5, %v2159
        %v2172 = vadd.f32 %v2171, 1.0
        %v2173 = vmul.f32 %v2172, %v2159
        %v2174 = vand.u32 2147483647, %v2159
        %vm2175 = vcmp.lt.f32.partialorder %v2174, 0.0004427343
        %v2176 = vsel %vm2175, %v2173, %v2170
        %v2177 = vadd.f32 %v2161, 1.0
        %v2178 = vlog2.pop %v2177
        %v2179 = vmul.f32 %v2178, 0.6931472
        %v2180 = vmul.f32 -0.5, %v2161
        %v2181 = vadd.f32 %v2180, 1.0
        %v2182 = vmul.f32 %v2181, %v2161
        %v2183 = vand.u32 2147483647, %v2161
        %vm2184 = vcmp.lt.f32.partialorder %v2183, 0.0004427343
        %v2185 = vsel %vm2184, %v2182, %v2179
        %v2186 = vadd.f32 %v2163, 1.0
        %v2187 = vlog2.pop %v2186
        %v2188 = vmul.f32 %v2187, 0.6931472
        %v2189 = vmul.f32 -0.5, %v2163
        %v2190 = vadd.f32 %v2189, 1.0
        %v2191 = vmul.f32 %v2190, %v2163
        %v2192 = vand.u32 2147483647, %v2163
        %vm2193 = vcmp.lt.f32.partialorder %v2192, 0.0004427343
        %v2194 = vsel %vm2193, %v2191, %v2188
        %v2195 = vadd.f32 %v2165, 1.0
        %v2196 = vlog2.pop %v2195
        %v2197 = vmul.f32 %v2196, 0.6931472
        %v2198 = vmul.f32 -0.5, %v2165
        %v2199 = vadd.f32 %v2198, 1.0
        %v2200 = vmul.f32 %v2199, %v2165
        %v2201 = vand.u32 2147483647, %v2165
        %vm2202 = vcmp.lt.f32.partialorder %v2201, 0.0004427343
        %v2203 = vsel %vm2202, %v2200, %v2197
        %v2204 = vadd.f32 %v2167, 1.0
        %v2205 = vlog2.pop %v2204
        %v2206 = vmul.f32 %v2205, 0.6931472
        %v2207 = vmul.f32 -0.5, %v2167
        %v2208 = vadd.f32 %v2207, 1.0
        %v2209 = vmul.f32 %v2208, %v2167
        %v2210 = vand.u32 2147483647, %v2167
        %vm2211 = vcmp.lt.f32.partialorder %v2210, 0.0004427343
        %v2212 = vsel %vm2211, %v2209, %v2206
        %v2213 = vsel %vm2153, %v2132, %v2176
        %v2214 = vsel %vm2154, %v2135, %v2185
        %v2215 = vsel %vm2155, %v2140, %v2194
        %v2216 = vsel %vm2156, %v2143, %v2203
        %v2217 = vsel %vm2157, %v2148, %v2212
        %v2218 = vstv %s1897
        %v2219 = vmul.f32 %v2218, %v250
        %v2220 = vmul.f32 %v2218, %v251
        %v2221 = vmul.f32 %v2218, %v252
        %v2222 = vadd.f32 %v244, %v2219
        %v2223 = vadd.f32 %v245, %v2220
        %v2224 = vadd.f32 %v246, %v2221
        %v2225 = vpack.c.bf16 %v2223, %v2222
        %v2226 = vpack.c.bf16 %v2224, %v2224
        %v2227 = vpack.c.bf16 %v2214, %v2213
        %v2228 = vpack.c.bf16 %v2216, %v2215
        %v2229 = vpack.c.bf16 %v2217, %v2217
        %v2231 = vsel %vm363, %v2225, 0
        %v2234 = vsel %vm363, %v2226, 0
        %v2237 = vsel %vm282, %v2229, 0
        %2239 = vmatprep.subr.bf16.mxu0 0
        %2240 = vmatpush1.bf16.msra.mxu0 %v2227
        %2241 = vmatprep.subr.bf16.mxu0 0
        %2242 = vmatpush1.bf16.msra.mxu0 %v2228
        %2243 = vmatprep.subr.bf16.mxu0 0
        %2244 = vmatpush1.bf16.msra.mxu0 %v2237
        %2245 = vmatprep.subr.bf16.mxu0 0
        %2246 = vmatpush1.bf16.msra.mxu0 0
        %2247 = vmatprep.subr.bf16.mxu0 0
        %2248 = vmatpush1.bf16.msra.mxu0 0
        %2249 = vmatprep.subr.bf16.mxu0 0
        %2250 = vmatpush1.bf16.msra.mxu0 0
        %2251 = vmatprep.subr.bf16.mxu0 0
        %2252 = vmatpush1.bf16.msra.mxu0 0
        %2253 = vmatprep.subr.bf16.mxu0 0
        %2254 = vmatpush1.bf16.msra.mxu0 0
        %2255 = vmatprep.subr.bf16.mxu0 0
        %2256 = vmatpush1.bf16.msra.mxu0 0
        %2257 = vmatprep.subr.bf16.mxu0 0
        %2258 = vmatpush1.bf16.msra.mxu0 0
        %2259 = vmatprep.subr.bf16.mxu0 0
        %2260 = vmatpush1.bf16.msra.mxu0 0
        %2261 = vmatprep.subr.bf16.mxu0 0
        %2262 = vmatpush1.bf16.msra.mxu0 0
        %2263 = vmatprep.subr.bf16.mxu0 0
        %2264 = vmatpush1.bf16.msra.mxu0 0
        %2265 = vmatprep.subr.bf16.mxu0 0
        %2266 = vmatpush1.bf16.msra.mxu0 0
        %2267 = vmatprep.subr.bf16.mxu0 0
        %2268 = vmatpush1.bf16.msra.mxu0 0
        %2269 = vmatprep.subr.bf16.mxu0 0
        %2270 = vmatpush1.bf16.msra.mxu0 0
        %2271 = vmatprep.mubr.bf16.mxu0 0
        %2272 = vmatmul.mubr.bf16.gmra.mrb[0].mxu0 %v2231
        %v2273 = vpop.f32.mrb[0].mxu0
        %v2274 = vadd.f32 0.0, %v2273
        %v2275 = vpop.f32.mrb[0].mxu0
        %v2276 = vpop.f32.mrb[0].mxu0
        %v2277 = vadd.f32 0.0, %v2276
        %v2278 = vpop.f32.mrb[0].mxu0
        %2279 = vmatprep.mubr.bf16.mxu0 0
        %2280 = vmatmul.mubr.bf16.gmra.mrb[0].mxu0 %v2234
        %v2281 = vpop.f32.mrb[0].mxu0
        %v2282 = vadd.f32 0.0, %v2281
        %v2283 = vpop.f32.mrb[0].mxu0
        %v2284 = vpop.f32.mrb[0].mxu0
        %v2285 = vpop.f32.mrb[0].mxu0
        %2286 = vdwg.mxu0
        %v2287 = vadd.f32 %v1894, %v2274
        %v2288 = vadd.f32 %v1895, %v2277
        %v2289 = vadd.f32 %v1896, %v2282
        %s2290 = sld [smem:[#allocation2 + $0x5]]
        %v2291 = vpack.c.bf16 %v2288, %v2287
        %v2292 = vpack.c.bf16 %v2289, %v2289
        %v2294 = vsel %vm282, %v2292, 0
        %2296 = vmatprep.subr.bf16.mxu0 0
        %2297 = vmatpush1.bf16.msra.mxu0 %v2291
        %2298 = vmatprep.subr.bf16.mxu0 0
        %2299 = vmatpush1.bf16.msra.mxu0 %v2294
        %2300 = vmatprep.subr.bf16.mxu0 0
        %2301 = vmatpush1.bf16.msra.mxu0 0
        %2302 = vmatprep.subr.bf16.mxu0 0
        %2303 = vmatpush1.bf16.msra.mxu0 0
        %2304 = vmatprep.subr.bf16.mxu0 0
        %2305 = vmatpush1.bf16.msra.mxu0 0
        %2306 = vmatprep.subr.bf16.mxu0 0
        %2307 = vmatpush1.bf16.msra.mxu0 0
        %2308 = vmatprep.subr.bf16.mxu0 0
        %2309 = vmatpush1.bf16.msra.mxu0 0
        %2310 = vmatprep.subr.bf16.mxu0 0
        %2311 = vmatpush1.bf16.msra.mxu0 0
        %2312 = vmatprep.subr.bf16.mxu0 0
        %2313 = vmatpush1.bf16.msra.mxu0 0
        %2314 = vmatprep.subr.bf16.mxu0 0
        %2315 = vmatpush1.bf16.msra.mxu0 0
        %2316 = vmatprep.subr.bf16.mxu0 0
        %2317 = vmatpush1.bf16.msra.mxu0 0
        %2318 = vmatprep.subr.bf16.mxu0 0
        %2319 = vmatpush1.bf16.msra.mxu0 0
        %2320 = vmatprep.subr.bf16.mxu0 0
        %2321 = vmatpush1.bf16.msra.mxu0 0
        %2322 = vmatprep.subr.bf16.mxu0 0
        %2323 = vmatpush1.bf16.msra.mxu0 0
        %2324 = vmatprep.subr.bf16.mxu0 0
        %2325 = vmatpush1.bf16.msra.mxu0 0
        %2326 = vmatprep.subr.bf16.mxu0 0
        %2327 = vmatpush1.bf16.msra.mxu0 0
        %2328 = vmatprep.mubr.bf16.mxu0 0
        %2329 = vmatmul.mubr.bf16.gmra.mrb[0].mxu0 %v274
        %v2330 = vpop.f32.mrb[0].mxu0
        %v2331 = vadd.f32 0.0, %v2330
        %v2332 = vpop.f32.mrb[0].mxu0
        %v2333 = vpop.f32.mrb[0].mxu0
        %v2334 = vadd.f32 0.0, %v2333
        %v2335 = vpop.f32.mrb[0].mxu0
        %2336 = vmatprep.mubr.bf16.mxu0 0
        %2337 = vmatmul.mubr.bf16.gmra.mrb[0].mxu0 %v277
        %v2338 = vpop.f32.mrb[0].mxu0
        %v2339 = vadd.f32 0.0, %v2338
        %v2340 = vpop.f32.mrb[0].mxu0
        %v2341 = vpop.f32.mrb[0].mxu0
        %v2342 = vadd.f32 0.0, %v2341
        %v2343 = vpop.f32.mrb[0].mxu0
        %2344 = vmatprep.mubr.bf16.mxu0 0
        %2345 = vmatmul.mubr.bf16.gmra.mrb[0].mxu0 %v280
        %v2346 = vpop.f32.mrb[0].mxu0
        %v2347 = vadd.f32 0.0, %v2346
        %v2348 = vpop.f32.mrb[0].mxu0
        %v2349 = vpop.f32.mrb[0].mxu0
        %v2350 = vpop.f32.mrb[0].mxu0
        %2351 = vdwg.mxu0
        %v2352 = vtanh.pop %v2331
        %v2353 = vtanh.pop %v2334
        %v2354 = vtanh.pop %v2339
        %v2355 = vtanh.pop %v2342
        %v2356 = vtanh.pop %v2347
        %v2357 = vpack.c.bf16 %v2353, %v2352
        %v2358 = vpack.c.bf16 %v2355, %v2354
        %v2359 = vpack.c.bf16 %v2356, %v2356
        %v2361 = vsel %vm282, %v2359, 0
        %2363 = vmatprep.subr.bf16.mxu0 0
        %2364 = vmatpush1.bf16.msra.mxu0 %v2357
        %2365 = vmatprep.subr.bf16.mxu0 0
        %2366 = vmatpush1.bf16.msra.mxu0 %v2358
        %2367 = vmatprep.subr.bf16.mxu0 0
        %2368 = vmatpush1.bf16.msra.mxu0 %v2361
        %2369 = vmatprep.subr.bf16.mxu0 0
        %2370 = vmatpush1.bf16.msra.mxu0 0
        %2371 = vmatprep.subr.bf16.mxu0 0
        %2372 = vmatpush1.bf16.msra.mxu0 0
        %2373 = vmatprep.subr.bf16.mxu0 0
        %2374 = vmatpush1.bf16.msra.mxu0 0
        %2375 = vmatprep.subr.bf16.mxu0 0
        %2376 = vmatpush1.bf16.msra.mxu0 0
        %2377 = vmatprep.subr.bf16.mxu0 0
        %2378 = vmatpush1.bf16.msra.mxu0 0
        %2379 = vmatprep.subr.bf16.mxu0 0
        %2380 = vmatpush1.bf16.msra.mxu0 0
        %2381 = vmatprep.subr.bf16.mxu0 0
        %2382 = vmatpush1.bf16.msra.mxu0 0
        %2383 = vmatprep.subr.bf16.mxu0 0
        %2384 = vmatpush1.bf16.msra.mxu0 0
        %2385 = vmatprep.subr.bf16.mxu0 0
        %2386 = vmatpush1.bf16.msra.mxu0 0
        %2387 = vmatprep.subr.bf16.mxu0 0
        %2388 = vmatpush1.bf16.msra.mxu0 0
        %2389 = vmatprep.subr.bf16.mxu0 0
        %2390 = vmatpush1.bf16.msra.mxu0 0
        %2391 = vmatprep.subr.bf16.mxu0 0
        %2392 = vmatpush1.bf16.msra.mxu0 0
        %2393 = vmatprep.subr.bf16.mxu0 0
        %2394 = vmatpush1.bf16.msra.mxu0 0
        %2395 = vmatprep.mubr.bf16.mxu0 0
        %2396 = vmatmul.mubr.bf16.gmra.mrb[0].mxu0 %v365
        %v2397 = vpop.f32.mrb[0].mxu0
        %v2398 = vadd.f32 0.0, %v2397
        %v2399 = vpop.f32.mrb[0].mxu0
        %v2400 = vpop.f32.mrb[0].mxu0
        %v2401 = vadd.f32 0.0, %v2400
        %v2402 = vpop.f32.mrb[0].mxu0
        %2403 = vmatprep.mubr.bf16.mxu0 0
        %2404 = vmatmul.mubr.bf16.gmra.mrb[0].mxu0 %v368
        %v2405 = vpop.f32.mrb[0].mxu0
        %v2406 = vadd.f32 0.0, %v2405
        %v2407 = vpop.f32.mrb[0].mxu0
        %v2408 = vpop.f32.mrb[0].mxu0
        %v2409 = vadd.f32 0.0, %v2408
        %v2410 = vpop.f32.mrb[0].mxu0
        %2411 = vmatprep.mubr.bf16.mxu0 0
        %2412 = vmatmul.mubr.bf16.gmra.mrb[0].mxu0 %v371
        %v2413 = vpop.f32.mrb[0].mxu0
        %v2414 = vadd.f32 0.0, %v2413
        %v2415 = vpop.f32.mrb[0].mxu0
        %v2416 = vpop.f32.mrb[0].mxu0
        %v2417 = vpop.f32.mrb[0].mxu0
        %2418 = vdwg.mxu0
        %vm2419 = vcmp.gt.f32.partialorder %v2398, 20.0
        %vm2420 = vcmp.gt.f32.partialorder %v2401, 20.0
        %vm2421 = vcmp.gt.f32.partialorder %v2406, 20.0
        %vm2422 = vcmp.gt.f32.partialorder %v2409, 20.0
        %vm2423 = vcmp.gt.f32.partialorder %v2414, 20.0
        %v2424 = vmul.f32 %v2398, 1.442695
        %v2425 = vpow.pop %v2424
        %v2426 = vmul.f32 %v2401, 1.442695
        %v2427 = vpow.pop %v2426
        %v2428 = vmul.f32 %v2406, 1.442695
        %v2429 = vpow.pop %v2428
        %v2430 = vmul.f32 %v2409, 1.442695
        %v2431 = vpow.pop %v2430
        %v2432 = vmul.f32 %v2414, 1.442695
        %v2433 = vpow.pop %v2432
        %v2434 = vadd.f32 %v2425, 1.0
        %v2435 = vlog2.pop %v2434
        %v2436 = vmul.f32 %v2435, 0.6931472
        %v2437 = vmul.f32 -0.5, %v2425
        %v2438 = vadd.f32 %v2437, 1.0
        %v2439 = vmul.f32 %v2438, %v2425
        %v2440 = vand.u32 2147483647, %v2425
        %vm2441 = vcmp.lt.f32.partialorder %v2440, 0.0004427343
        %v2442 = vsel %vm2441, %v2439, %v2436
        %v2443 = vadd.f32 %v2427, 1.0
        %v2444 = vlog2.pop %v2443
        %v2445 = vmul.f32 %v2444, 0.6931472
        %v2446 = vmul.f32 -0.5, %v2427
        %v2447 = vadd.f32 %v2446, 1.0
        %v2448 = vmul.f32 %v2447, %v2427
        %v2449 = vand.u32 2147483647, %v2427
        %vm2450 = vcmp.lt.f32.partialorder %v2449, 0.0004427343
        %v2451 = vsel %vm2450, %v2448, %v2445
        %v2452 = vadd.f32 %v2429, 1.0
        %v2453 = vlog2.pop %v2452
        %v2454 = vmul.f32 %v2453, 0.6931472
        %v2455 = vmul.f32 -0.5, %v2429
        %v2456 = vadd.f32 %v2455, 1.0
        %v2457 = vmul.f32 %v2456, %v2429
        %v2458 = vand.u32 2147483647, %v2429
        %vm2459 = vcmp.lt.f32.partialorder %v2458, 0.0004427343
        %v2460 = vsel %vm2459, %v2457, %v2454
        %v2461 = vadd.f32 %v2431, 1.0
        %v2462 = vlog2.pop %v2461
        %v2463 = vmul.f32 %v2462, 0.6931472
        %v2464 = vmul.f32 -0.5, %v2431
        %v2465 = vadd.f32 %v2464, 1.0
        %v2466 = vmul.f32 %v2465, %v2431
        %v2467 = vand.u32 2147483647, %v2431
        %vm2468 = vcmp.lt.f32.partialorder %v2467, 0.0004427343
        %v2469 = vsel %vm2468, %v2466, %v2463
        %v2470 = vadd.f32 %v2433, 1.0
        %v2471 = vlog2.pop %v2470
        %v2472 = vmul.f32 %v2471, 0.6931472
        %v2473 = vmul.f32 -0.5, %v2433
        %v2474 = vadd.f32 %v2473, 1.0
        %v2475 = vmul.f32 %v2474, %v2433
        %v2476 = vand.u32 2147483647, %v2433
        %vm2477 = vcmp.lt.f32.partialorder %v2476, 0.0004427343
        %v2478 = vsel %vm2477, %v2475, %v2472
        %v2479 = vsel %vm2419, %v2398, %v2442
        %v2480 = vsel %vm2420, %v2401, %v2451
        %v2481 = vsel %vm2421, %v2406, %v2460
        %v2482 = vsel %vm2422, %v2409, %v2469
        %v2483 = vsel %vm2423, %v2414, %v2478
        %v2484 = vpack.c.bf16 %v2480, %v2479
        %v2485 = vpack.c.bf16 %v2482, %v2481
        %v2486 = vpack.c.bf16 %v2483, %v2483
        %v2488 = vsel %vm282, %v2486, 0
        %2490 = vmatprep.subr.bf16.mxu0 0
        %2491 = vmatpush1.bf16.msra.mxu0 %v2484
        %2492 = vmatprep.subr.bf16.mxu0 0
        %2493 = vmatpush1.bf16.msra.mxu0 %v2485
        %2494 = vmatprep.subr.bf16.mxu0 0
        %2495 = vmatpush1.bf16.msra.mxu0 %v2488
        %2496 = vmatprep.subr.bf16.mxu0 0
        %2497 = vmatpush1.bf16.msra.mxu0 0
        %2498 = vmatprep.subr.bf16.mxu0 0
        %2499 = vmatpush1.bf16.msra.mxu0 0
        %2500 = vmatprep.subr.bf16.mxu0 0
        %2501 = vmatpush1.bf16.msra.mxu0 0
        %2502 = vmatprep.subr.bf16.mxu0 0
        %2503 = vmatpush1.bf16.msra.mxu0 0
        %2504 = vmatprep.subr.bf16.mxu0 0
        %2505 = vmatpush1.bf16.msra.mxu0 0
        %2506 = vmatprep.subr.bf16.mxu0 0
        %2507 = vmatpush1.bf16.msra.mxu0 0
        %2508 = vmatprep.subr.bf16.mxu0 0
        %2509 = vmatpush1.bf16.msra.mxu0 0
        %2510 = vmatprep.subr.bf16.mxu0 0
        %2511 = vmatpush1.bf16.msra.mxu0 0
        %2512 = vmatprep.subr.bf16.mxu0 0
        %2513 = vmatpush1.bf16.msra.mxu0 0
        %2514 = vmatprep.subr.bf16.mxu0 0
        %2515 = vmatpush1.bf16.msra.mxu0 0
        %2516 = vmatprep.subr.bf16.mxu0 0
        %2517 = vmatpush1.bf16.msra.mxu0 0
        %2518 = vmatprep.subr.bf16.mxu0 0
        %2519 = vmatpush1.bf16.msra.mxu0 0
        %2520 = vmatprep.subr.bf16.mxu0 0
        %2521 = vmatpush1.bf16.msra.mxu0 0
        %2522 = vmatprep.mubr.bf16.mxu0 0
        %2523 = vmatmul.mubr.bf16.gmra.mrb[0].mxu0 %v514
        %v2524 = vpop.f32.mrb[0].mxu0
        %v2525 = vadd.f32 0.0, %v2524
        %v2526 = vpop.f32.mrb[0].mxu0
        %v2527 = vpop.f32.mrb[0].mxu0
        %v2528 = vadd.f32 0.0, %v2527
        %v2529 = vpop.f32.mrb[0].mxu0
        %2530 = vmatprep.mubr.bf16.mxu0 0
        %2531 = vmatmul.mubr.bf16.gmra.mrb[0].mxu0 %v517
        %v2532 = vpop.f32.mrb[0].mxu0
        %v2533 = vadd.f32 0.0, %v2532
        %v2534 = vpop.f32.mrb[0].mxu0
        %v2535 = vpop.f32.mrb[0].mxu0
        %v2536 = vadd.f32 0.0, %v2535
        %v2537 = vpop.f32.mrb[0].mxu0
        %2538 = vmatprep.mubr.bf16.mxu0 0
        %2539 = vmatmul.mubr.bf16.gmra.mrb[0].mxu0 %v520
        %v2540 = vpop.f32.mrb[0].mxu0
        %v2541 = vadd.f32 0.0, %v2540
        %v2542 = vpop.f32.mrb[0].mxu0
        %v2543 = vpop.f32.mrb[0].mxu0
        %v2544 = vpop.f32.mrb[0].mxu0
        %2545 = vdwg.mxu0
        %vm2546 = vcmp.gt.f32.partialorder %v2525, 20.0
        %vm2547 = vcmp.gt.f32.partialorder %v2528, 20.0
        %vm2548 = vcmp.gt.f32.partialorder %v2533, 20.0
        %vm2549 = vcmp.gt.f32.partialorder %v2536, 20.0
        %vm2550 = vcmp.gt.f32.partialorder %v2541, 20.0
        %v2551 = vmul.f32 %v2525, 1.442695
        %v2552 = vpow.pop %v2551
        %v2553 = vmul.f32 %v2528, 1.442695
        %v2554 = vpow.pop %v2553
        %v2555 = vmul.f32 %v2533, 1.442695
        %v2556 = vpow.pop %v2555
        %v2557 = vmul.f32 %v2536, 1.442695
        %v2558 = vpow.pop %v2557
        %v2559 = vmul.f32 %v2541, 1.442695
        %v2560 = vpow.pop %v2559
        %v2561 = vadd.f32 %v2552, 1.0
        %v2562 = vlog2.pop %v2561
        %v2563 = vmul.f32 %v2562, 0.6931472
        %v2564 = vmul.f32 -0.5, %v2552
        %v2565 = vadd.f32 %v2564, 1.0
        %v2566 = vmul.f32 %v2565, %v2552
        %v2567 = vand.u32 2147483647, %v2552
        %vm2568 = vcmp.lt.f32.partialorder %v2567, 0.0004427343
        %v2569 = vsel %vm2568, %v2566, %v2563
        %v2570 = vadd.f32 %v2554, 1.0
        %v2571 = vlog2.pop %v2570
        %v2572 = vmul.f32 %v2571, 0.6931472
        %v2573 = vmul.f32 -0.5, %v2554
        %v2574 = vadd.f32 %v2573, 1.0
        %v2575 = vmul.f32 %v2574, %v2554
        %v2576 = vand.u32 2147483647, %v2554
        %vm2577 = vcmp.lt.f32.partialorder %v2576, 0.0004427343
        %v2578 = vsel %vm2577, %v2575, %v2572
        %v2579 = vadd.f32 %v2556, 1.0
        %v2580 = vlog2.pop %v2579
        %v2581 = vmul.f32 %v2580, 0.6931472
        %v2582 = vmul.f32 -0.5, %v2556
        %v2583 = vadd.f32 %v2582, 1.0
        %v2584 = vmul.f32 %v2583, %v2556
        %v2585 = vand.u32 2147483647, %v2556
        %vm2586 = vcmp.lt.f32.partialorder %v2585, 0.0004427343
        %v2587 = vsel %vm2586, %v2584, %v2581
        %v2588 = vadd.f32 %v2558, 1.0
        %v2589 = vlog2.pop %v2588
        %v2590 = vmul.f32 %v2589, 0.6931472
        %v2591 = vmul.f32 -0.5, %v2558
        %v2592 = vadd.f32 %v2591, 1.0
        %v2593 = vmul.f32 %v2592, %v2558
        %v2594 = vand.u32 2147483647, %v2558
        %vm2595 = vcmp.lt.f32.partialorder %v2594, 0.0004427343
        %v2596 = vsel %vm2595, %v2593, %v2590
        %v2597 = vadd.f32 %v2560, 1.0
        %v2598 = vlog2.pop %v2597
        %v2599 = vmul.f32 %v2598, 0.6931472
        %v2600 = vmul.f32 -0.5, %v2560
        %v2601 = vadd.f32 %v2600, 1.0
        %v2602 = vmul.f32 %v2601, %v2560
        %v2603 = vand.u32 2147483647, %v2560
        %vm2604 = vcmp.lt.f32.partialorder %v2603, 0.0004427343
        %v2605 = vsel %vm2604, %v2602, %v2599
        %v2606 = vsel %vm2546, %v2525, %v2569
        %v2607 = vsel %vm2547, %v2528, %v2578
        %v2608 = vsel %vm2548, %v2533, %v2587
        %v2609 = vsel %vm2549, %v2536, %v2596
        %v2610 = vsel %vm2550, %v2541, %v2605
        %v2611 = vstv %s2290
        %v2612 = vmul.f32 %v2611, %v250
        %v2613 = vmul.f32 %v2611, %v251
        %v2614 = vmul.f32 %v2611, %v252
        %v2615 = vadd.f32 %v244, %v2612
        %v2616 = vadd.f32 %v245, %v2613
        %v2617 = vadd.f32 %v246, %v2614
        %v2618 = vpack.c.bf16 %v2616, %v2615
        %v2619 = vpack.c.bf16 %v2617, %v2617
        %v2620 = vpack.c.bf16 %v2607, %v2606
        %v2621 = vpack.c.bf16 %v2609, %v2608
        %v2622 = vpack.c.bf16 %v2610, %v2610
        %v2624 = vsel %vm363, %v2618, 0
        %v2627 = vsel %vm363, %v2619, 0
        %v2630 = vsel %vm282, %v2622, 0
        %2632 = vmatprep.subr.bf16.mxu0 0
        %2633 = vmatpush1.bf16.msra.mxu0 %v2620
        %2634 = vmatprep.subr.bf16.mxu0 0
        %2635 = vmatpush1.bf16.msra.mxu0 %v2621
        %2636 = vmatprep.subr.bf16.mxu0 0
        %2637 = vmatpush1.bf16.msra.mxu0 %v2630
        %2638 = vmatprep.subr.bf16.mxu0 0
        %2639 = vmatpush1.bf16.msra.mxu0 0
        %2640 = vmatprep.subr.bf16.mxu0 0
        %2641 = vmatpush1.bf16.msra.mxu0 0
        %2642 = vmatprep.subr.bf16.mxu0 0
        %2643 = vmatpush1.bf16.msra.mxu0 0
        %2644 = vmatprep.subr.bf16.mxu0 0
        %2645 = vmatpush1.bf16.msra.mxu0 0
        %2646 = vmatprep.subr.bf16.mxu0 0
        %2647 = vmatpush1.bf16.msra.mxu0 0
        %2648 = vmatprep.subr.bf16.mxu0 0
        %2649 = vmatpush1.bf16.msra.mxu0 0
        %2650 = vmatprep.subr.bf16.mxu0 0
        %2651 = vmatpush1.bf16.msra.mxu0 0
        %2652 = vmatprep.subr.bf16.mxu0 0
        %2653 = vmatpush1.bf16.msra.mxu0 0
        %2654 = vmatprep.subr.bf16.mxu0 0
        %2655 = vmatpush1.bf16.msra.mxu0 0
        %2656 = vmatprep.subr.bf16.mxu0 0
        %2657 = vmatpush1.bf16.msra.mxu0 0
        %2658 = vmatprep.subr.bf16.mxu0 0
        %2659 = vmatpush1.bf16.msra.mxu0 0
        %2660 = vmatprep.subr.bf16.mxu0 0
        %2661 = vmatpush1.bf16.msra.mxu0 0
        %2662 = vmatprep.subr.bf16.mxu0 0
        %2663 = vmatpush1.bf16.msra.mxu0 0
        %2664 = vmatprep.mubr.bf16.mxu0 0
        %2665 = vmatmul.mubr.bf16.gmra.mrb[0].mxu0 %v2624
        %v2666 = vpop.f32.mrb[0].mxu0
        %v2667 = vadd.f32 0.0, %v2666
        %v2668 = vpop.f32.mrb[0].mxu0
        %v2669 = vpop.f32.mrb[0].mxu0
        %v2670 = vadd.f32 0.0, %v2669
        %v2671 = vpop.f32.mrb[0].mxu0
        %2672 = vmatprep.mubr.bf16.mxu0 0
        %2673 = vmatmul.mubr.bf16.gmra.mrb[0].mxu0 %v2627
        %v2674 = vpop.f32.mrb[0].mxu0
        %v2675 = vadd.f32 0.0, %v2674
        %v2676 = vpop.f32.mrb[0].mxu0
        %v2677 = vpop.f32.mrb[0].mxu0
        %v2678 = vpop.f32.mrb[0].mxu0
        %2679 = vdwg.mxu0
        %v2680 = vadd.f32 %v2287, %v2667
        %v2681 = vadd.f32 %v2288, %v2670
        %v2682 = vadd.f32 %v2289, %v2675
        %s2683 = sld [smem:[#allocation2 + $0x6]]
        %v2684 = vpack.c.bf16 %v2681, %v2680
        %v2685 = vpack.c.bf16 %v2682, %v2682
        %v2687 = vsel %vm282, %v2685, 0
        %2689 = vmatprep.subr.bf16.mxu0 0
        %2690 = vmatpush1.bf16.msra.mxu0 %v2684
        %2691 = vmatprep.subr.bf16.mxu0 0
        %2692 = vmatpush1.bf16.msra.mxu0 %v2687
        %2693 = vmatprep.subr.bf16.mxu0 0
        %2694 = vmatpush1.bf16.msra.mxu0 0
        %2695 = vmatprep.subr.bf16.mxu0 0
        %2696 = vmatpush1.bf16.msra.mxu0 0
        %2697 = vmatprep.subr.bf16.mxu0 0
        %2698 = vmatpush1.bf16.msra.mxu0 0
        %2699 = vmatprep.subr.bf16.mxu0 0
        %2700 = vmatpush1.bf16.msra.mxu0 0
        %2701 = vmatprep.subr.bf16.mxu0 0
        %2702 = vmatpush1.bf16.msra.mxu0 0
        %2703 = vmatprep.subr.bf16.mxu0 0
        %2704 = vmatpush1.bf16.msra.mxu0 0
        %2705 = vmatprep.subr.bf16.mxu0 0
        %2706 = vmatpush1.bf16.msra.mxu0 0
        %2707 = vmatprep.subr.bf16.mxu0 0
        %2708 = vmatpush1.bf16.msra.mxu0 0
        %2709 = vmatprep.subr.bf16.mxu0 0
        %2710 = vmatpush1.bf16.msra.mxu0 0
        %2711 = vmatprep.subr.bf16.mxu0 0
        %2712 = vmatpush1.bf16.msra.mxu0 0
        %2713 = vmatprep.subr.bf16.mxu0 0
        %2714 = vmatpush1.bf16.msra.mxu0 0
        %2715 = vmatprep.subr.bf16.mxu0 0
        %2716 = vmatpush1.bf16.msra.mxu0 0
        %2717 = vmatprep.subr.bf16.mxu0 0
        %2718 = vmatpush1.bf16.msra.mxu0 0
        %2719 = vmatprep.subr.bf16.mxu0 0
        %2720 = vmatpush1.bf16.msra.mxu0 0
        %2721 = vmatprep.mubr.bf16.mxu0 0
        %2722 = vmatmul.mubr.bf16.gmra.mrb[0].mxu0 %v274
        %v2723 = vpop.f32.mrb[0].mxu0
        %v2724 = vadd.f32 0.0, %v2723
        %v2725 = vpop.f32.mrb[0].mxu0
        %v2726 = vpop.f32.mrb[0].mxu0
        %v2727 = vadd.f32 0.0, %v2726
        %v2728 = vpop.f32.mrb[0].mxu0
        %2729 = vmatprep.mubr.bf16.mxu0 0
        %2730 = vmatmul.mubr.bf16.gmra.mrb[0].mxu0 %v277
        %v2731 = vpop.f32.mrb[0].mxu0
        %v2732 = vadd.f32 0.0, %v2731
        %v2733 = vpop.f32.mrb[0].mxu0
        %v2734 = vpop.f32.mrb[0].mxu0
        %v2735 = vadd.f32 0.0, %v2734
        %v2736 = vpop.f32.mrb[0].mxu0
        %2737 = vmatprep.mubr.bf16.mxu0 0
        %2738 = vmatmul.mubr.bf16.gmra.mrb[0].mxu0 %v280
        %v2739 = vpop.f32.mrb[0].mxu0
        %v2740 = vadd.f32 0.0, %v2739
        %v2741 = vpop.f32.mrb[0].mxu0
        %v2742 = vpop.f32.mrb[0].mxu0
        %v2743 = vpop.f32.mrb[0].mxu0
        %2744 = vdwg.mxu0
        %v2745 = vtanh.pop %v2724
        %v2746 = vtanh.pop %v2727
        %v2747 = vtanh.pop %v2732
        %v2748 = vtanh.pop %v2735
        %v2749 = vtanh.pop %v2740
        %v2750 = vpack.c.bf16 %v2746, %v2745
        %v2751 = vpack.c.bf16 %v2748, %v2747
        %v2752 = vpack.c.bf16 %v2749, %v2749
        %v2754 = vsel %vm282, %v2752, 0
        %2756 = vmatprep.subr.bf16.mxu0 0
        %2757 = vmatpush1.bf16.msra.mxu0 %v2750
        %2758 = vmatprep.subr.bf16.mxu0 0
        %2759 = vmatpush1.bf16.msra.mxu0 %v2751
        %2760 = vmatprep.subr.bf16.mxu0 0
        %2761 = vmatpush1.bf16.msra.mxu0 %v2754
        %2762 = vmatprep.subr.bf16.mxu0 0
        %2763 = vmatpush1.bf16.msra.mxu0 0
        %2764 = vmatprep.subr.bf16.mxu0 0
        %2765 = vmatpush1.bf16.msra.mxu0 0
        %2766 = vmatprep.subr.bf16.mxu0 0
        %2767 = vmatpush1.bf16.msra.mxu0 0
        %2768 = vmatprep.subr.bf16.mxu0 0
        %2769 = vmatpush1.bf16.msra.mxu0 0
        %2770 = vmatprep.subr.bf16.mxu0 0
        %2771 = vmatpush1.bf16.msra.mxu0 0
        %2772 = vmatprep.subr.bf16.mxu0 0
        %2773 = vmatpush1.bf16.msra.mxu0 0
        %2774 = vmatprep.subr.bf16.mxu0 0
        %2775 = vmatpush1.bf16.msra.mxu0 0
        %2776 = vmatprep.subr.bf16.mxu0 0
        %2777 = vmatpush1.bf16.msra.mxu0 0
        %2778 = vmatprep.subr.bf16.mxu0 0
        %2779 = vmatpush1.bf16.msra.mxu0 0
        %2780 = vmatprep.subr.bf16.mxu0 0
        %2781 = vmatpush1.bf16.msra.mxu0 0
        %2782 = vmatprep.subr.bf16.mxu0 0
        %2783 = vmatpush1.bf16.msra.mxu0 0
        %2784 = vmatprep.subr.bf16.mxu0 0
        %2785 = vmatpush1.bf16.msra.mxu0 0
        %2786 = vmatprep.subr.bf16.mxu0 0
        %2787 = vmatpush1.bf16.msra.mxu0 0
        %2788 = vmatprep.mubr.bf16.mxu0 0
        %2789 = vmatmul.mubr.bf16.gmra.mrb[0].mxu0 %v365
        %v2790 = vpop.f32.mrb[0].mxu0
        %v2791 = vadd.f32 0.0, %v2790
        %v2792 = vpop.f32.mrb[0].mxu0
        %v2793 = vpop.f32.mrb[0].mxu0
        %v2794 = vadd.f32 0.0, %v2793
        %v2795 = vpop.f32.mrb[0].mxu0
        %2796 = vmatprep.mubr.bf16.mxu0 0
        %2797 = vmatmul.mubr.bf16.gmra.mrb[0].mxu0 %v368
        %v2798 = vpop.f32.mrb[0].mxu0
        %v2799 = vadd.f32 0.0, %v2798
        %v2800 = vpop.f32.mrb[0].mxu0
        %v2801 = vpop.f32.mrb[0].mxu0
        %v2802 = vadd.f32 0.0, %v2801
        %v2803 = vpop.f32.mrb[0].mxu0
        %2804 = vmatprep.mubr.bf16.mxu0 0
        %2805 = vmatmul.mubr.bf16.gmra.mrb[0].mxu0 %v371
        %v2806 = vpop.f32.mrb[0].mxu0
        %v2807 = vadd.f32 0.0, %v2806
        %v2808 = vpop.f32.mrb[0].mxu0
        %v2809 = vpop.f32.mrb[0].mxu0
        %v2810 = vpop.f32.mrb[0].mxu0
        %2811 = vdwg.mxu0
        %vm2812 = vcmp.gt.f32.partialorder %v2791, 20.0
        %vm2813 = vcmp.gt.f32.partialorder %v2794, 20.0
        %vm2814 = vcmp.gt.f32.partialorder %v2799, 20.0
        %vm2815 = vcmp.gt.f32.partialorder %v2802, 20.0
        %vm2816 = vcmp.gt.f32.partialorder %v2807, 20.0
        %v2817 = vmul.f32 %v2791, 1.442695
        %v2818 = vpow.pop %v2817
        %v2819 = vmul.f32 %v2794, 1.442695
        %v2820 = vpow.pop %v2819
        %v2821 = vmul.f32 %v2799, 1.442695
        %v2822 = vpow.pop %v2821
        %v2823 = vmul.f32 %v2802, 1.442695
        %v2824 = vpow.pop %v2823
        %v2825 = vmul.f32 %v2807, 1.442695
        %v2826 = vpow.pop %v2825
        %v2827 = vadd.f32 %v2818, 1.0
        %v2828 = vlog2.pop %v2827
        %v2829 = vmul.f32 %v2828, 0.6931472
        %v2830 = vmul.f32 -0.5, %v2818
        %v2831 = vadd.f32 %v2830, 1.0
        %v2832 = vmul.f32 %v2831, %v2818
        %v2833 = vand.u32 2147483647, %v2818
        %vm2834 = vcmp.lt.f32.partialorder %v2833, 0.0004427343
        %v2835 = vsel %vm2834, %v2832, %v2829
        %v2836 = vadd.f32 %v2820, 1.0
        %v2837 = vlog2.pop %v2836
        %v2838 = vmul.f32 %v2837, 0.6931472
        %v2839 = vmul.f32 -0.5, %v2820
        %v2840 = vadd.f32 %v2839, 1.0
        %v2841 = vmul.f32 %v2840, %v2820
        %v2842 = vand.u32 2147483647, %v2820
        %vm2843 = vcmp.lt.f32.partialorder %v2842, 0.0004427343
        %v2844 = vsel %vm2843, %v2841, %v2838
        %v2845 = vadd.f32 %v2822, 1.0
        %v2846 = vlog2.pop %v2845
        %v2847 = vmul.f32 %v2846, 0.6931472
        %v2848 = vmul.f32 -0.5, %v2822
        %v2849 = vadd.f32 %v2848, 1.0
        %v2850 = vmul.f32 %v2849, %v2822
        %v2851 = vand.u32 2147483647, %v2822
        %vm2852 = vcmp.lt.f32.partialorder %v2851, 0.0004427343
        %v2853 = vsel %vm2852, %v2850, %v2847
        %v2854 = vadd.f32 %v2824, 1.0
        %v2855 = vlog2.pop %v2854
        %v2856 = vmul.f32 %v2855, 0.6931472
        %v2857 = vmul.f32 -0.5, %v2824
        %v2858 = vadd.f32 %v2857, 1.0
        %v2859 = vmul.f32 %v2858, %v2824
        %v2860 = vand.u32 2147483647, %v2824
        %vm2861 = vcmp.lt.f32.partialorder %v2860, 0.0004427343
        %v2862 = vsel %vm2861, %v2859, %v2856
        %v2863 = vadd.f32 %v2826, 1.0
        %v2864 = vlog2.pop %v2863
        %v2865 = vmul.f32 %v2864, 0.6931472
        %v2866 = vmul.f32 -0.5, %v2826
        %v2867 = vadd.f32 %v2866, 1.0
        %v2868 = vmul.f32 %v2867, %v2826
        %v2869 = vand.u32 2147483647, %v2826
        %vm2870 = vcmp.lt.f32.partialorder %v2869, 0.0004427343
        %v2871 = vsel %vm2870, %v2868, %v2865
        %v2872 = vsel %vm2812, %v2791, %v2835
        %v2873 = vsel %vm2813, %v2794, %v2844
        %v2874 = vsel %vm2814, %v2799, %v2853
        %v2875 = vsel %vm2815, %v2802, %v2862
        %v2876 = vsel %vm2816, %v2807, %v2871
        %v2877 = vpack.c.bf16 %v2873, %v2872
        %v2878 = vpack.c.bf16 %v2875, %v2874
        %v2879 = vpack.c.bf16 %v2876, %v2876
        %v2881 = vsel %vm282, %v2879, 0
        %2883 = vmatprep.subr.bf16.mxu0 0
        %2884 = vmatpush1.bf16.msra.mxu0 %v2877
        %2885 = vmatprep.subr.bf16.mxu0 0
        %2886 = vmatpush1.bf16.msra.mxu0 %v2878
        %2887 = vmatprep.subr.bf16.mxu0 0
        %2888 = vmatpush1.bf16.msra.mxu0 %v2881
        %2889 = vmatprep.subr.bf16.mxu0 0
        %2890 = vmatpush1.bf16.msra.mxu0 0
        %2891 = vmatprep.subr.bf16.mxu0 0
        %2892 = vmatpush1.bf16.msra.mxu0 0
        %2893 = vmatprep.subr.bf16.mxu0 0
        %2894 = vmatpush1.bf16.msra.mxu0 0
        %2895 = vmatprep.subr.bf16.mxu0 0
        %2896 = vmatpush1.bf16.msra.mxu0 0
        %2897 = vmatprep.subr.bf16.mxu0 0
        %2898 = vmatpush1.bf16.msra.mxu0 0
        %2899 = vmatprep.subr.bf16.mxu0 0
        %2900 = vmatpush1.bf16.msra.mxu0 0
        %2901 = vmatprep.subr.bf16.mxu0 0
        %2902 = vmatpush1.bf16.msra.mxu0 0
        %2903 = vmatprep.subr.bf16.mxu0 0
        %2904 = vmatpush1.bf16.msra.mxu0 0
        %2905 = vmatprep.subr.bf16.mxu0 0
        %2906 = vmatpush1.bf16.msra.mxu0 0
        %2907 = vmatprep.subr.bf16.mxu0 0
        %2908 = vmatpush1.bf16.msra.mxu0 0
        %2909 = vmatprep.subr.bf16.mxu0 0
        %2910 = vmatpush1.bf16.msra.mxu0 0
        %2911 = vmatprep.subr.bf16.mxu0 0
        %2912 = vmatpush1.bf16.msra.mxu0 0
        %2913 = vmatprep.subr.bf16.mxu0 0
        %2914 = vmatpush1.bf16.msra.mxu0 0
        %2915 = vmatprep.mubr.bf16.mxu0 0
        %2916 = vmatmul.mubr.bf16.gmra.mrb[0].mxu0 %v514
        %v2917 = vpop.f32.mrb[0].mxu0
        %v2918 = vadd.f32 0.0, %v2917
        %v2919 = vpop.f32.mrb[0].mxu0
        %v2920 = vpop.f32.mrb[0].mxu0
        %v2921 = vadd.f32 0.0, %v2920
        %v2922 = vpop.f32.mrb[0].mxu0
        %2923 = vmatprep.mubr.bf16.mxu0 0
        %2924 = vmatmul.mubr.bf16.gmra.mrb[0].mxu0 %v517
        %v2925 = vpop.f32.mrb[0].mxu0
        %v2926 = vadd.f32 0.0, %v2925
        %v2927 = vpop.f32.mrb[0].mxu0
        %v2928 = vpop.f32.mrb[0].mxu0
        %v2929 = vadd.f32 0.0, %v2928
        %v2930 = vpop.f32.mrb[0].mxu0
        %2931 = vmatprep.mubr.bf16.mxu0 0
        %2932 = vmatmul.mubr.bf16.gmra.mrb[0].mxu0 %v520
        %v2933 = vpop.f32.mrb[0].mxu0
        %v2934 = vadd.f32 0.0, %v2933
        %v2935 = vpop.f32.mrb[0].mxu0
        %v2936 = vpop.f32.mrb[0].mxu0
        %v2937 = vpop.f32.mrb[0].mxu0
        %2938 = vdwg.mxu0
        %vm2939 = vcmp.gt.f32.partialorder %v2918, 20.0
        %vm2940 = vcmp.gt.f32.partialorder %v2921, 20.0
        %vm2941 = vcmp.gt.f32.partialorder %v2926, 20.0
        %vm2942 = vcmp.gt.f32.partialorder %v2929, 20.0
        %vm2943 = vcmp.gt.f32.partialorder %v2934, 20.0
        %v2944 = vmul.f32 %v2918, 1.442695
        %v2945 = vpow.pop %v2944
        %v2946 = vmul.f32 %v2921, 1.442695
        %v2947 = vpow.pop %v2946
        %v2948 = vmul.f32 %v2926, 1.442695
        %v2949 = vpow.pop %v2948
        %v2950 = vmul.f32 %v2929, 1.442695
        %v2951 = vpow.pop %v2950
        %v2952 = vmul.f32 %v2934, 1.442695
        %v2953 = vpow.pop %v2952
        %v2954 = vadd.f32 %v2945, 1.0
        %v2955 = vlog2.pop %v2954
        %v2956 = vmul.f32 %v2955, 0.6931472
        %v2957 = vmul.f32 -0.5, %v2945
        %v2958 = vadd.f32 %v2957, 1.0
        %v2959 = vmul.f32 %v2958, %v2945
        %v2960 = vand.u32 2147483647, %v2945
        %vm2961 = vcmp.lt.f32.partialorder %v2960, 0.0004427343
        %v2962 = vsel %vm2961, %v2959, %v2956
        %v2963 = vadd.f32 %v2947, 1.0
        %v2964 = vlog2.pop %v2963
        %v2965 = vmul.f32 %v2964, 0.6931472
        %v2966 = vmul.f32 -0.5, %v2947
        %v2967 = vadd.f32 %v2966, 1.0
        %v2968 = vmul.f32 %v2967, %v2947
        %v2969 = vand.u32 2147483647, %v2947
        %vm2970 = vcmp.lt.f32.partialorder %v2969, 0.0004427343
        %v2971 = vsel %vm2970, %v2968, %v2965
        %v2972 = vadd.f32 %v2949, 1.0
        %v2973 = vlog2.pop %v2972
        %v2974 = vmul.f32 %v2973, 0.6931472
        %v2975 = vmul.f32 -0.5, %v2949
        %v2976 = vadd.f32 %v2975, 1.0
        %v2977 = vmul.f32 %v2976, %v2949
        %v2978 = vand.u32 2147483647, %v2949
        %vm2979 = vcmp.lt.f32.partialorder %v2978, 0.0004427343
        %v2980 = vsel %vm2979, %v2977, %v2974
        %v2981 = vadd.f32 %v2951, 1.0
        %v2982 = vlog2.pop %v2981
        %v2983 = vmul.f32 %v2982, 0.6931472
        %v2984 = vmul.f32 -0.5, %v2951
        %v2985 = vadd.f32 %v2984, 1.0
        %v2986 = vmul.f32 %v2985, %v2951
        %v2987 = vand.u32 2147483647, %v2951
        %vm2988 = vcmp.lt.f32.partialorder %v2987, 0.0004427343
        %v2989 = vsel %vm2988, %v2986, %v2983
        %v2990 = vadd.f32 %v2953, 1.0
        %v2991 = vlog2.pop %v2990
        %v2992 = vmul.f32 %v2991, 0.6931472
        %v2993 = vmul.f32 -0.5, %v2953
        %v2994 = vadd.f32 %v2993, 1.0
        %v2995 = vmul.f32 %v2994, %v2953
        %v2996 = vand.u32 2147483647, %v2953
        %vm2997 = vcmp.lt.f32.partialorder %v2996, 0.0004427343
        %v2998 = vsel %vm2997, %v2995, %v2992
        %v2999 = vsel %vm2939, %v2918, %v2962
        %v3000 = vsel %vm2940, %v2921, %v2971
        %v3001 = vsel %vm2941, %v2926, %v2980
        %v3002 = vsel %vm2942, %v2929, %v2989
        %v3003 = vsel %vm2943, %v2934, %v2998
        %v3004 = vstv %s2683
        %v3005 = vmul.f32 %v3004, %v250
        %v3006 = vmul.f32 %v3004, %v251
        %v3007 = vmul.f32 %v3004, %v252
        %v3008 = vadd.f32 %v244, %v3005
        %v3009 = vadd.f32 %v245, %v3006
        %v3010 = vadd.f32 %v246, %v3007
        %v3011 = vpack.c.bf16 %v3009, %v3008
        %v3012 = vpack.c.bf16 %v3010, %v3010
        %v3013 = vpack.c.bf16 %v3000, %v2999
        %v3014 = vpack.c.bf16 %v3002, %v3001
        %v3015 = vpack.c.bf16 %v3003, %v3003
        %v3017 = vsel %vm363, %v3011, 0
        %v3020 = vsel %vm363, %v3012, 0
        %v3023 = vsel %vm282, %v3015, 0
        %3025 = vmatprep.subr.bf16.mxu0 0
        %3026 = vmatpush1.bf16.msra.mxu0 %v3013
        %3027 = vmatprep.subr.bf16.mxu0 0
        %3028 = vmatpush1.bf16.msra.mxu0 %v3014
        %3029 = vmatprep.subr.bf16.mxu0 0
        %3030 = vmatpush1.bf16.msra.mxu0 %v3023
        %3031 = vmatprep.subr.bf16.mxu0 0
        %3032 = vmatpush1.bf16.msra.mxu0 0
        %3033 = vmatprep.subr.bf16.mxu0 0
        %3034 = vmatpush1.bf16.msra.mxu0 0
        %3035 = vmatprep.subr.bf16.mxu0 0
        %3036 = vmatpush1.bf16.msra.mxu0 0
        %3037 = vmatprep.subr.bf16.mxu0 0
        %3038 = vmatpush1.bf16.msra.mxu0 0
        %3039 = vmatprep.subr.bf16.mxu0 0
        %3040 = vmatpush1.bf16.msra.mxu0 0
        %3041 = vmatprep.subr.bf16.mxu0 0
        %3042 = vmatpush1.bf16.msra.mxu0 0
        %3043 = vmatprep.subr.bf16.mxu0 0
        %3044 = vmatpush1.bf16.msra.mxu0 0
        %3045 = vmatprep.subr.bf16.mxu0 0
        %3046 = vmatpush1.bf16.msra.mxu0 0
        %3047 = vmatprep.subr.bf16.mxu0 0
        %3048 = vmatpush1.bf16.msra.mxu0 0
        %3049 = vmatprep.subr.bf16.mxu0 0
        %3050 = vmatpush1.bf16.msra.mxu0 0
        %3051 = vmatprep.subr.bf16.mxu0 0
        %3052 = vmatpush1.bf16.msra.mxu0 0
        %3053 = vmatprep.subr.bf16.mxu0 0
        %3054 = vmatpush1.bf16.msra.mxu0 0
        %3055 = vmatprep.subr.bf16.mxu0 0
        %3056 = vmatpush1.bf16.msra.mxu0 0
        %3057 = vmatprep.mubr.bf16.mxu0 0
        %3058 = vmatmul.mubr.bf16.gmra.mrb[0].mxu0 %v3017
        %v3059 = vpop.f32.mrb[0].mxu0
        %v3060 = vadd.f32 0.0, %v3059
        %v3061 = vpop.f32.mrb[0].mxu0
        %v3062 = vpop.f32.mrb[0].mxu0
        %v3063 = vadd.f32 0.0, %v3062
        %v3064 = vpop.f32.mrb[0].mxu0
        %3065 = vmatprep.mubr.bf16.mxu0 0
        %3066 = vmatmul.mubr.bf16.gmra.mrb[0].mxu0 %v3020
        %v3067 = vpop.f32.mrb[0].mxu0
        %v3068 = vpop.f32.mrb[0].mxu0
        %v3069 = vpop.f32.mrb[0].mxu0
        %v3070 = vpop.f32.mrb[0].mxu0
        %3071 = vdwg.mxu0
        %v3072 = vadd.f32 %v2680, %v3060
        %v3073 = vadd.f32 %v2681, %v3063
        %3074 = vst [vmem:[%s224] sm:$0xff] %v3072
        %3075 = vst [vmem:[%s224 + $0x8] sm:$0xff] %v3073
        %s3076 = sand.u32 %s94, 1
        %s3077 = scalar_lea.sflag [#allocation3], %s3076
        %s3078 = sand.u32 %s94, 1
        %s3079 = smul.addr %s3078, 16
        %s3080 = scalar_lea.vmem [#allocation6], %s3079
        // Predicated region
        $region75: #{tpu_custom_call.1} parent=65 // pred_check
          %p3081 = pneg %p104
        $region76: #{tpu_custom_call.1} parent=65 // pred_check_branch
          %3083 = sbr.rel (%p3081) target = $region78
        $region77: #{tpu_custom_call.1} parent=65 // pred_region
          %s3085 = ssub.s32 256, 256
          %3086 = vsyncadd %s3077, %s3085
          %s3087 = smul.addr %s18, 128
          %s3088 = scalar_lea.hbm %s3, %s3087
          %s3089 = sshll.u32 %s3080, 4
          %s3090 = int_to_ptr.vmem [resolvable:$true] %s3089
          %3095 = dma.vmem_to_hbm [thread:$0]  %s3090, 256, %s3088, %s3077, 128, 256, 8
        $region78: #{tpu_custom_call.1} parent=65 // pred_fallthru
          _
      $region66: #{tpu_custom_call.1} parent=5 // pred_fallthru
        _
      %p3096 = scmp.le.s32.totalorder 2, %s13
      // Predicated region
      $region79: #{tpu_custom_call.1} parent=5 // pred_check
        %p3097 = pneg %p3096
      $region80: #{tpu_custom_call.1} parent=5 // pred_check_branch
        %3099 = sbr.rel (%p3097) target = $region82
      $region81: #{tpu_custom_call.1} parent=5 // pred_region
        %s3100 = ssub.s32 %s13, 2
        // Predicated region
        $region83: #{tpu_custom_call.1} parent=81 // pred_check
          %p3101 = pneg %p110
        $region84: #{tpu_custom_call.1} parent=81 // pred_check_branch
          %3103 = sbr.rel (%p3101) target = $region86
        $region85: #{tpu_custom_call.1} parent=81 // pred_region
          %s3104 = sand.u32 %s95, 1
          %s3105 = scalar_lea.sflag [#allocation3], %s3104
          %s3106 = sand.u32 %s95, 1
          %s3107 = smul.addr %s3106, 16
          %s3108 = scalar_lea.vmem [#allocation6], %s3107
          %3109 = dma.done %s3105, 256
        $region86: #{tpu_custom_call.1} parent=81 // pred_fallthru
          _
      $region82: #{tpu_custom_call.1} parent=5 // pred_fallthru
        _
    $region6: #{tpu_custom_call.1} parent=1 // loop_footer
      %s17 = sadd.s32 1, %s13
    $region7: #{tpu_custom_call.1} parent=1 // loop_footer_branch
      %12 = sbr.rel target = $region3
    $region8: #{tpu_custom_call.1} parent=1 // loop_exit
      _
    %3110 = vsyncpa [#allocation3], 1
    %s3111 = scalar_lea.sflag [#allocation3], 1
    %3112 = vsyncpa %s3111, 1
    %3113 = vsyncpa [#allocation4], 1
    %s3114 = scalar_lea.sflag [#allocation4], 1
    %3115 = vsyncpa %s3114, 1

</llo_original>
